<compile_context>
chip_gen: v7x
topology: tpu7x:2x2x1
jax: 0.10.0
libtpu: 0.0.40
codegen_flags: <defaults>
</compile_context>

<pallas_src>
import functools

import jax
import jax.numpy as jnp
from jax.experimental import pallas as pl
from jax.experimental.pallas import tpu as pltpu

# ---------------- model hyper-parameters (small, consistent with the module) ----------
B = 2           # batch
S = 8           # sequence length
D = 32          # d_model
H = 4           # nhead
DH = D // H     # head dim
F = 64          # dim_feedforward
NUM_LAYERS = 2
EPS = 1e-5
SCALE = 1.0 / float(DH) ** 0.5
D3 = 3 * D      # packed QKV width (96)


def _batch_per_block():
    """How many batch elements one grid step processes (fold on single-TC chips)."""
    kind = ""
    try:
        kind = jax.devices()[0].device_kind.lower()
    except Exception:
        pass
    megacore = any(tag in kind for tag in ("v7", "7x", "v4", "v5p"))
    return 1 if megacore else B       # split across TCs on megacore, fold otherwise


NB = _batch_per_block()               # batch elements per grid step
GRID = (B // NB,)
ROWS = NB * S                         # activation rows seen by each grid step


def _layer_norm(x, gamma, beta):
    # x: (rows, D); gamma/beta: (1, D); normalize over last dim (PyTorch LayerNorm(D))
    mu = jnp.mean(x, axis=-1, keepdims=True)
    var = jnp.mean((x - mu) ** 2, axis=-1, keepdims=True)
    return (x - mu) * jax.lax.rsqrt(var + EPS) * gamma + beta


def encoder_stack_kernel(x_ref, wqkv_ref, wo_ref, w1_ref, w2_ref, vec_ref, fin_ref,
                         out_ref, *, nb):
    x = x_ref[...].astype(jnp.float32)                    # (nb*S, D)

    for l in range(NUM_LAYERS):                           # static unroll over layers
        wqkv = wqkv_ref[l]                                # (D, 3D)  bf16
        wo = wo_ref[l]                                    # (D, D)   bf16
        w1 = w1_ref[l]                                    # (D, F)   bf16
        w2 = w2_ref[l]                                    # (F, D)   bf16
        vec = vec_ref[l].astype(jnp.float32)              # (8, 3D)  row-packed small vectors

        bqkv = vec[0:1, :]                                # (1, 3D)
        bo = vec[1:2, 0:D]
        b1 = vec[2:3, 0:F]
        b2 = vec[3:4, 0:D]
        g1 = vec[4:5, 0:D]
        be1 = vec[5:6, 0:D]
        g2 = vec[6:7, 0:D]
        be2 = vec[7:8, 0:D]

        # ---- fused QKV projection: ONE matmul for the whole block of rows ----
        qkv = jnp.dot(x.astype(jnp.bfloat16), wqkv,
                      preferred_element_type=jnp.float32) + bqkv      # (rows, 3D)

        # ---- attention: per (batch-in-block, head) small matmuls, exact softmax ----
        ctx_blocks = []
        for b in range(nb):
            r0 = b * S
            qkv_b = qkv[r0:r0 + S, :]                     # (S, 3D)  sublane slice
            heads = []
            for h in range(H):
                c = h * DH
                qh = qkv_b[:, c:c + DH]                   # (S, DH)
                kh = qkv_b[:, D + c:D + c + DH]
                vh = qkv_b[:, 2 * D + c:2 * D + c + DH]
                s = jnp.einsum('qe,ke->qk', qh, kh,
                               preferred_element_type=jnp.float32) * SCALE   # (S, S)
                s = s - jnp.max(s, axis=-1, keepdims=True)
                p = jnp.exp(s)
                p = p / jnp.sum(p, axis=-1, keepdims=True)
                heads.append(jnp.dot(p, vh, preferred_element_type=jnp.float32))
            ctx_blocks.append(jnp.concatenate(heads, axis=-1))        # (S, D)
        ctx = ctx_blocks[0] if nb == 1 else jnp.concatenate(ctx_blocks, axis=0)

        # ---- output projection folded into ONE (rows, D) @ (D, D) matmul ----
        attn = jnp.dot(ctx.astype(jnp.bfloat16), wo,
                       preferred_element_type=jnp.float32) + bo
        y = _layer_norm(x + attn, g1, be1)                # post-norm (norm_first=False)

        # ---- feed-forward: linear -> ReLU -> linear, residual + LayerNorm ----
        hdn = jnp.maximum(
            jnp.dot(y.astype(jnp.bfloat16), w1, preferred_element_type=jnp.float32) + b1,
            0.0)
        ff = jnp.dot(hdn.astype(jnp.bfloat16), w2,
                     preferred_element_type=jnp.float32) + b2
        x = _layer_norm(y + ff, g2, be2)

    # optional final LayerNorm (self.norm); fin rows: 0 = gamma, 1 = beta
    fin = fin_ref[...].astype(jnp.float32)                # (2, D)
    x = _layer_norm(x, fin[0:1, :], fin[1:2, :])

    out_ref[...] = x.astype(out_ref.dtype)


def _resident_spec(shape):
    # whole-array (grid-invariant) block spec; weights stay VMEM-resident across steps
    zeros = (0,) * len(shape)
    return pl.BlockSpec(shape, lambda i, _z=zeros: _z)


def run_encoder_stack(x, wqkv, wo, w1, w2, vec, fin):
    x2 = x.reshape(B * S, D)                              # free wrapper-side flatten
    act_spec = pl.BlockSpec((ROWS, D), lambda i: (i, 0))
    params = (wqkv, wo, w1, w2, vec, fin)
    out2 = pl.pallas_call(
        functools.partial(encoder_stack_kernel, nb=NB),
        out_shape=jax.ShapeDtypeStruct((B * S, D), x.dtype),
        grid=GRID,
        in_specs=[act_spec] + [_resident_spec(p.shape) for p in params],
        out_specs=act_spec,
        compiler_params=pltpu.CompilerParams(dimension_semantics=("parallel",)),
    )(x2, *params)
    return out2.reshape(B, S, D)


transformer_encoder = jax.jit(run_encoder_stack)


# ---------------- host-side parameter construction / packing --------------------------
def init_layer_params(key):
    ks = jax.random.split(key, 6)
    scale = 0.02
    wq = scale * jax.random.normal(ks[0], (D, D), jnp.float32)
    wk = scale * jax.random.normal(ks[1], (D, D), jnp.float32)
    wv = scale * jax.random.normal(ks[2], (D, D), jnp.float32)
    wo = scale * jax.random.normal(ks[3], (D, D), jnp.float32)
    bq = jnp.zeros((D,), jnp.float32)
    bk = jnp.zeros((D,), jnp.float32)
    bv = jnp.zeros((D,), jnp.float32)
    bo = jnp.zeros((D,), jnp.float32)
    g1 = jnp.ones((D,), jnp.float32)
    be1 = jnp.zeros((D,), jnp.float32)
    w1 = scale * jax.random.normal(ks[4], (D, F), jnp.float32)
    b1 = jnp.zeros((F,), jnp.float32)
    w2 = scale * jax.random.normal(ks[5], (F, D), jnp.float32)
    b2 = jnp.zeros((D,), jnp.float32)
    g2 = jnp.ones((D,), jnp.float32)
    be2 = jnp.zeros((D,), jnp.float32)
    return (wq, wk, wv, wo, bq, bk, bv, bo, g1, be1, w1, b1, w2, b2, g2, be2)


def _pack_layer(p):
    (wq, wk, wv, wo, bq, bk, bv, bo, g1, be1, w1, b1, w2, b2, g2, be2) = p
    # weights are (in_features, out_features): y = x @ W + b
    wqkv = jnp.concatenate([wq, wk, wv], axis=1)          # (D, 3D), columns q | k | v
    vec = jnp.zeros((8, D3), jnp.float32)                 # row-major packed small vectors
    vec = vec.at[0, :].set(jnp.concatenate([bq, bk, bv]))
    vec = vec.at[1, :D].set(bo)
    vec = vec.at[2, :F].set(b1)
    vec = vec.at[3, :D].set(b2)
    vec = vec.at[4, :D].set(g1)
    vec = vec.at[5, :D].set(be1)
    vec = vec.at[6, :D].set(g2)
    vec = vec.at[7, :D].set(be2)
    return wqkv, wo, w1, w2, vec


def pack_params(layer_params_list, norm_gamma, norm_beta):
    per = [_pack_layer(p) for p in layer_params_list]
    wqkv = jnp.stack([t[0] for t in per]).astype(jnp.bfloat16)   # (L, D, 3D)
    wo = jnp.stack([t[1] for t in per]).astype(jnp.bfloat16)     # (L, D, D)
    w1 = jnp.stack([t[2] for t in per]).astype(jnp.bfloat16)     # (L, D, F)
    w2 = jnp.stack([t[3] for t in per]).astype(jnp.bfloat16)     # (L, F, D)
    vec = jnp.stack([t[4] for t in per])                         # (L, 8, 3D) f32
    fin = jnp.stack([norm_gamma, norm_beta])                     # (2, D)     f32
    return wqkv, wo, w1, w2, vec, fin


# ---------------- pure-JAX f32 reference (PyTorch eval-mode semantics) ----------------
def reference_forward(x, layer_params_list, norm_gamma, norm_beta):
    def ln(v, g, b):
        mu = jnp.mean(v, axis=-1, keepdims=True)
        var = jnp.mean((v - mu) ** 2, axis=-1, keepdims=True)
        return (v - mu) * jax.lax.rsqrt(var + EPS) * g + b

    out = x
    for p in layer_params_list:
        (wq, wk, wv, wo, bq, bk, bv, bo, g1, be1, w1, b1, w2, b2, g2, be2) = p
        q = out @ wq + bq
        k = out @ wk + bk
        v = out @ wv + bv

        def split(t):
            return jnp.transpose(t.reshape(B, S, H, DH), (0, 2, 1, 3))

        qh, kh, vh = split(q), split(k), split(v)
        s = jnp.einsum('bhqe,bhke->bhqk', qh, kh) * SCALE
        s = s - jnp.max(s, axis=-1, keepdims=True)
        pr = jnp.exp(s)
        pr = pr / jnp.sum(pr, axis=-1, keepdims=True)
        ctx = jnp.einsum('bhqk,bhke->bhqe', pr, vh)
        ctx = jnp.transpose(ctx, (0, 2, 1, 3)).reshape(B, S, D)
        attn = ctx @ wo + bo
        y = ln(out + attn, g1, be1)
        ff = jnp.maximum(y @ w1 + b1, 0.0) @ w2 + b2
        out = ln(y + ff, g2, be2)
    return ln(out, norm_gamma, norm_beta)


if __name__ == "__main__":
    key = jax.random.PRNGKey(0)
    k_in, k_layer = jax.random.split(key, 2)

    # The PyTorch module deep-copies one encoder_layer -> all layers start identical.
    base_params = init_layer_params(k_layer)
    layer_params_list = tuple(base_params for _ in range(NUM_LAYERS))

    norm_gamma = jnp.ones((D,), jnp.float32)
    norm_beta = jnp.zeros((D,), jnp.float32)

    packed = pack_params(layer_params_list, norm_gamma, norm_beta)   # packed once, host-side
    src = jax.random.normal(k_in, (B, S, D), jnp.float32)

    out = transformer_encoder(src, *packed)
    out = jax.block_until_ready(out)
    assert out.shape == (B, S, D)
    assert bool(jnp.all(jnp.isfinite(out)))

    ref = reference_forward(src, layer_params_list, norm_gamma, norm_beta)
    max_err = float(jnp.max(jnp.abs(out - ref)))
    assert max_err < 5e-2, f"kernel deviates from reference: max abs err {max_err}"
    print("KERNEL_OK")
</pallas_src>

<mosaic_0001>
module attributes {stable_mosaic.version = 11 : i64} {
  func.func @encoder_stack_kernel(%arg0: i32, %arg1: memref<16x32xf32, #tpu.memory_space<vmem>>, %arg2: memref<2x32x96xbf16, #tpu.memory_space<vmem>>, %arg3: memref<2x32x32xbf16, #tpu.memory_space<vmem>>, %arg4: memref<2x32x64xbf16, #tpu.memory_space<vmem>>, %arg5: memref<2x64x32xbf16, #tpu.memory_space<vmem>>, %arg6: memref<2x8x96xf32, #tpu.memory_space<vmem>>, %arg7: memref<2x32xf32, #tpu.memory_space<vmem>>, %arg8: memref<16x32xf32, #tpu.memory_space<vmem>>) attributes {dimension_semantics = [#tpu.dimension_semantics<parallel>], iteration_bounds = array<i64: 1>, scalar_prefetch = 0 : i64, scratch_operands = 0 : i64, tpu.core_type = #tpu.core_type<tc>, window_params = [{transform_indices = @transform_0, window_bounds = array<i64: 16, 32>}, {pipeline_mode = #tpu.pipeline_mode<synchronous>, transform_indices = @transform_1, window_bounds = array<i64: 2, 32, 96>}, {pipeline_mode = #tpu.pipeline_mode<synchronous>, transform_indices = @transform_2, window_bounds = array<i64: 2, 32, 32>}, {pipeline_mode = #tpu.pipeline_mode<synchronous>, transform_indices = @transform_3, window_bounds = array<i64: 2, 32, 64>}, {pipeline_mode = #tpu.pipeline_mode<synchronous>, transform_indices = @transform_4, window_bounds = array<i64: 2, 64, 32>}, {pipeline_mode = #tpu.pipeline_mode<synchronous>, transform_indices = @transform_5, window_bounds = array<i64: 2, 8, 96>}, {pipeline_mode = #tpu.pipeline_mode<synchronous>, transform_indices = @transform_6, window_bounds = array<i64: 2, 32>}, {transform_indices = @transform_7, window_bounds = array<i64: 16, 32>}]} {
    %c0 = arith.constant 0 : index
    %c0_0 = arith.constant 0 : index
    %0 = vector.load %arg1[%c0, %c0_0] : memref<16x32xf32, #tpu.memory_space<vmem>>, vector<16x32xf32>
    %c0_1 = arith.constant 0 : index
    %c0_2 = arith.constant 0 : index
    %c0_3 = arith.constant 0 : index
    %1 = vector.load %arg2[%c0_1, %c0_2, %c0_3] : memref<2x32x96xbf16, #tpu.memory_space<vmem>>, vector<1x32x96xbf16>
    %2 = vector.shape_cast %1 : vector<1x32x96xbf16> to vector<32x96xbf16>
    %c0_4 = arith.constant 0 : index
    %c0_5 = arith.constant 0 : index
    %c0_6 = arith.constant 0 : index
    %3 = vector.load %arg3[%c0_4, %c0_5, %c0_6] : memref<2x32x32xbf16, #tpu.memory_space<vmem>>, vector<1x32x32xbf16>
    %4 = vector.shape_cast %3 : vector<1x32x32xbf16> to vector<32x32xbf16>
    %c0_7 = arith.constant 0 : index
    %c0_8 = arith.constant 0 : index
    %c0_9 = arith.constant 0 : index
    %5 = vector.load %arg4[%c0_7, %c0_8, %c0_9] : memref<2x32x64xbf16, #tpu.memory_space<vmem>>, vector<1x32x64xbf16>
    %6 = vector.shape_cast %5 : vector<1x32x64xbf16> to vector<32x64xbf16>
    %c0_10 = arith.constant 0 : index
    %c0_11 = arith.constant 0 : index
    %c0_12 = arith.constant 0 : index
    %7 = vector.load %arg5[%c0_10, %c0_11, %c0_12] : memref<2x64x32xbf16, #tpu.memory_space<vmem>>, vector<1x64x32xbf16>
    %8 = vector.shape_cast %7 : vector<1x64x32xbf16> to vector<64x32xbf16>
    %c0_13 = arith.constant 0 : index
    %c0_14 = arith.constant 0 : index
    %c0_15 = arith.constant 0 : index
    %9 = vector.load %arg6[%c0_13, %c0_14, %c0_15] : memref<2x8x96xf32, #tpu.memory_space<vmem>>, vector<1x8x96xf32>
    %10 = vector.shape_cast %9 : vector<1x8x96xf32> to vector<8x96xf32>
    %11 = vector.extract_strided_slice %10 {offsets = [0, 0], sizes = [1, 96], strides = [1, 1]} : vector<8x96xf32> to vector<1x96xf32>
    %12 = vector.extract_strided_slice %10 {offsets = [1, 0], sizes = [1, 32], strides = [1, 1]} : vector<8x96xf32> to vector<1x32xf32>
    %13 = vector.extract_strided_slice %10 {offsets = [2, 0], sizes = [1, 64], strides = [1, 1]} : vector<8x96xf32> to vector<1x64xf32>
    %14 = vector.extract_strided_slice %10 {offsets = [3, 0], sizes = [1, 32], strides = [1, 1]} : vector<8x96xf32> to vector<1x32xf32>
    %15 = vector.extract_strided_slice %10 {offsets = [4, 0], sizes = [1, 32], strides = [1, 1]} : vector<8x96xf32> to vector<1x32xf32>
    %16 = vector.extract_strided_slice %10 {offsets = [5, 0], sizes = [1, 32], strides = [1, 1]} : vector<8x96xf32> to vector<1x32xf32>
    %17 = vector.extract_strided_slice %10 {offsets = [6, 0], sizes = [1, 32], strides = [1, 1]} : vector<8x96xf32> to vector<1x32xf32>
    %18 = vector.extract_strided_slice %10 {offsets = [7, 0], sizes = [1, 32], strides = [1, 1]} : vector<8x96xf32> to vector<1x32xf32>
    %19 = arith.truncf %0 : vector<16x32xf32> to vector<16x32xbf16>
    %cst = arith.constant dense<0.000000e+00> : vector<16x96xf32>
    %20 = tpu.matmul %19, %2, %cst {dimension_numbers = #tpu.dot_dimension_numbers<[1], [0], [0], [1], [0, 0, 1, 1], [], []>} : vector<16x32xbf16>, vector<32x96xbf16>, vector<16x96xf32> -> vector<16x96xf32>
    %21 = vector.broadcast %11 : vector<1x96xf32> to vector<16x96xf32>
    %22 = arith.addf %20, %21 : vector<16x96xf32>
    %23 = vector.extract_strided_slice %22 {offsets = [0, 0], sizes = [8, 96], strides = [1, 1]} : vector<16x96xf32> to vector<8x96xf32>
    %24 = vector.extract_strided_slice %23 {offsets = [0, 0], sizes = [8, 8], strides = [1, 1]} : vector<8x96xf32> to vector<8x8xf32>
    %25 = vector.extract_strided_slice %23 {offsets = [0, 32], sizes = [8, 8], strides = [1, 1]} : vector<8x96xf32> to vector<8x8xf32>
    %26 = vector.extract_strided_slice %23 {offsets = [0, 64], sizes = [8, 8], strides = [1, 1]} : vector<8x96xf32> to vector<8x8xf32>
    "tpu.trace_start"() <{level = 10 : i32, message = "qe,ke->qk"}> : () -> ()
    %cst_16 = arith.constant dense<0.000000e+00> : vector<8x8xf32>
    %27 = tpu.matmul %24, %25, %cst_16 {dimension_numbers = #tpu.dot_dimension_numbers<[1], [1], [0], [0], [0, 0, 1, 0], [], []>} : vector<8x8xf32>, vector<8x8xf32>, vector<8x8xf32> -> vector<8x8xf32>
    "tpu.trace_stop"() : () -> ()
    %cst_17 = arith.constant 0.353553385 : f32
    %28 = vector.broadcast %cst_17 : f32 to vector<8x8xf32>
    %29 = arith.mulf %27, %28 : vector<8x8xf32>
    %cst_18 = arith.constant dense<0xFF800000> : vector<8xf32>
    %30 = vector.multi_reduction <maximumf>, %29, %cst_18 [1] : vector<8x8xf32> to vector<8xf32>
    %31 = vector.shape_cast %30 : vector<8xf32> to vector<8x1xf32>
    %32 = vector.broadcast %31 : vector<8x1xf32> to vector<8x8xf32>
    %33 = arith.subf %29, %32 : vector<8x8xf32>
    %34 = math.exp %33 : vector<8x8xf32>
    %cst_19 = arith.constant dense<0.000000e+00> : vector<8xf32>
    %35 = vector.multi_reduction <add>, %34, %cst_19 [1] : vector<8x8xf32> to vector<8xf32>
    %36 = vector.shape_cast %35 : vector<8xf32> to vector<8x1xf32>
    %37 = vector.broadcast %36 : vector<8x1xf32> to vector<8x8xf32>
    %38 = arith.divf %34, %37 : vector<8x8xf32>
    %cst_20 = arith.constant dense<0.000000e+00> : vector<8x8xf32>
    %39 = tpu.matmul %38, %26, %cst_20 {dimension_numbers = #tpu.dot_dimension_numbers<[1], [0], [0], [1], [0, 0, 1, 1], [], []>} : vector<8x8xf32>, vector<8x8xf32>, vector<8x8xf32> -> vector<8x8xf32>
    %40 = vector.extract_strided_slice %23 {offsets = [0, 8], sizes = [8, 8], strides = [1, 1]} : vector<8x96xf32> to vector<8x8xf32>
    %41 = vector.extract_strided_slice %23 {offsets = [0, 40], sizes = [8, 8], strides = [1, 1]} : vector<8x96xf32> to vector<8x8xf32>
    %42 = vector.extract_strided_slice %23 {offsets = [0, 72], sizes = [8, 8], strides = [1, 1]} : vector<8x96xf32> to vector<8x8xf32>
    "tpu.trace_start"() <{level = 10 : i32, message = "qe,ke->qk"}> : () -> ()
    %cst_21 = arith.constant dense<0.000000e+00> : vector<8x8xf32>
    %43 = tpu.matmul %40, %41, %cst_21 {dimension_numbers = #tpu.dot_dimension_numbers<[1], [1], [0], [0], [0, 0, 1, 0], [], []>} : vector<8x8xf32>, vector<8x8xf32>, vector<8x8xf32> -> vector<8x8xf32>
    "tpu.trace_stop"() : () -> ()
    %cst_22 = arith.constant 0.353553385 : f32
    %44 = vector.broadcast %cst_22 : f32 to vector<8x8xf32>
    %45 = arith.mulf %43, %44 : vector<8x8xf32>
    %cst_23 = arith.constant dense<0xFF800000> : vector<8xf32>
    %46 = vector.multi_reduction <maximumf>, %45, %cst_23 [1] : vector<8x8xf32> to vector<8xf32>
    %47 = vector.shape_cast %46 : vector<8xf32> to vector<8x1xf32>
    %48 = vector.broadcast %47 : vector<8x1xf32> to vector<8x8xf32>
    %49 = arith.subf %45, %48 : vector<8x8xf32>
    %50 = math.exp %49 : vector<8x8xf32>
    %cst_24 = arith.constant dense<0.000000e+00> : vector<8xf32>
    %51 = vector.multi_reduction <add>, %50, %cst_24 [1] : vector<8x8xf32> to vector<8xf32>
    %52 = vector.shape_cast %51 : vector<8xf32> to vector<8x1xf32>
    %53 = vector.broadcast %52 : vector<8x1xf32> to vector<8x8xf32>
    %54 = arith.divf %50, %53 : vector<8x8xf32>
    %cst_25 = arith.constant dense<0.000000e+00> : vector<8x8xf32>
    %55 = tpu.matmul %54, %42, %cst_25 {dimension_numbers = #tpu.dot_dimension_numbers<[1], [0], [0], [1], [0, 0, 1, 1], [], []>} : vector<8x8xf32>, vector<8x8xf32>, vector<8x8xf32> -> vector<8x8xf32>
    %56 = vector.extract_strided_slice %23 {offsets = [0, 16], sizes = [8, 8], strides = [1, 1]} : vector<8x96xf32> to vector<8x8xf32>
    %57 = vector.extract_strided_slice %23 {offsets = [0, 48], sizes = [8, 8], strides = [1, 1]} : vector<8x96xf32> to vector<8x8xf32>
    %58 = vector.extract_strided_slice %23 {offsets = [0, 80], sizes = [8, 8], strides = [1, 1]} : vector<8x96xf32> to vector<8x8xf32>
    "tpu.trace_start"() <{level = 10 : i32, message = "qe,ke->qk"}> : () -> ()
    %cst_26 = arith.constant dense<0.000000e+00> : vector<8x8xf32>
    %59 = tpu.matmul %56, %57, %cst_26 {dimension_numbers = #tpu.dot_dimension_numbers<[1], [1], [0], [0], [0, 0, 1, 0], [], []>} : vector<8x8xf32>, vector<8x8xf32>, vector<8x8xf32> -> vector<8x8xf32>
    "tpu.trace_stop"() : () -> ()
    %cst_27 = arith.constant 0.353553385 : f32
    %60 = vector.broadcast %cst_27 : f32 to vector<8x8xf32>
    %61 = arith.mulf %59, %60 : vector<8x8xf32>
    %cst_28 = arith.constant dense<0xFF800000> : vector<8xf32>
    %62 = vector.multi_reduction <maximumf>, %61, %cst_28 [1] : vector<8x8xf32> to vector<8xf32>
    %63 = vector.shape_cast %62 : vector<8xf32> to vector<8x1xf32>
    %64 = vector.broadcast %63 : vector<8x1xf32> to vector<8x8xf32>
    %65 = arith.subf %61, %64 : vector<8x8xf32>
    %66 = math.exp %65 : vector<8x8xf32>
    %cst_29 = arith.constant dense<0.000000e+00> : vector<8xf32>
    %67 = vector.multi_reduction <add>, %66, %cst_29 [1] : vector<8x8xf32> to vector<8xf32>
    %68 = vector.shape_cast %67 : vector<8xf32> to vector<8x1xf32>
    %69 = vector.broadcast %68 : vector<8x1xf32> to vector<8x8xf32>
    %70 = arith.divf %66, %69 : vector<8x8xf32>
    %cst_30 = arith.constant dense<0.000000e+00> : vector<8x8xf32>
    %71 = tpu.matmul %70, %58, %cst_30 {dimension_numbers = #tpu.dot_dimension_numbers<[1], [0], [0], [1], [0, 0, 1, 1], [], []>} : vector<8x8xf32>, vector<8x8xf32>, vector<8x8xf32> -> vector<8x8xf32>
    %72 = vector.extract_strided_slice %23 {offsets = [0, 24], sizes = [8, 8], strides = [1, 1]} : vector<8x96xf32> to vector<8x8xf32>
    %73 = vector.extract_strided_slice %23 {offsets = [0, 56], sizes = [8, 8], strides = [1, 1]} : vector<8x96xf32> to vector<8x8xf32>
    %74 = vector.extract_strided_slice %23 {offsets = [0, 88], sizes = [8, 8], strides = [1, 1]} : vector<8x96xf32> to vector<8x8xf32>
    "tpu.trace_start"() <{level = 10 : i32, message = "qe,ke->qk"}> : () -> ()
    %cst_31 = arith.constant dense<0.000000e+00> : vector<8x8xf32>
    %75 = tpu.matmul %72, %73, %cst_31 {dimension_numbers = #tpu.dot_dimension_numbers<[1], [1], [0], [0], [0, 0, 1, 0], [], []>} : vector<8x8xf32>, vector<8x8xf32>, vector<8x8xf32> -> vector<8x8xf32>
    "tpu.trace_stop"() : () -> ()
    %cst_32 = arith.constant 0.353553385 : f32
    %76 = vector.broadcast %cst_32 : f32 to vector<8x8xf32>
    %77 = arith.mulf %75, %76 : vector<8x8xf32>
    %cst_33 = arith.constant dense<0xFF800000> : vector<8xf32>
    %78 = vector.multi_reduction <maximumf>, %77, %cst_33 [1] : vector<8x8xf32> to vector<8xf32>
    %79 = vector.shape_cast %78 : vector<8xf32> to vector<8x1xf32>
    %80 = vector.broadcast %79 : vector<8x1xf32> to vector<8x8xf32>
    %81 = arith.subf %77, %80 : vector<8x8xf32>
    %82 = math.exp %81 : vector<8x8xf32>
    %cst_34 = arith.constant dense<0.000000e+00> : vector<8xf32>
    %83 = vector.multi_reduction <add>, %82, %cst_34 [1] : vector<8x8xf32> to vector<8xf32>
    %84 = vector.shape_cast %83 : vector<8xf32> to vector<8x1xf32>
    %85 = vector.broadcast %84 : vector<8x1xf32> to vector<8x8xf32>
    %86 = arith.divf %82, %85 : vector<8x8xf32>
    %cst_35 = arith.constant dense<0.000000e+00> : vector<8x8xf32>
    %87 = tpu.matmul %86, %74, %cst_35 {dimension_numbers = #tpu.dot_dimension_numbers<[1], [0], [0], [1], [0, 0, 1, 1], [], []>} : vector<8x8xf32>, vector<8x8xf32>, vector<8x8xf32> -> vector<8x8xf32>
    %88 = tpu.concatenate %39, %55, %71, %87 in 1 : vector<8x8xf32>, vector<8x8xf32>, vector<8x8xf32>, vector<8x8xf32> -> vector<8x32xf32>
    %89 = vector.extract_strided_slice %22 {offsets = [8, 0], sizes = [8, 96], strides = [1, 1]} : vector<16x96xf32> to vector<8x96xf32>
    %90 = vector.extract_strided_slice %89 {offsets = [0, 0], sizes = [8, 8], strides = [1, 1]} : vector<8x96xf32> to vector<8x8xf32>
    %91 = vector.extract_strided_slice %89 {offsets = [0, 32], sizes = [8, 8], strides = [1, 1]} : vector<8x96xf32> to vector<8x8xf32>
    %92 = vector.extract_strided_slice %89 {offsets = [0, 64], sizes = [8, 8], strides = [1, 1]} : vector<8x96xf32> to vector<8x8xf32>
    "tpu.trace_start"() <{level = 10 : i32, message = "qe,ke->qk"}> : () -> ()
    %cst_36 = arith.constant dense<0.000000e+00> : vector<8x8xf32>
    %93 = tpu.matmul %90, %91, %cst_36 {dimension_numbers = #tpu.dot_dimension_numbers<[1], [1], [0], [0], [0, 0, 1, 0], [], []>} : vector<8x8xf32>, vector<8x8xf32>, vector<8x8xf32> -> vector<8x8xf32>
    "tpu.trace_stop"() : () -> ()
    %cst_37 = arith.constant 0.353553385 : f32
    %94 = vector.broadcast %cst_37 : f32 to vector<8x8xf32>
    %95 = arith.mulf %93, %94 : vector<8x8xf32>
    %cst_38 = arith.constant dense<0xFF800000> : vector<8xf32>
    %96 = vector.multi_reduction <maximumf>, %95, %cst_38 [1] : vector<8x8xf32> to vector<8xf32>
    %97 = vector.shape_cast %96 : vector<8xf32> to vector<8x1xf32>
    %98 = vector.broadcast %97 : vector<8x1xf32> to vector<8x8xf32>
    %99 = arith.subf %95, %98 : vector<8x8xf32>
    %100 = math.exp %99 : vector<8x8xf32>
    %cst_39 = arith.constant dense<0.000000e+00> : vector<8xf32>
    %101 = vector.multi_reduction <add>, %100, %cst_39 [1] : vector<8x8xf32> to vector<8xf32>
    %102 = vector.shape_cast %101 : vector<8xf32> to vector<8x1xf32>
    %103 = vector.broadcast %102 : vector<8x1xf32> to vector<8x8xf32>
    %104 = arith.divf %100, %103 : vector<8x8xf32>
    %cst_40 = arith.constant dense<0.000000e+00> : vector<8x8xf32>
    %105 = tpu.matmul %104, %92, %cst_40 {dimension_numbers = #tpu.dot_dimension_numbers<[1], [0], [0], [1], [0, 0, 1, 1], [], []>} : vector<8x8xf32>, vector<8x8xf32>, vector<8x8xf32> -> vector<8x8xf32>
    %106 = vector.extract_strided_slice %89 {offsets = [0, 8], sizes = [8, 8], strides = [1, 1]} : vector<8x96xf32> to vector<8x8xf32>
    %107 = vector.extract_strided_slice %89 {offsets = [0, 40], sizes = [8, 8], strides = [1, 1]} : vector<8x96xf32> to vector<8x8xf32>
    %108 = vector.extract_strided_slice %89 {offsets = [0, 72], sizes = [8, 8], strides = [1, 1]} : vector<8x96xf32> to vector<8x8xf32>
    "tpu.trace_start"() <{level = 10 : i32, message = "qe,ke->qk"}> : () -> ()
    %cst_41 = arith.constant dense<0.000000e+00> : vector<8x8xf32>
    %109 = tpu.matmul %106, %107, %cst_41 {dimension_numbers = #tpu.dot_dimension_numbers<[1], [1], [0], [0], [0, 0, 1, 0], [], []>} : vector<8x8xf32>, vector<8x8xf32>, vector<8x8xf32> -> vector<8x8xf32>
    "tpu.trace_stop"() : () -> ()
    %cst_42 = arith.constant 0.353553385 : f32
    %110 = vector.broadcast %cst_42 : f32 to vector<8x8xf32>
    %111 = arith.mulf %109, %110 : vector<8x8xf32>
    %cst_43 = arith.constant dense<0xFF800000> : vector<8xf32>
    %112 = vector.multi_reduction <maximumf>, %111, %cst_43 [1] : vector<8x8xf32> to vector<8xf32>
    %113 = vector.shape_cast %112 : vector<8xf32> to vector<8x1xf32>
    %114 = vector.broadcast %113 : vector<8x1xf32> to vector<8x8xf32>
    %115 = arith.subf %111, %114 : vector<8x8xf32>
    %116 = math.exp %115 : vector<8x8xf32>
    %cst_44 = arith.constant dense<0.000000e+00> : vector<8xf32>
    %117 = vector.multi_reduction <add>, %116, %cst_44 [1] : vector<8x8xf32> to vector<8xf32>
    %118 = vector.shape_cast %117 : vector<8xf32> to vector<8x1xf32>
    %119 = vector.broadcast %118 : vector<8x1xf32> to vector<8x8xf32>
    %120 = arith.divf %116, %119 : vector<8x8xf32>
    %cst_45 = arith.constant dense<0.000000e+00> : vector<8x8xf32>
    %121 = tpu.matmul %120, %108, %cst_45 {dimension_numbers = #tpu.dot_dimension_numbers<[1], [0], [0], [1], [0, 0, 1, 1], [], []>} : vector<8x8xf32>, vector<8x8xf32>, vector<8x8xf32> -> vector<8x8xf32>
    %122 = vector.extract_strided_slice %89 {offsets = [0, 16], sizes = [8, 8], strides = [1, 1]} : vector<8x96xf32> to vector<8x8xf32>
    %123 = vector.extract_strided_slice %89 {offsets = [0, 48], sizes = [8, 8], strides = [1, 1]} : vector<8x96xf32> to vector<8x8xf32>
    %124 = vector.extract_strided_slice %89 {offsets = [0, 80], sizes = [8, 8], strides = [1, 1]} : vector<8x96xf32> to vector<8x8xf32>
    "tpu.trace_start"() <{level = 10 : i32, message = "qe,ke->qk"}> : () -> ()
    %cst_46 = arith.constant dense<0.000000e+00> : vector<8x8xf32>
    %125 = tpu.matmul %122, %123, %cst_46 {dimension_numbers = #tpu.dot_dimension_numbers<[1], [1], [0], [0], [0, 0, 1, 0], [], []>} : vector<8x8xf32>, vector<8x8xf32>, vector<8x8xf32> -> vector<8x8xf32>
    "tpu.trace_stop"() : () -> ()
    %cst_47 = arith.constant 0.353553385 : f32
    %126 = vector.broadcast %cst_47 : f32 to vector<8x8xf32>
    %127 = arith.mulf %125, %126 : vector<8x8xf32>
    %cst_48 = arith.constant dense<0xFF800000> : vector<8xf32>
    %128 = vector.multi_reduction <maximumf>, %127, %cst_48 [1] : vector<8x8xf32> to vector<8xf32>
    %129 = vector.shape_cast %128 : vector<8xf32> to vector<8x1xf32>
    %130 = vector.broadcast %129 : vector<8x1xf32> to vector<8x8xf32>
    %131 = arith.subf %127, %130 : vector<8x8xf32>
    %132 = math.exp %131 : vector<8x8xf32>
    %cst_49 = arith.constant dense<0.000000e+00> : vector<8xf32>
    %133 = vector.multi_reduction <add>, %132, %cst_49 [1] : vector<8x8xf32> to vector<8xf32>
    %134 = vector.shape_cast %133 : vector<8xf32> to vector<8x1xf32>
    %135 = vector.broadcast %134 : vector<8x1xf32> to vector<8x8xf32>
    %136 = arith.divf %132, %135 : vector<8x8xf32>
    %cst_50 = arith.constant dense<0.000000e+00> : vector<8x8xf32>
    %137 = tpu.matmul %136, %124, %cst_50 {dimension_numbers = #tpu.dot_dimension_numbers<[1], [0], [0], [1], [0, 0, 1, 1], [], []>} : vector<8x8xf32>, vector<8x8xf32>, vector<8x8xf32> -> vector<8x8xf32>
    %138 = vector.extract_strided_slice %89 {offsets = [0, 24], sizes = [8, 8], strides = [1, 1]} : vector<8x96xf32> to vector<8x8xf32>
    %139 = vector.extract_strided_slice %89 {offsets = [0, 56], sizes = [8, 8], strides = [1, 1]} : vector<8x96xf32> to vector<8x8xf32>
    %140 = vector.extract_strided_slice %89 {offsets = [0, 88], sizes = [8, 8], strides = [1, 1]} : vector<8x96xf32> to vector<8x8xf32>
    "tpu.trace_start"() <{level = 10 : i32, message = "qe,ke->qk"}> : () -> ()
    %cst_51 = arith.constant dense<0.000000e+00> : vector<8x8xf32>
    %141 = tpu.matmul %138, %139, %cst_51 {dimension_numbers = #tpu.dot_dimension_numbers<[1], [1], [0], [0], [0, 0, 1, 0], [], []>} : vector<8x8xf32>, vector<8x8xf32>, vector<8x8xf32> -> vector<8x8xf32>
    "tpu.trace_stop"() : () -> ()
    %cst_52 = arith.constant 0.353553385 : f32
    %142 = vector.broadcast %cst_52 : f32 to vector<8x8xf32>
    %143 = arith.mulf %141, %142 : vector<8x8xf32>
    %cst_53 = arith.constant dense<0xFF800000> : vector<8xf32>
    %144 = vector.multi_reduction <maximumf>, %143, %cst_53 [1] : vector<8x8xf32> to vector<8xf32>
    %145 = vector.shape_cast %144 : vector<8xf32> to vector<8x1xf32>
    %146 = vector.broadcast %145 : vector<8x1xf32> to vector<8x8xf32>
    %147 = arith.subf %143, %146 : vector<8x8xf32>
    %148 = math.exp %147 : vector<8x8xf32>
    %cst_54 = arith.constant dense<0.000000e+00> : vector<8xf32>
    %149 = vector.multi_reduction <add>, %148, %cst_54 [1] : vector<8x8xf32> to vector<8xf32>
    %150 = vector.shape_cast %149 : vector<8xf32> to vector<8x1xf32>
    %151 = vector.broadcast %150 : vector<8x1xf32> to vector<8x8xf32>
    %152 = arith.divf %148, %151 : vector<8x8xf32>
    %cst_55 = arith.constant dense<0.000000e+00> : vector<8x8xf32>
    %153 = tpu.matmul %152, %140, %cst_55 {dimension_numbers = #tpu.dot_dimension_numbers<[1], [0], [0], [1], [0, 0, 1, 1], [], []>} : vector<8x8xf32>, vector<8x8xf32>, vector<8x8xf32> -> vector<8x8xf32>
    %154 = tpu.concatenate %105, %121, %137, %153 in 1 : vector<8x8xf32>, vector<8x8xf32>, vector<8x8xf32>, vector<8x8xf32> -> vector<8x32xf32>
    %155 = tpu.concatenate %88, %154 in 0 : vector<8x32xf32>, vector<8x32xf32> -> vector<16x32xf32>
    %156 = arith.truncf %155 : vector<16x32xf32> to vector<16x32xbf16>
    %cst_56 = arith.constant dense<0.000000e+00> : vector<16x32xf32>
    %157 = tpu.matmul %156, %4, %cst_56 {dimension_numbers = #tpu.dot_dimension_numbers<[1], [0], [0], [1], [0, 0, 1, 1], [], []>} : vector<16x32xbf16>, vector<32x32xbf16>, vector<16x32xf32> -> vector<16x32xf32>
    %158 = vector.broadcast %12 : vector<1x32xf32> to vector<16x32xf32>
    %159 = arith.addf %157, %158 : vector<16x32xf32>
    %160 = arith.addf %0, %159 : vector<16x32xf32>
    %cst_57 = arith.constant dense<0.000000e+00> : vector<16xf32>
    %161 = vector.multi_reduction <add>, %160, %cst_57 [1] : vector<16x32xf32> to vector<16xf32>
    %162 = vector.shape_cast %161 : vector<16xf32> to vector<16x1xf32>
    %cst_58 = arith.constant 3.200000e+01 : f32
    %163 = vector.broadcast %cst_58 : f32 to vector<16x1xf32>
    %164 = arith.divf %162, %163 : vector<16x1xf32>
    %165 = vector.broadcast %164 : vector<16x1xf32> to vector<16x32xf32>
    %166 = arith.subf %160, %165 : vector<16x32xf32>
    %167 = arith.mulf %166, %166 : vector<16x32xf32>
    %cst_59 = arith.constant dense<0.000000e+00> : vector<16xf32>
    %168 = vector.multi_reduction <add>, %167, %cst_59 [1] : vector<16x32xf32> to vector<16xf32>
    %169 = vector.shape_cast %168 : vector<16xf32> to vector<16x1xf32>
    %cst_60 = arith.constant 3.200000e+01 : f32
    %170 = vector.broadcast %cst_60 : f32 to vector<16x1xf32>
    %171 = arith.divf %169, %170 : vector<16x1xf32>
    %172 = vector.broadcast %164 : vector<16x1xf32> to vector<16x32xf32>
    %173 = arith.subf %160, %172 : vector<16x32xf32>
    %cst_61 = arith.constant 9.99999974E-6 : f32
    %174 = vector.broadcast %cst_61 : f32 to vector<16x1xf32>
    %175 = arith.addf %171, %174 : vector<16x1xf32>
    %176 = math.rsqrt %175 : vector<16x1xf32>
    %177 = vector.broadcast %176 : vector<16x1xf32> to vector<16x32xf32>
    %178 = arith.mulf %173, %177 : vector<16x32xf32>
    %179 = vector.broadcast %15 : vector<1x32xf32> to vector<16x32xf32>
    %180 = arith.mulf %178, %179 : vector<16x32xf32>
    %181 = vector.broadcast %16 : vector<1x32xf32> to vector<16x32xf32>
    %182 = arith.addf %180, %181 : vector<16x32xf32>
    %183 = arith.truncf %182 : vector<16x32xf32> to vector<16x32xbf16>
    %cst_62 = arith.constant dense<0.000000e+00> : vector<16x64xf32>
    %184 = tpu.matmul %183, %6, %cst_62 {dimension_numbers = #tpu.dot_dimension_numbers<[1], [0], [0], [1], [0, 0, 1, 1], [], []>} : vector<16x32xbf16>, vector<32x64xbf16>, vector<16x64xf32> -> vector<16x64xf32>
    %185 = vector.broadcast %13 : vector<1x64xf32> to vector<16x64xf32>
    %186 = arith.addf %184, %185 : vector<16x64xf32>
    %cst_63 = arith.constant 0.000000e+00 : f32
    %187 = vector.broadcast %cst_63 : f32 to vector<16x64xf32>
    %188 = arith.maximumf %186, %187 : vector<16x64xf32>
    %189 = arith.truncf %188 : vector<16x64xf32> to vector<16x64xbf16>
    %cst_64 = arith.constant dense<0.000000e+00> : vector<16x32xf32>
    %190 = tpu.matmul %189, %8, %cst_64 {dimension_numbers = #tpu.dot_dimension_numbers<[1], [0], [0], [1], [0, 0, 1, 1], [], []>} : vector<16x64xbf16>, vector<64x32xbf16>, vector<16x32xf32> -> vector<16x32xf32>
    %191 = vector.broadcast %14 : vector<1x32xf32> to vector<16x32xf32>
    %192 = arith.addf %190, %191 : vector<16x32xf32>
    %193 = arith.addf %182, %192 : vector<16x32xf32>
    %cst_65 = arith.constant dense<0.000000e+00> : vector<16xf32>
    %194 = vector.multi_reduction <add>, %193, %cst_65 [1] : vector<16x32xf32> to vector<16xf32>
    %195 = vector.shape_cast %194 : vector<16xf32> to vector<16x1xf32>
    %cst_66 = arith.constant 3.200000e+01 : f32
    %196 = vector.broadcast %cst_66 : f32 to vector<16x1xf32>
    %197 = arith.divf %195, %196 : vector<16x1xf32>
    %198 = vector.broadcast %197 : vector<16x1xf32> to vector<16x32xf32>
    %199 = arith.subf %193, %198 : vector<16x32xf32>
    %200 = arith.mulf %199, %199 : vector<16x32xf32>
    %cst_67 = arith.constant dense<0.000000e+00> : vector<16xf32>
    %201 = vector.multi_reduction <add>, %200, %cst_67 [1] : vector<16x32xf32> to vector<16xf32>
    %202 = vector.shape_cast %201 : vector<16xf32> to vector<16x1xf32>
    %cst_68 = arith.constant 3.200000e+01 : f32
    %203 = vector.broadcast %cst_68 : f32 to vector<16x1xf32>
    %204 = arith.divf %202, %203 : vector<16x1xf32>
    %205 = vector.broadcast %197 : vector<16x1xf32> to vector<16x32xf32>
    %206 = arith.subf %193, %205 : vector<16x32xf32>
    %cst_69 = arith.constant 9.99999974E-6 : f32
    %207 = vector.broadcast %cst_69 : f32 to vector<16x1xf32>
    %208 = arith.addf %204, %207 : vector<16x1xf32>
    %209 = math.rsqrt %208 : vector<16x1xf32>
    %210 = vector.broadcast %209 : vector<16x1xf32> to vector<16x32xf32>
    %211 = arith.mulf %206, %210 : vector<16x32xf32>
    %212 = vector.broadcast %17 : vector<1x32xf32> to vector<16x32xf32>
    %213 = arith.mulf %211, %212 : vector<16x32xf32>
    %214 = vector.broadcast %18 : vector<1x32xf32> to vector<16x32xf32>
    %215 = arith.addf %213, %214 : vector<16x32xf32>
    %c1 = arith.constant 1 : index
    %c0_70 = arith.constant 0 : index
    %c0_71 = arith.constant 0 : index
    %216 = vector.load %arg2[%c1, %c0_70, %c0_71] : memref<2x32x96xbf16, #tpu.memory_space<vmem>>, vector<1x32x96xbf16>
    %217 = vector.shape_cast %216 : vector<1x32x96xbf16> to vector<32x96xbf16>
    %c1_72 = arith.constant 1 : index
    %c0_73 = arith.constant 0 : index
    %c0_74 = arith.constant 0 : index
    %218 = vector.load %arg3[%c1_72, %c0_73, %c0_74] : memref<2x32x32xbf16, #tpu.memory_space<vmem>>, vector<1x32x32xbf16>
    %219 = vector.shape_cast %218 : vector<1x32x32xbf16> to vector<32x32xbf16>
    %c1_75 = arith.constant 1 : index
    %c0_76 = arith.constant 0 : index
    %c0_77 = arith.constant 0 : index
    %220 = vector.load %arg4[%c1_75, %c0_76, %c0_77] : memref<2x32x64xbf16, #tpu.memory_space<vmem>>, vector<1x32x64xbf16>
    %221 = vector.shape_cast %220 : vector<1x32x64xbf16> to vector<32x64xbf16>
    %c1_78 = arith.constant 1 : index
    %c0_79 = arith.constant 0 : index
    %c0_80 = arith.constant 0 : index
    %222 = vector.load %arg5[%c1_78, %c0_79, %c0_80] : memref<2x64x32xbf16, #tpu.memory_space<vmem>>, vector<1x64x32xbf16>
    %223 = vector.shape_cast %222 : vector<1x64x32xbf16> to vector<64x32xbf16>
    %c1_81 = arith.constant 1 : index
    %c0_82 = arith.constant 0 : index
    %c0_83 = arith.constant 0 : index
    %224 = vector.load %arg6[%c1_81, %c0_82, %c0_83] : memref<2x8x96xf32, #tpu.memory_space<vmem>>, vector<1x8x96xf32>
    %225 = vector.shape_cast %224 : vector<1x8x96xf32> to vector<8x96xf32>
    %226 = vector.extract_strided_slice %225 {offsets = [0, 0], sizes = [1, 96], strides = [1, 1]} : vector<8x96xf32> to vector<1x96xf32>
    %227 = vector.extract_strided_slice %225 {offsets = [1, 0], sizes = [1, 32], strides = [1, 1]} : vector<8x96xf32> to vector<1x32xf32>
    %228 = vector.extract_strided_slice %225 {offsets = [2, 0], sizes = [1, 64], strides = [1, 1]} : vector<8x96xf32> to vector<1x64xf32>
    %229 = vector.extract_strided_slice %225 {offsets = [3, 0], sizes = [1, 32], strides = [1, 1]} : vector<8x96xf32> to vector<1x32xf32>
    %230 = vector.extract_strided_slice %225 {offsets = [4, 0], sizes = [1, 32], strides = [1, 1]} : vector<8x96xf32> to vector<1x32xf32>
    %231 = vector.extract_strided_slice %225 {offsets = [5, 0], sizes = [1, 32], strides = [1, 1]} : vector<8x96xf32> to vector<1x32xf32>
    %232 = vector.extract_strided_slice %225 {offsets = [6, 0], sizes = [1, 32], strides = [1, 1]} : vector<8x96xf32> to vector<1x32xf32>
    %233 = vector.extract_strided_slice %225 {offsets = [7, 0], sizes = [1, 32], strides = [1, 1]} : vector<8x96xf32> to vector<1x32xf32>
    %234 = arith.truncf %215 : vector<16x32xf32> to vector<16x32xbf16>
    %cst_84 = arith.constant dense<0.000000e+00> : vector<16x96xf32>
    %235 = tpu.matmul %234, %217, %cst_84 {dimension_numbers = #tpu.dot_dimension_numbers<[1], [0], [0], [1], [0, 0, 1, 1], [], []>} : vector<16x32xbf16>, vector<32x96xbf16>, vector<16x96xf32> -> vector<16x96xf32>
    %236 = vector.broadcast %226 : vector<1x96xf32> to vector<16x96xf32>
    %237 = arith.addf %235, %236 : vector<16x96xf32>
    %238 = vector.extract_strided_slice %237 {offsets = [0, 0], sizes = [8, 96], strides = [1, 1]} : vector<16x96xf32> to vector<8x96xf32>
    %239 = vector.extract_strided_slice %238 {offsets = [0, 0], sizes = [8, 8], strides = [1, 1]} : vector<8x96xf32> to vector<8x8xf32>
    %240 = vector.extract_strided_slice %238 {offsets = [0, 32], sizes = [8, 8], strides = [1, 1]} : vector<8x96xf32> to vector<8x8xf32>
    %241 = vector.extract_strided_slice %238 {offsets = [0, 64], sizes = [8, 8], strides = [1, 1]} : vector<8x96xf32> to vector<8x8xf32>
    "tpu.trace_start"() <{level = 10 : i32, message = "qe,ke->qk"}> : () -> ()
    %cst_85 = arith.constant dense<0.000000e+00> : vector<8x8xf32>
    %242 = tpu.matmul %239, %240, %cst_85 {dimension_numbers = #tpu.dot_dimension_numbers<[1], [1], [0], [0], [0, 0, 1, 0], [], []>} : vector<8x8xf32>, vector<8x8xf32>, vector<8x8xf32> -> vector<8x8xf32>
    "tpu.trace_stop"() : () -> ()
    %cst_86 = arith.constant 0.353553385 : f32
    %243 = vector.broadcast %cst_86 : f32 to vector<8x8xf32>
    %244 = arith.mulf %242, %243 : vector<8x8xf32>
    %cst_87 = arith.constant dense<0xFF800000> : vector<8xf32>
    %245 = vector.multi_reduction <maximumf>, %244, %cst_87 [1] : vector<8x8xf32> to vector<8xf32>
    %246 = vector.shape_cast %245 : vector<8xf32> to vector<8x1xf32>
    %247 = vector.broadcast %246 : vector<8x1xf32> to vector<8x8xf32>
    %248 = arith.subf %244, %247 : vector<8x8xf32>
    %249 = math.exp %248 : vector<8x8xf32>
    %cst_88 = arith.constant dense<0.000000e+00> : vector<8xf32>
    %250 = vector.multi_reduction <add>, %249, %cst_88 [1] : vector<8x8xf32> to vector<8xf32>
    %251 = vector.shape_cast %250 : vector<8xf32> to vector<8x1xf32>
    %252 = vector.broadcast %251 : vector<8x1xf32> to vector<8x8xf32>
    %253 = arith.divf %249, %252 : vector<8x8xf32>
    %cst_89 = arith.constant dense<0.000000e+00> : vector<8x8xf32>
    %254 = tpu.matmul %253, %241, %cst_89 {dimension_numbers = #tpu.dot_dimension_numbers<[1], [0], [0], [1], [0, 0, 1, 1], [], []>} : vector<8x8xf32>, vector<8x8xf32>, vector<8x8xf32> -> vector<8x8xf32>
    %255 = vector.extract_strided_slice %238 {offsets = [0, 8], sizes = [8, 8], strides = [1, 1]} : vector<8x96xf32> to vector<8x8xf32>
    %256 = vector.extract_strided_slice %238 {offsets = [0, 40], sizes = [8, 8], strides = [1, 1]} : vector<8x96xf32> to vector<8x8xf32>
    %257 = vector.extract_strided_slice %238 {offsets = [0, 72], sizes = [8, 8], strides = [1, 1]} : vector<8x96xf32> to vector<8x8xf32>
    "tpu.trace_start"() <{level = 10 : i32, message = "qe,ke->qk"}> : () -> ()
    %cst_90 = arith.constant dense<0.000000e+00> : vector<8x8xf32>
    %258 = tpu.matmul %255, %256, %cst_90 {dimension_numbers = #tpu.dot_dimension_numbers<[1], [1], [0], [0], [0, 0, 1, 0], [], []>} : vector<8x8xf32>, vector<8x8xf32>, vector<8x8xf32> -> vector<8x8xf32>
    "tpu.trace_stop"() : () -> ()
    %cst_91 = arith.constant 0.353553385 : f32
    %259 = vector.broadcast %cst_91 : f32 to vector<8x8xf32>
    %260 = arith.mulf %258, %259 : vector<8x8xf32>
    %cst_92 = arith.constant dense<0xFF800000> : vector<8xf32>
    %261 = vector.multi_reduction <maximumf>, %260, %cst_92 [1] : vector<8x8xf32> to vector<8xf32>
    %262 = vector.shape_cast %261 : vector<8xf32> to vector<8x1xf32>
    %263 = vector.broadcast %262 : vector<8x1xf32> to vector<8x8xf32>
    %264 = arith.subf %260, %263 : vector<8x8xf32>
    %265 = math.exp %264 : vector<8x8xf32>
    %cst_93 = arith.constant dense<0.000000e+00> : vector<8xf32>
    %266 = vector.multi_reduction <add>, %265, %cst_93 [1] : vector<8x8xf32> to vector<8xf32>
    %267 = vector.shape_cast %266 : vector<8xf32> to vector<8x1xf32>
    %268 = vector.broadcast %267 : vector<8x1xf32> to vector<8x8xf32>
    %269 = arith.divf %265, %268 : vector<8x8xf32>
    %cst_94 = arith.constant dense<0.000000e+00> : vector<8x8xf32>
    %270 = tpu.matmul %269, %257, %cst_94 {dimension_numbers = #tpu.dot_dimension_numbers<[1], [0], [0], [1], [0, 0, 1, 1], [], []>} : vector<8x8xf32>, vector<8x8xf32>, vector<8x8xf32> -> vector<8x8xf32>
    %271 = vector.extract_strided_slice %238 {offsets = [0, 16], sizes = [8, 8], strides = [1, 1]} : vector<8x96xf32> to vector<8x8xf32>
    %272 = vector.extract_strided_slice %238 {offsets = [0, 48], sizes = [8, 8], strides = [1, 1]} : vector<8x96xf32> to vector<8x8xf32>
    %273 = vector.extract_strided_slice %238 {offsets = [0, 80], sizes = [8, 8], strides = [1, 1]} : vector<8x96xf32> to vector<8x8xf32>
    "tpu.trace_start"() <{level = 10 : i32, message = "qe,ke->qk"}> : () -> ()
    %cst_95 = arith.constant dense<0.000000e+00> : vector<8x8xf32>
    %274 = tpu.matmul %271, %272, %cst_95 {dimension_numbers = #tpu.dot_dimension_numbers<[1], [1], [0], [0], [0, 0, 1, 0], [], []>} : vector<8x8xf32>, vector<8x8xf32>, vector<8x8xf32> -> vector<8x8xf32>
    "tpu.trace_stop"() : () -> ()
    %cst_96 = arith.constant 0.353553385 : f32
    %275 = vector.broadcast %cst_96 : f32 to vector<8x8xf32>
    %276 = arith.mulf %274, %275 : vector<8x8xf32>
    %cst_97 = arith.constant dense<0xFF800000> : vector<8xf32>
    %277 = vector.multi_reduction <maximumf>, %276, %cst_97 [1] : vector<8x8xf32> to vector<8xf32>
    %278 = vector.shape_cast %277 : vector<8xf32> to vector<8x1xf32>
    %279 = vector.broadcast %278 : vector<8x1xf32> to vector<8x8xf32>
    %280 = arith.subf %276, %279 : vector<8x8xf32>
    %281 = math.exp %280 : vector<8x8xf32>
    %cst_98 = arith.constant dense<0.000000e+00> : vector<8xf32>
    %282 = vector.multi_reduction <add>, %281, %cst_98 [1] : vector<8x8xf32> to vector<8xf32>
    %283 = vector.shape_cast %282 : vector<8xf32> to vector<8x1xf32>
    %284 = vector.broadcast %283 : vector<8x1xf32> to vector<8x8xf32>
    %285 = arith.divf %281, %284 : vector<8x8xf32>
    %cst_99 = arith.constant dense<0.000000e+00> : vector<8x8xf32>
    %286 = tpu.matmul %285, %273, %cst_99 {dimension_numbers = #tpu.dot_dimension_numbers<[1], [0], [0], [1], [0, 0, 1, 1], [], []>} : vector<8x8xf32>, vector<8x8xf32>, vector<8x8xf32> -> vector<8x8xf32>
    %287 = vector.extract_strided_slice %238 {offsets = [0, 24], sizes = [8, 8], strides = [1, 1]} : vector<8x96xf32> to vector<8x8xf32>
    %288 = vector.extract_strided_slice %238 {offsets = [0, 56], sizes = [8, 8], strides = [1, 1]} : vector<8x96xf32> to vector<8x8xf32>
    %289 = vector.extract_strided_slice %238 {offsets = [0, 88], sizes = [8, 8], strides = [1, 1]} : vector<8x96xf32> to vector<8x8xf32>
    "tpu.trace_start"() <{level = 10 : i32, message = "qe,ke->qk"}> : () -> ()
    %cst_100 = arith.constant dense<0.000000e+00> : vector<8x8xf32>
    %290 = tpu.matmul %287, %288, %cst_100 {dimension_numbers = #tpu.dot_dimension_numbers<[1], [1], [0], [0], [0, 0, 1, 0], [], []>} : vector<8x8xf32>, vector<8x8xf32>, vector<8x8xf32> -> vector<8x8xf32>
    "tpu.trace_stop"() : () -> ()
    %cst_101 = arith.constant 0.353553385 : f32
    %291 = vector.broadcast %cst_101 : f32 to vector<8x8xf32>
    %292 = arith.mulf %290, %291 : vector<8x8xf32>
    %cst_102 = arith.constant dense<0xFF800000> : vector<8xf32>
    %293 = vector.multi_reduction <maximumf>, %292, %cst_102 [1] : vector<8x8xf32> to vector<8xf32>
    %294 = vector.shape_cast %293 : vector<8xf32> to vector<8x1xf32>
    %295 = vector.broadcast %294 : vector<8x1xf32> to vector<8x8xf32>
    %296 = arith.subf %292, %295 : vector<8x8xf32>
    %297 = math.exp %296 : vector<8x8xf32>
    %cst_103 = arith.constant dense<0.000000e+00> : vector<8xf32>
    %298 = vector.multi_reduction <add>, %297, %cst_103 [1] : vector<8x8xf32> to vector<8xf32>
    %299 = vector.shape_cast %298 : vector<8xf32> to vector<8x1xf32>
    %300 = vector.broadcast %299 : vector<8x1xf32> to vector<8x8xf32>
    %301 = arith.divf %297, %300 : vector<8x8xf32>
    %cst_104 = arith.constant dense<0.000000e+00> : vector<8x8xf32>
    %302 = tpu.matmul %301, %289, %cst_104 {dimension_numbers = #tpu.dot_dimension_numbers<[1], [0], [0], [1], [0, 0, 1, 1], [], []>} : vector<8x8xf32>, vector<8x8xf32>, vector<8x8xf32> -> vector<8x8xf32>
    %303 = tpu.concatenate %254, %270, %286, %302 in 1 : vector<8x8xf32>, vector<8x8xf32>, vector<8x8xf32>, vector<8x8xf32> -> vector<8x32xf32>
    %304 = vector.extract_strided_slice %237 {offsets = [8, 0], sizes = [8, 96], strides = [1, 1]} : vector<16x96xf32> to vector<8x96xf32>
    %305 = vector.extract_strided_slice %304 {offsets = [0, 0], sizes = [8, 8], strides = [1, 1]} : vector<8x96xf32> to vector<8x8xf32>
    %306 = vector.extract_strided_slice %304 {offsets = [0, 32], sizes = [8, 8], strides = [1, 1]} : vector<8x96xf32> to vector<8x8xf32>
    %307 = vector.extract_strided_slice %304 {offsets = [0, 64], sizes = [8, 8], strides = [1, 1]} : vector<8x96xf32> to vector<8x8xf32>
    "tpu.trace_start"() <{level = 10 : i32, message = "qe,ke->qk"}> : () -> ()
    %cst_105 = arith.constant dense<0.000000e+00> : vector<8x8xf32>
    %308 = tpu.matmul %305, %306, %cst_105 {dimension_numbers = #tpu.dot_dimension_numbers<[1], [1], [0], [0], [0, 0, 1, 0], [], []>} : vector<8x8xf32>, vector<8x8xf32>, vector<8x8xf32> -> vector<8x8xf32>
    "tpu.trace_stop"() : () -> ()
    %cst_106 = arith.constant 0.353553385 : f32
    %309 = vector.broadcast %cst_106 : f32 to vector<8x8xf32>
    %310 = arith.mulf %308, %309 : vector<8x8xf32>
    %cst_107 = arith.constant dense<0xFF800000> : vector<8xf32>
    %311 = vector.multi_reduction <maximumf>, %310, %cst_107 [1] : vector<8x8xf32> to vector<8xf32>
    %312 = vector.shape_cast %311 : vector<8xf32> to vector<8x1xf32>
    %313 = vector.broadcast %312 : vector<8x1xf32> to vector<8x8xf32>
    %314 = arith.subf %310, %313 : vector<8x8xf32>
    %315 = math.exp %314 : vector<8x8xf32>
    %cst_108 = arith.constant dense<0.000000e+00> : vector<8xf32>
    %316 = vector.multi_reduction <add>, %315, %cst_108 [1] : vector<8x8xf32> to vector<8xf32>
    %317 = vector.shape_cast %316 : vector<8xf32> to vector<8x1xf32>
    %318 = vector.broadcast %317 : vector<8x1xf32> to vector<8x8xf32>
    %319 = arith.divf %315, %318 : vector<8x8xf32>
    %cst_109 = arith.constant dense<0.000000e+00> : vector<8x8xf32>
    %320 = tpu.matmul %319, %307, %cst_109 {dimension_numbers = #tpu.dot_dimension_numbers<[1], [0], [0], [1], [0, 0, 1, 1], [], []>} : vector<8x8xf32>, vector<8x8xf32>, vector<8x8xf32> -> vector<8x8xf32>
    %321 = vector.extract_strided_slice %304 {offsets = [0, 8], sizes = [8, 8], strides = [1, 1]} : vector<8x96xf32> to vector<8x8xf32>
    %322 = vector.extract_strided_slice %304 {offsets = [0, 40], sizes = [8, 8], strides = [1, 1]} : vector<8x96xf32> to vector<8x8xf32>
    %323 = vector.extract_strided_slice %304 {offsets = [0, 72], sizes = [8, 8], strides = [1, 1]} : vector<8x96xf32> to vector<8x8xf32>
    "tpu.trace_start"() <{level = 10 : i32, message = "qe,ke->qk"}> : () -> ()
    %cst_110 = arith.constant dense<0.000000e+00> : vector<8x8xf32>
    %324 = tpu.matmul %321, %322, %cst_110 {dimension_numbers = #tpu.dot_dimension_numbers<[1], [1], [0], [0], [0, 0, 1, 0], [], []>} : vector<8x8xf32>, vector<8x8xf32>, vector<8x8xf32> -> vector<8x8xf32>
    "tpu.trace_stop"() : () -> ()
    %cst_111 = arith.constant 0.353553385 : f32
    %325 = vector.broadcast %cst_111 : f32 to vector<8x8xf32>
    %326 = arith.mulf %324, %325 : vector<8x8xf32>
    %cst_112 = arith.constant dense<0xFF800000> : vector<8xf32>
    %327 = vector.multi_reduction <maximumf>, %326, %cst_112 [1] : vector<8x8xf32> to vector<8xf32>
    %328 = vector.shape_cast %327 : vector<8xf32> to vector<8x1xf32>
    %329 = vector.broadcast %328 : vector<8x1xf32> to vector<8x8xf32>
    %330 = arith.subf %326, %329 : vector<8x8xf32>
    %331 = math.exp %330 : vector<8x8xf32>
    %cst_113 = arith.constant dense<0.000000e+00> : vector<8xf32>
    %332 = vector.multi_reduction <add>, %331, %cst_113 [1] : vector<8x8xf32> to vector<8xf32>
    %333 = vector.shape_cast %332 : vector<8xf32> to vector<8x1xf32>
    %334 = vector.broadcast %333 : vector<8x1xf32> to vector<8x8xf32>
    %335 = arith.divf %331, %334 : vector<8x8xf32>
    %cst_114 = arith.constant dense<0.000000e+00> : vector<8x8xf32>
    %336 = tpu.matmul %335, %323, %cst_114 {dimension_numbers = #tpu.dot_dimension_numbers<[1], [0], [0], [1], [0, 0, 1, 1], [], []>} : vector<8x8xf32>, vector<8x8xf32>, vector<8x8xf32> -> vector<8x8xf32>
    %337 = vector.extract_strided_slice %304 {offsets = [0, 16], sizes = [8, 8], strides = [1, 1]} : vector<8x96xf32> to vector<8x8xf32>
    %338 = vector.extract_strided_slice %304 {offsets = [0, 48], sizes = [8, 8], strides = [1, 1]} : vector<8x96xf32> to vector<8x8xf32>
    %339 = vector.extract_strided_slice %304 {offsets = [0, 80], sizes = [8, 8], strides = [1, 1]} : vector<8x96xf32> to vector<8x8xf32>
    "tpu.trace_start"() <{level = 10 : i32, message = "qe,ke->qk"}> : () -> ()
    %cst_115 = arith.constant dense<0.000000e+00> : vector<8x8xf32>
    %340 = tpu.matmul %337, %338, %cst_115 {dimension_numbers = #tpu.dot_dimension_numbers<[1], [1], [0], [0], [0, 0, 1, 0], [], []>} : vector<8x8xf32>, vector<8x8xf32>, vector<8x8xf32> -> vector<8x8xf32>
    "tpu.trace_stop"() : () -> ()
    %cst_116 = arith.constant 0.353553385 : f32
    %341 = vector.broadcast %cst_116 : f32 to vector<8x8xf32>
    %342 = arith.mulf %340, %341 : vector<8x8xf32>
    %cst_117 = arith.constant dense<0xFF800000> : vector<8xf32>
    %343 = vector.multi_reduction <maximumf>, %342, %cst_117 [1] : vector<8x8xf32> to vector<8xf32>
    %344 = vector.shape_cast %343 : vector<8xf32> to vector<8x1xf32>
    %345 = vector.broadcast %344 : vector<8x1xf32> to vector<8x8xf32>
    %346 = arith.subf %342, %345 : vector<8x8xf32>
    %347 = math.exp %346 : vector<8x8xf32>
    %cst_118 = arith.constant dense<0.000000e+00> : vector<8xf32>
    %348 = vector.multi_reduction <add>, %347, %cst_118 [1] : vector<8x8xf32> to vector<8xf32>
    %349 = vector.shape_cast %348 : vector<8xf32> to vector<8x1xf32>
    %350 = vector.broadcast %349 : vector<8x1xf32> to vector<8x8xf32>
    %351 = arith.divf %347, %350 : vector<8x8xf32>
    %cst_119 = arith.constant dense<0.000000e+00> : vector<8x8xf32>
    %352 = tpu.matmul %351, %339, %cst_119 {dimension_numbers = #tpu.dot_dimension_numbers<[1], [0], [0], [1], [0, 0, 1, 1], [], []>} : vector<8x8xf32>, vector<8x8xf32>, vector<8x8xf32> -> vector<8x8xf32>
    %353 = vector.extract_strided_slice %304 {offsets = [0, 24], sizes = [8, 8], strides = [1, 1]} : vector<8x96xf32> to vector<8x8xf32>
    %354 = vector.extract_strided_slice %304 {offsets = [0, 56], sizes = [8, 8], strides = [1, 1]} : vector<8x96xf32> to vector<8x8xf32>
    %355 = vector.extract_strided_slice %304 {offsets = [0, 88], sizes = [8, 8], strides = [1, 1]} : vector<8x96xf32> to vector<8x8xf32>
    "tpu.trace_start"() <{level = 10 : i32, message = "qe,ke->qk"}> : () -> ()
    %cst_120 = arith.constant dense<0.000000e+00> : vector<8x8xf32>
    %356 = tpu.matmul %353, %354, %cst_120 {dimension_numbers = #tpu.dot_dimension_numbers<[1], [1], [0], [0], [0, 0, 1, 0], [], []>} : vector<8x8xf32>, vector<8x8xf32>, vector<8x8xf32> -> vector<8x8xf32>
    "tpu.trace_stop"() : () -> ()
    %cst_121 = arith.constant 0.353553385 : f32
    %357 = vector.broadcast %cst_121 : f32 to vector<8x8xf32>
    %358 = arith.mulf %356, %357 : vector<8x8xf32>
    %cst_122 = arith.constant dense<0xFF800000> : vector<8xf32>
    %359 = vector.multi_reduction <maximumf>, %358, %cst_122 [1] : vector<8x8xf32> to vector<8xf32>
    %360 = vector.shape_cast %359 : vector<8xf32> to vector<8x1xf32>
    %361 = vector.broadcast %360 : vector<8x1xf32> to vector<8x8xf32>
    %362 = arith.subf %358, %361 : vector<8x8xf32>
    %363 = math.exp %362 : vector<8x8xf32>
    %cst_123 = arith.constant dense<0.000000e+00> : vector<8xf32>
    %364 = vector.multi_reduction <add>, %363, %cst_123 [1] : vector<8x8xf32> to vector<8xf32>
    %365 = vector.shape_cast %364 : vector<8xf32> to vector<8x1xf32>
    %366 = vector.broadcast %365 : vector<8x1xf32> to vector<8x8xf32>
    %367 = arith.divf %363, %366 : vector<8x8xf32>
    %cst_124 = arith.constant dense<0.000000e+00> : vector<8x8xf32>
    %368 = tpu.matmul %367, %355, %cst_124 {dimension_numbers = #tpu.dot_dimension_numbers<[1], [0], [0], [1], [0, 0, 1, 1], [], []>} : vector<8x8xf32>, vector<8x8xf32>, vector<8x8xf32> -> vector<8x8xf32>
    %369 = tpu.concatenate %320, %336, %352, %368 in 1 : vector<8x8xf32>, vector<8x8xf32>, vector<8x8xf32>, vector<8x8xf32> -> vector<8x32xf32>
    %370 = tpu.concatenate %303, %369 in 0 : vector<8x32xf32>, vector<8x32xf32> -> vector<16x32xf32>
    %371 = arith.truncf %370 : vector<16x32xf32> to vector<16x32xbf16>
    %cst_125 = arith.constant dense<0.000000e+00> : vector<16x32xf32>
    %372 = tpu.matmul %371, %219, %cst_125 {dimension_numbers = #tpu.dot_dimension_numbers<[1], [0], [0], [1], [0, 0, 1, 1], [], []>} : vector<16x32xbf16>, vector<32x32xbf16>, vector<16x32xf32> -> vector<16x32xf32>
    %373 = vector.broadcast %227 : vector<1x32xf32> to vector<16x32xf32>
    %374 = arith.addf %372, %373 : vector<16x32xf32>
    %375 = arith.addf %215, %374 : vector<16x32xf32>
    %cst_126 = arith.constant dense<0.000000e+00> : vector<16xf32>
    %376 = vector.multi_reduction <add>, %375, %cst_126 [1] : vector<16x32xf32> to vector<16xf32>
    %377 = vector.shape_cast %376 : vector<16xf32> to vector<16x1xf32>
    %cst_127 = arith.constant 3.200000e+01 : f32
    %378 = vector.broadcast %cst_127 : f32 to vector<16x1xf32>
    %379 = arith.divf %377, %378 : vector<16x1xf32>
    %380 = vector.broadcast %379 : vector<16x1xf32> to vector<16x32xf32>
    %381 = arith.subf %375, %380 : vector<16x32xf32>
    %382 = arith.mulf %381, %381 : vector<16x32xf32>
    %cst_128 = arith.constant dense<0.000000e+00> : vector<16xf32>
    %383 = vector.multi_reduction <add>, %382, %cst_128 [1] : vector<16x32xf32> to vector<16xf32>
    %384 = vector.shape_cast %383 : vector<16xf32> to vector<16x1xf32>
    %cst_129 = arith.constant 3.200000e+01 : f32
    %385 = vector.broadcast %cst_129 : f32 to vector<16x1xf32>
    %386 = arith.divf %384, %385 : vector<16x1xf32>
    %387 = vector.broadcast %379 : vector<16x1xf32> to vector<16x32xf32>
    %388 = arith.subf %375, %387 : vector<16x32xf32>
    %cst_130 = arith.constant 9.99999974E-6 : f32
    %389 = vector.broadcast %cst_130 : f32 to vector<16x1xf32>
    %390 = arith.addf %386, %389 : vector<16x1xf32>
    %391 = math.rsqrt %390 : vector<16x1xf32>
    %392 = vector.broadcast %391 : vector<16x1xf32> to vector<16x32xf32>
    %393 = arith.mulf %388, %392 : vector<16x32xf32>
    %394 = vector.broadcast %230 : vector<1x32xf32> to vector<16x32xf32>
    %395 = arith.mulf %393, %394 : vector<16x32xf32>
    %396 = vector.broadcast %231 : vector<1x32xf32> to vector<16x32xf32>
    %397 = arith.addf %395, %396 : vector<16x32xf32>
    %398 = arith.truncf %397 : vector<16x32xf32> to vector<16x32xbf16>
    %cst_131 = arith.constant dense<0.000000e+00> : vector<16x64xf32>
    %399 = tpu.matmul %398, %221, %cst_131 {dimension_numbers = #tpu.dot_dimension_numbers<[1], [0], [0], [1], [0, 0, 1, 1], [], []>} : vector<16x32xbf16>, vector<32x64xbf16>, vector<16x64xf32> -> vector<16x64xf32>
    %400 = vector.broadcast %228 : vector<1x64xf32> to vector<16x64xf32>
    %401 = arith.addf %399, %400 : vector<16x64xf32>
    %cst_132 = arith.constant 0.000000e+00 : f32
    %402 = vector.broadcast %cst_132 : f32 to vector<16x64xf32>
    %403 = arith.maximumf %401, %402 : vector<16x64xf32>
    %404 = arith.truncf %403 : vector<16x64xf32> to vector<16x64xbf16>
    %cst_133 = arith.constant dense<0.000000e+00> : vector<16x32xf32>
    %405 = tpu.matmul %404, %223, %cst_133 {dimension_numbers = #tpu.dot_dimension_numbers<[1], [0], [0], [1], [0, 0, 1, 1], [], []>} : vector<16x64xbf16>, vector<64x32xbf16>, vector<16x32xf32> -> vector<16x32xf32>
    %406 = vector.broadcast %229 : vector<1x32xf32> to vector<16x32xf32>
    %407 = arith.addf %405, %406 : vector<16x32xf32>
    %408 = arith.addf %397, %407 : vector<16x32xf32>
    %cst_134 = arith.constant dense<0.000000e+00> : vector<16xf32>
    %409 = vector.multi_reduction <add>, %408, %cst_134 [1] : vector<16x32xf32> to vector<16xf32>
    %410 = vector.shape_cast %409 : vector<16xf32> to vector<16x1xf32>
    %cst_135 = arith.constant 3.200000e+01 : f32
    %411 = vector.broadcast %cst_135 : f32 to vector<16x1xf32>
    %412 = arith.divf %410, %411 : vector<16x1xf32>
    %413 = vector.broadcast %412 : vector<16x1xf32> to vector<16x32xf32>
    %414 = arith.subf %408, %413 : vector<16x32xf32>
    %415 = arith.mulf %414, %414 : vector<16x32xf32>
    %cst_136 = arith.constant dense<0.000000e+00> : vector<16xf32>
    %416 = vector.multi_reduction <add>, %415, %cst_136 [1] : vector<16x32xf32> to vector<16xf32>
    %417 = vector.shape_cast %416 : vector<16xf32> to vector<16x1xf32>
    %cst_137 = arith.constant 3.200000e+01 : f32
    %418 = vector.broadcast %cst_137 : f32 to vector<16x1xf32>
    %419 = arith.divf %417, %418 : vector<16x1xf32>
    %420 = vector.broadcast %412 : vector<16x1xf32> to vector<16x32xf32>
    %421 = arith.subf %408, %420 : vector<16x32xf32>
    %cst_138 = arith.constant 9.99999974E-6 : f32
    %422 = vector.broadcast %cst_138 : f32 to vector<16x1xf32>
    %423 = arith.addf %419, %422 : vector<16x1xf32>
    %424 = math.rsqrt %423 : vector<16x1xf32>
    %425 = vector.broadcast %424 : vector<16x1xf32> to vector<16x32xf32>
    %426 = arith.mulf %421, %425 : vector<16x32xf32>
    %427 = vector.broadcast %232 : vector<1x32xf32> to vector<16x32xf32>
    %428 = arith.mulf %426, %427 : vector<16x32xf32>
    %429 = vector.broadcast %233 : vector<1x32xf32> to vector<16x32xf32>
    %430 = arith.addf %428, %429 : vector<16x32xf32>
    %c0_139 = arith.constant 0 : index
    %c0_140 = arith.constant 0 : index
    %431 = vector.load %arg7[%c0_139, %c0_140] : memref<2x32xf32, #tpu.memory_space<vmem>>, vector<2x32xf32>
    %432 = vector.extract_strided_slice %431 {offsets = [0, 0], sizes = [1, 32], strides = [1, 1]} : vector<2x32xf32> to vector<1x32xf32>
    %433 = vector.extract_strided_slice %431 {offsets = [1, 0], sizes = [1, 32], strides = [1, 1]} : vector<2x32xf32> to vector<1x32xf32>
    %cst_141 = arith.constant dense<0.000000e+00> : vector<16xf32>
    %434 = vector.multi_reduction <add>, %430, %cst_141 [1] : vector<16x32xf32> to vector<16xf32>
    %435 = vector.shape_cast %434 : vector<16xf32> to vector<16x1xf32>
    %cst_142 = arith.constant 3.200000e+01 : f32
    %436 = vector.broadcast %cst_142 : f32 to vector<16x1xf32>
    %437 = arith.divf %435, %436 : vector<16x1xf32>
    %438 = vector.broadcast %437 : vector<16x1xf32> to vector<16x32xf32>
    %439 = arith.subf %430, %438 : vector<16x32xf32>
    %440 = arith.mulf %439, %439 : vector<16x32xf32>
    %cst_143 = arith.constant dense<0.000000e+00> : vector<16xf32>
    %441 = vector.multi_reduction <add>, %440, %cst_143 [1] : vector<16x32xf32> to vector<16xf32>
    %442 = vector.shape_cast %441 : vector<16xf32> to vector<16x1xf32>
    %cst_144 = arith.constant 3.200000e+01 : f32
    %443 = vector.broadcast %cst_144 : f32 to vector<16x1xf32>
    %444 = arith.divf %442, %443 : vector<16x1xf32>
    %445 = vector.broadcast %437 : vector<16x1xf32> to vector<16x32xf32>
    %446 = arith.subf %430, %445 : vector<16x32xf32>
    %cst_145 = arith.constant 9.99999974E-6 : f32
    %447 = vector.broadcast %cst_145 : f32 to vector<16x1xf32>
    %448 = arith.addf %444, %447 : vector<16x1xf32>
    %449 = math.rsqrt %448 : vector<16x1xf32>
    %450 = vector.broadcast %449 : vector<16x1xf32> to vector<16x32xf32>
    %451 = arith.mulf %446, %450 : vector<16x32xf32>
    %452 = vector.broadcast %432 : vector<1x32xf32> to vector<16x32xf32>
    %453 = arith.mulf %451, %452 : vector<16x32xf32>
    %454 = vector.broadcast %433 : vector<1x32xf32> to vector<16x32xf32>
    %455 = arith.addf %453, %454 : vector<16x32xf32>
    %c0_146 = arith.constant 0 : index
    %c0_147 = arith.constant 0 : index
    %456 = vector.load %arg8[%c0_146, %c0_147] : memref<16x32xf32, #tpu.memory_space<vmem>>, vector<16x32xf32>
    tpu.vector_store %arg8[%c0_146, %c0_147], %455 {strides = array<i32>} : memref<16x32xf32, #tpu.memory_space<vmem>>, vector<16x32xf32>,
    return
  }
  func.func @transform_0(%arg0: i32) -> (i32, i32) {
    %c0_i32 = arith.constant 0 : i32
    %c0_i32_0 = arith.constant 0 : i32
    return %arg0, %c0_i32 : i32, i32
  }
  func.func @transform_1(%arg0: i32) -> (i32, i32, i32) {
    %c0_i32 = arith.constant 0 : i32
    %c0_i32_0 = arith.constant 0 : i32
    %c0_i32_1 = arith.constant 0 : i32
    %c0_i32_2 = arith.constant 0 : i32
    return %c0_i32, %c0_i32_0, %c0_i32_1 : i32, i32, i32
  }
  func.func @transform_2(%arg0: i32) -> (i32, i32, i32) {
    %c0_i32 = arith.constant 0 : i32
    %c0_i32_0 = arith.constant 0 : i32
    %c0_i32_1 = arith.constant 0 : i32
    %c0_i32_2 = arith.constant 0 : i32
    return %c0_i32, %c0_i32_0, %c0_i32_1 : i32, i32, i32
  }
  func.func @transform_3(%arg0: i32) -> (i32, i32, i32) {
    %c0_i32 = arith.constant 0 : i32
    %c0_i32_0 = arith.constant 0 : i32
    %c0_i32_1 = arith.constant 0 : i32
    %c0_i32_2 = arith.constant 0 : i32
    return %c0_i32, %c0_i32_0, %c0_i32_1 : i32, i32, i32
  }
  func.func @transform_4(%arg0: i32) -> (i32, i32, i32) {
    %c0_i32 = arith.constant 0 : i32
    %c0_i32_0 = arith.constant 0 : i32
    %c0_i32_1 = arith.constant 0 : i32
    %c0_i32_2 = arith.constant 0 : i32
    return %c0_i32, %c0_i32_0, %c0_i32_1 : i32, i32, i32
  }
  func.func @transform_5(%arg0: i32) -> (i32, i32, i32) {
    %c0_i32 = arith.constant 0 : i32
    %c0_i32_0 = arith.constant 0 : i32
    %c0_i32_1 = arith.constant 0 : i32
    %c0_i32_2 = arith.constant 0 : i32
    return %c0_i32, %c0_i32_0, %c0_i32_1 : i32, i32, i32
  }
  func.func @transform_6(%arg0: i32) -> (i32, i32) {
    %c0_i32 = arith.constant 0 : i32
    %c0_i32_0 = arith.constant 0 : i32
    %c0_i32_1 = arith.constant 0 : i32
    return %c0_i32, %c0_i32_0 : i32, i32
  }
  func.func @transform_7(%arg0: i32) -> (i32, i32) {
    %c0_i32 = arith.constant 0 : i32
    %c0_i32_0 = arith.constant 0 : i32
    return %arg0, %c0_i32 : i32, i32
  }
}

</mosaic_0001>

<llo_original>
// kernel: run_encoder_stack.1
$region0: #{run_encoder_stack.1}
  #allocation0 [shape = 'u32[]', space=smem, size = 0x4, offset = 0x4, fixed_abs, tag = 'smem constant byte address 0x4 - core index']
  #allocation1 [shape = 'u32[144,128]{1,0:T(1,128)}', space=vmem, size = 0x12000, scoped, tag = 'internal scratch']
  %s0 = inlined_call_operand.hbm [shape: f32[16,32], index: 0, kind: input, shape index: {}]
  %s1 = inlined_call_operand.vmem [shape: bf16[2,32,96], index: 1, kind: input, shape index: {}]
  %s2 = inlined_call_operand.vmem [shape: bf16[2,32,32], index: 2, kind: input, shape index: {}]
  %s3 = inlined_call_operand.vmem [shape: bf16[2,32,64], index: 3, kind: input, shape index: {}]
  %s4 = inlined_call_operand.vmem [shape: bf16[2,64,32], index: 4, kind: input, shape index: {}]
  %s5 = inlined_call_operand.vmem [shape: f32[2,8,96], index: 5, kind: input, shape index: {}]
  %s6 = inlined_call_operand.vmem [shape: f32[2,32], index: 6, kind: input, shape index: {}]
  %s7 = inlined_call_operand.hbm [shape: f32[16,32], index: 7, kind: output, shape index: {}]
  %s8 = sld [smem:[#allocation0]]
  $region42: #{run_encoder_stack.1} parent=0
    _
  %s10 = ssub.s32 1, %s8
  %s11 = scalar_select 0, %s10, %s8
  $region1: #{run_encoder_stack.1} parent=0
    #allocation2 [shape = 'u8[8192]{0}', space=vmem, size = 0x2000, scoped, tag = 'input window, operand 0, single buffered']
    #allocation3 [shape = 's32[1]{0}', space=sflag, size = 0x4, scoped, tag = 'scoped memory for run_encoder_stack.1']
    #allocation4 [shape = 's32[1]{0}', space=sflag, size = 0x4, scoped, tag = 'scoped memory for run_encoder_stack.1']
    #allocation5 [shape = 'u8[8192]{0}', space=vmem, size = 0x2000, scoped, tag = 'output window, operand 0, single buffered']
    %12 = vsyncpa [#allocation3], 0
    %13 = vsyncpa [#allocation4], 0
    // Predicated region
    $region2: #{run_encoder_stack.1} parent=1 // pred_check
      _
    $region3: #{run_encoder_stack.1} parent=1 // pred_check_branch
      %15 = sbr.rel (0) target = $region5
    $region4: #{run_encoder_stack.1} parent=1 // pred_region
      %s17 = ssub.s32 256, 256
      %18 = vsyncadd [#allocation3], %s17
      %s19 = sshll.u32 [#allocation2], 4
      %s20 = int_to_ptr.vmem [resolvable:$true] %s19
      %25 = dma.hbm_to_vmem [thread:$0]  %s0, 256, %s20, [#allocation3], 128, 128, 8
    $region5: #{run_encoder_stack.1} parent=1 // pred_fallthru
      _
    // Predicated region
    $region6: #{run_encoder_stack.1} parent=1 // pred_check
      _
    $region7: #{run_encoder_stack.1} parent=1 // pred_check_branch
      %27 = sbr.rel (0) target = $region9
    $region8: #{run_encoder_stack.1} parent=1 // pred_region
      _
    $region9: #{run_encoder_stack.1} parent=1 // pred_fallthru
      _
    // Predicated region
    $region10: #{run_encoder_stack.1} parent=1 // pred_check
      _
    $region11: #{run_encoder_stack.1} parent=1 // pred_check_branch
      %29 = sbr.rel (0) target = $region13
    $region12: #{run_encoder_stack.1} parent=1 // pred_region
      _
    $region13: #{run_encoder_stack.1} parent=1 // pred_fallthru
      _
    // Predicated region
    $region14: #{run_encoder_stack.1} parent=1 // pred_check
      _
    $region15: #{run_encoder_stack.1} parent=1 // pred_check_branch
      %31 = sbr.rel (0) target = $region17
    $region16: #{run_encoder_stack.1} parent=1 // pred_region
      _
    $region17: #{run_encoder_stack.1} parent=1 // pred_fallthru
      _
    // Predicated region
    $region18: #{run_encoder_stack.1} parent=1 // pred_check
      _
    $region19: #{run_encoder_stack.1} parent=1 // pred_check_branch
      %33 = sbr.rel (0) target = $region21
    $region20: #{run_encoder_stack.1} parent=1 // pred_region
      _
    $region21: #{run_encoder_stack.1} parent=1 // pred_fallthru
      _
    // Predicated region
    $region22: #{run_encoder_stack.1} parent=1 // pred_check
      _
    $region23: #{run_encoder_stack.1} parent=1 // pred_check_branch
      %35 = sbr.rel (0) target = $region25
    $region24: #{run_encoder_stack.1} parent=1 // pred_region
      _
    $region25: #{run_encoder_stack.1} parent=1 // pred_fallthru
      _
    // Predicated region
    $region26: #{run_encoder_stack.1} parent=1 // pred_check
      _
    $region27: #{run_encoder_stack.1} parent=1 // pred_check_branch
      %37 = sbr.rel (0) target = $region29
    $region28: #{run_encoder_stack.1} parent=1 // pred_region
      _
    $region29: #{run_encoder_stack.1} parent=1 // pred_fallthru
      _
    // Predicated region
    $region30: #{run_encoder_stack.1} parent=1 // pred_check
      _
    $region31: #{run_encoder_stack.1} parent=1 // pred_check_branch
      %39 = sbr.rel (0) target = $region33
    $region32: #{run_encoder_stack.1} parent=1 // pred_region
      %40 = dma.done [#allocation3], 256
    $region33: #{run_encoder_stack.1} parent=1 // pred_fallthru
      _
    %v42 = vld [vmem:[#allocation2] sm:$0xff]
    %v43 = vld [vmem:[#allocation2 + $0x8] sm:$0xff]
    %v44 = vld [vmem:[%s1] sm:$0xf]
    %v45 = vld [vmem:[%s1 + $0x4] sm:$0xf]
    %v46 = vld [vmem:[%s1 + $0x8] sm:$0xf]
    %v47 = vld [vmem:[%s1 + $0xc] sm:$0xf]
    %v48 = vld [vmem:[%s2] sm:$0xf]
    %v49 = vld [vmem:[%s2 + $0x4] sm:$0xf]
    %v50 = vld [vmem:[%s2 + $0x8] sm:$0xf]
    %v51 = vld [vmem:[%s2 + $0xc] sm:$0xf]
    %v52 = vld [vmem:[%s3] sm:$0xf]
    %v53 = vld [vmem:[%s3 + $0x4] sm:$0xf]
    %v54 = vld [vmem:[%s3 + $0x8] sm:$0xf]
    %v55 = vld [vmem:[%s3 + $0xc] sm:$0xf]
    %v56 = vld [vmem:[%s4] sm:$0xf]
    %v57 = vld [vmem:[%s4 + $0x4] sm:$0xf]
    %v58 = vld [vmem:[%s4 + $0x8] sm:$0xf]
    %v59 = vld [vmem:[%s4 + $0xc] sm:$0xf]
    %v60 = vld [vmem:[%s4 + $0x10] sm:$0xf]
    %v61 = vld [vmem:[%s4 + $0x14] sm:$0xf]
    %v62 = vld [vmem:[%s4 + $0x18] sm:$0xf]
    %v63 = vld [vmem:[%s4 + $0x1c] sm:$0xf]
    %v64 = vld [vmem:[%s5] sm:$0xff]
    %v65 = vpack.c.bf16 %v43, %v42
    %v66 = vlaneseq
    %v67 = vshrl.u32 %v66, 7
    %v68 = vsub.s32 0, %v67
    %v69 = vrot.slane %v64, %v68
    %v74 = vunpack.c.l.b16 %v44
    %v75 = vunpack.c.l.b16 %v45
    %v76 = vunpack.c.l.b16 %v46
    %v77 = vunpack.c.l.b16 %v47
    %v78 = vpack.c.b16 %v75, %v74
    %v79 = vpack.c.b16 %v77, %v76
    %vm82 = vcmask 261120
    %v84 = vsel %vm82, %v65, 0
    %86 = vmatprep.subr.bf16.mxu0 0
    %87 = vmatpush1.bf16.msra.mxu0 %v78
    %88 = vmatprep.subr.bf16.mxu0 0
    %89 = vmatpush1.bf16.msra.mxu0 %v79
    %90 = vmatprep.subr.bf16.mxu0 0
    %91 = vmatpush1.bf16.msra.mxu0 0
    %92 = vmatprep.subr.bf16.mxu0 0
    %93 = vmatpush1.bf16.msra.mxu0 0
    %94 = vmatprep.subr.bf16.mxu0 0
    %95 = vmatpush1.bf16.msra.mxu0 0
    %96 = vmatprep.subr.bf16.mxu0 0
    %97 = vmatpush1.bf16.msra.mxu0 0
    %98 = vmatprep.subr.bf16.mxu0 0
    %99 = vmatpush1.bf16.msra.mxu0 0
    %100 = vmatprep.subr.bf16.mxu0 0
    %101 = vmatpush1.bf16.msra.mxu0 0
    %102 = vmatprep.subr.bf16.mxu0 0
    %103 = vmatpush1.bf16.msra.mxu0 0
    %104 = vmatprep.subr.bf16.mxu0 0
    %105 = vmatpush1.bf16.msra.mxu0 0
    %106 = vmatprep.subr.bf16.mxu0 0
    %107 = vmatpush1.bf16.msra.mxu0 0
    %108 = vmatprep.subr.bf16.mxu0 0
    %109 = vmatpush1.bf16.msra.mxu0 0
    %110 = vmatprep.subr.bf16.mxu0 0
    %111 = vmatpush1.bf16.msra.mxu0 0
    %112 = vmatprep.subr.bf16.mxu0 0
    %113 = vmatpush1.bf16.msra.mxu0 0
    %114 = vmatprep.subr.bf16.mxu0 0
    %115 = vmatpush1.bf16.msra.mxu0 0
    %116 = vmatprep.subr.bf16.mxu0 0
    %117 = vmatpush1.bf16.msra.mxu0 0
    %118 = vmatprep.mubr.bf16.mxu0 0
    %119 = vmatmul.mubr.bf16.gmra.mrb[0].mxu0 %v84
    %v120 = vpop.f32.mrb[0].mxu0
    %v121 = vadd.f32 %v69, %v120
    %v122 = vpop.f32.mrb[0].mxu0
    %v123 = vpop.f32.mrb[0].mxu0
    %v124 = vadd.f32 %v69, %v123
    %v125 = vpop.f32.mrb[0].mxu0
    %126 = vdwg.mxu0
    %128 = vrot.lane.b32.xlu0 %v121, 96
    %v129 = vpop.permute.xlu0 %128
    %vm130 = vcmask 64512
    %v131 = vsel %vm130, %v121, 0
    %v133 = vsel %vm130, %v129, 0
    %135 = vmatprep.subr.mxu0 0.0
    %136 = vmatpush1.xpose.msra.mxu0 %v133
    %137 = vmatprep.subr.mxu0 0.0
    %138 = vmatpush1.xpose.msra.mxu0 0.0
    %139 = vmatprep.subr.mxu0 0.0
    %140 = vmatpush1.xpose.msra.mxu0 0.0
    %141 = vmatprep.subr.mxu0 0.0
    %142 = vmatpush1.xpose.msra.mxu0 0.0
    %143 = vmatprep.subr.mxu0 0.0
    %144 = vmatpush1.xpose.msra.mxu0 0.0
    %145 = vmatprep.subr.mxu0 0.0
    %146 = vmatpush1.xpose.msra.mxu0 0.0
    %147 = vmatprep.subr.mxu0 0.0
    %148 = vmatpush1.xpose.msra.mxu0 0.0
    %149 = vmatprep.subr.mxu0 0.0
    %150 = vmatpush1.xpose.msra.mxu0 0.0
    %151 = vmatprep.subr.mxu0 0.0
    %152 = vmatpush1.xpose.msra.mxu0 0.0
    %153 = vmatprep.subr.mxu0 0.0
    %154 = vmatpush1.xpose.msra.mxu0 0.0
    %155 = vmatprep.subr.mxu0 0.0
    %156 = vmatpush1.xpose.msra.mxu0 0.0
    %157 = vmatprep.subr.mxu0 0.0
    %158 = vmatpush1.xpose.msra.mxu0 0.0
    %159 = vmatprep.subr.mxu0 0.0
    %160 = vmatpush1.xpose.msra.mxu0 0.0
    %161 = vmatprep.subr.mxu0 0.0
    %162 = vmatpush1.xpose.msra.mxu0 0.0
    %163 = vmatprep.subr.mxu0 0.0
    %164 = vmatpush1.xpose.msra.mxu0 0.0
    %165 = vmatprep.subr.mxu0 0.0
    %166 = vmatpush1.xpose.msra.mxu0 0.0
    %167 = vmatprep.subr.mxu0 0.0
    %168 = vmatpush1.xpose.msra.mxu0 0.0
    %169 = vmatprep.subr.mxu0 0.0
    %170 = vmatpush1.xpose.msra.mxu0 0.0
    %171 = vmatprep.subr.mxu0 0.0
    %172 = vmatpush1.xpose.msra.mxu0 0.0
    %173 = vmatprep.subr.mxu0 0.0
    %174 = vmatpush1.xpose.msra.mxu0 0.0
    %175 = vmatprep.subr.mxu0 0.0
    %176 = vmatpush1.xpose.msra.mxu0 0.0
    %177 = vmatprep.subr.mxu0 0.0
    %178 = vmatpush1.xpose.msra.mxu0 0.0
    %179 = vmatprep.subr.mxu0 0.0
    %180 = vmatpush1.xpose.msra.mxu0 0.0
    %181 = vmatprep.subr.mxu0 0.0
    %182 = vmatpush1.xpose.msra.mxu0 0.0
    %183 = vmatprep.subr.mxu0 0.0
    %184 = vmatpush1.xpose.msra.mxu0 0.0
    %185 = vmatprep.subr.mxu0 0.0
    %186 = vmatpush1.xpose.msra.mxu0 0.0
    %187 = vmatprep.subr.mxu0 0.0
    %188 = vmatpush1.xpose.msra.mxu0 0.0
    %189 = vmatprep.subr.mxu0 0.0
    %190 = vmatpush1.xpose.msra.mxu0 0.0
    %191 = vmatprep.subr.mxu0 0.0
    %192 = vmatpush1.xpose.msra.mxu0 0.0
    %193 = vmatprep.subr.mxu0 0.0
    %194 = vmatpush1.xpose.msra.mxu0 0.0
    %195 = vmatprep.subr.mxu0 0.0
    %196 = vmatpush1.xpose.msra.mxu0 0.0
    %197 = vmatprep.subr.mxu0 0.0
    %198 = vmatpush1.xpose.msra.mxu0 0.0
    %199 = vmatprep.mubr.f32.mxu0 0.0
    %200 = vmatmul.mubr.f32.gmra.mrb[0].mxu0 %v131
    %v201 = vpop.f32.mrb[0].mxu0
    %v202 = vadd.f32 0.0, %v201
    %v203 = vpop.f32.mrb[0].mxu0
    %204 = vdwg.mxu0
    %v205 = vmul.f32 %v202, 0.35355338
    %v206 = vsel %vm130, %v205, -inf
    %207 = vmax.xlane.f32.xlu0 %v206
    %v208 = vpop.xlane.xlu0 %207
    %v209 = vsub.f32 %v205, %v208
    %v210 = vmul.f32 %v209, 1.442695
    %v211 = vpow.pop %v210
    %v212 = vsel %vm130, %v211, 0.0
    %213 = vadd.xlane.f32.xlu0 %v212
    %v214 = vpop.xlane.xlu0 %213
    %v215 = vrcp.pop %v214
    %v216 = vmul.f32 %v211, %v215
    %217 = vrot.lane.b32.xlu0 %v121, 64
    %v218 = vpop.permute.xlu0 %217
    %v221 = vsel %vm130, %v216, 0
    %223 = vmatprep.subr.mxu0 0.0
    %224 = vmatpush1.msra.mxu0 %v218
    %225 = vmatprep.subr.mxu0 0.0
    %226 = vmatpush1.msra.mxu0 0.0
    %227 = vmatprep.subr.mxu0 0.0
    %228 = vmatpush1.msra.mxu0 0.0
    %229 = vmatprep.subr.mxu0 0.0
    %230 = vmatpush1.msra.mxu0 0.0
    %231 = vmatprep.subr.mxu0 0.0
    %232 = vmatpush1.msra.mxu0 0.0
    %233 = vmatprep.subr.mxu0 0.0
    %234 = vmatpush1.msra.mxu0 0.0
    %235 = vmatprep.subr.mxu0 0.0
    %236 = vmatpush1.msra.mxu0 0.0
    %237 = vmatprep.subr.mxu0 0.0
    %238 = vmatpush1.msra.mxu0 0.0
    %239 = vmatprep.subr.mxu0 0.0
    %240 = vmatpush1.msra.mxu0 0.0
    %241 = vmatprep.subr.mxu0 0.0
    %242 = vmatpush1.msra.mxu0 0.0
    %243 = vmatprep.subr.mxu0 0.0
    %244 = vmatpush1.msra.mxu0 0.0
    %245 = vmatprep.subr.mxu0 0.0
    %246 = vmatpush1.msra.mxu0 0.0
    %247 = vmatprep.subr.mxu0 0.0
    %248 = vmatpush1.msra.mxu0 0.0
    %249 = vmatprep.subr.mxu0 0.0
    %250 = vmatpush1.msra.mxu0 0.0
    %251 = vmatprep.subr.mxu0 0.0
    %252 = vmatpush1.msra.mxu0 0.0
    %253 = vmatprep.subr.mxu0 0.0
    %254 = vmatpush1.msra.mxu0 0.0
    %255 = vmatprep.subr.mxu0 0.0
    %256 = vmatpush1.msra.mxu0 0.0
    %257 = vmatprep.subr.mxu0 0.0
    %258 = vmatpush1.msra.mxu0 0.0
    %259 = vmatprep.subr.mxu0 0.0
    %260 = vmatpush1.msra.mxu0 0.0
    %261 = vmatprep.subr.mxu0 0.0
    %262 = vmatpush1.msra.mxu0 0.0
    %263 = vmatprep.subr.mxu0 0.0
    %264 = vmatpush1.msra.mxu0 0.0
    %265 = vmatprep.subr.mxu0 0.0
    %266 = vmatpush1.msra.mxu0 0.0
    %267 = vmatprep.subr.mxu0 0.0
    %268 = vmatpush1.msra.mxu0 0.0
    %269 = vmatprep.subr.mxu0 0.0
    %270 = vmatpush1.msra.mxu0 0.0
    %271 = vmatprep.subr.mxu0 0.0
    %272 = vmatpush1.msra.mxu0 0.0
    %273 = vmatprep.subr.mxu0 0.0
    %274 = vmatpush1.msra.mxu0 0.0
    %275 = vmatprep.subr.mxu0 0.0
    %276 = vmatpush1.msra.mxu0 0.0
    %277 = vmatprep.subr.mxu0 0.0
    %278 = vmatpush1.msra.mxu0 0.0
    %279 = vmatprep.subr.mxu0 0.0
    %280 = vmatpush1.msra.mxu0 0.0
    %281 = vmatprep.subr.mxu0 0.0
    %282 = vmatpush1.msra.mxu0 0.0
    %283 = vmatprep.subr.mxu0 0.0
    %284 = vmatpush1.msra.mxu0 0.0
    %285 = vmatprep.subr.mxu0 0.0
    %286 = vmatpush1.msra.mxu0 0.0
    %287 = vmatprep.mubr.f32.mxu0 0.0
    %288 = vmatmul.mubr.f32.gmra.mrb[0].mxu0 %v221
    %v289 = vpop.f32.mrb[0].mxu0
    %v290 = vadd.f32 0.0, %v289
    %v291 = vpop.f32.mrb[0].mxu0
    %292 = vdwg.mxu0
    %293 = vrot.lane.b32.xlu0 %v121, 120
    %v294 = vpop.permute.xlu0 %293
    %295 = vrot.lane.b32.xlu0 %v121, 88
    %v296 = vpop.permute.xlu0 %295
    %v297 = vsel %vm130, %v294, 0
    %v299 = vsel %vm130, %v296, 0
    %301 = vmatprep.subr.mxu0 0.0
    %302 = vmatpush1.xpose.msra.mxu0 %v299
    %303 = vmatprep.subr.mxu0 0.0
    %304 = vmatpush1.xpose.msra.mxu0 0.0
    %305 = vmatprep.subr.mxu0 0.0
    %306 = vmatpush1.xpose.msra.mxu0 0.0
    %307 = vmatprep.subr.mxu0 0.0
    %308 = vmatpush1.xpose.msra.mxu0 0.0
    %309 = vmatprep.subr.mxu0 0.0
    %310 = vmatpush1.xpose.msra.mxu0 0.0
    %311 = vmatprep.subr.mxu0 0.0
    %312 = vmatpush1.xpose.msra.mxu0 0.0
    %313 = vmatprep.subr.mxu0 0.0
    %314 = vmatpush1.xpose.msra.mxu0 0.0
    %315 = vmatprep.subr.mxu0 0.0
    %316 = vmatpush1.xpose.msra.mxu0 0.0
    %317 = vmatprep.subr.mxu0 0.0
    %318 = vmatpush1.xpose.msra.mxu0 0.0
    %319 = vmatprep.subr.mxu0 0.0
    %320 = vmatpush1.xpose.msra.mxu0 0.0
    %321 = vmatprep.subr.mxu0 0.0
    %322 = vmatpush1.xpose.msra.mxu0 0.0
    %323 = vmatprep.subr.mxu0 0.0
    %324 = vmatpush1.xpose.msra.mxu0 0.0
    %325 = vmatprep.subr.mxu0 0.0
    %326 = vmatpush1.xpose.msra.mxu0 0.0
    %327 = vmatprep.subr.mxu0 0.0
    %328 = vmatpush1.xpose.msra.mxu0 0.0
    %329 = vmatprep.subr.mxu0 0.0
    %330 = vmatpush1.xpose.msra.mxu0 0.0
    %331 = vmatprep.subr.mxu0 0.0
    %332 = vmatpush1.xpose.msra.mxu0 0.0
    %333 = vmatprep.subr.mxu0 0.0
    %334 = vmatpush1.xpose.msra.mxu0 0.0
    %335 = vmatprep.subr.mxu0 0.0
    %336 = vmatpush1.xpose.msra.mxu0 0.0
    %337 = vmatprep.subr.mxu0 0.0
    %338 = vmatpush1.xpose.msra.mxu0 0.0
    %339 = vmatprep.subr.mxu0 0.0
    %340 = vmatpush1.xpose.msra.mxu0 0.0
    %341 = vmatprep.subr.mxu0 0.0
    %342 = vmatpush1.xpose.msra.mxu0 0.0
    %343 = vmatprep.subr.mxu0 0.0
    %344 = vmatpush1.xpose.msra.mxu0 0.0
    %345 = vmatprep.subr.mxu0 0.0
    %346 = vmatpush1.xpose.msra.mxu0 0.0
    %347 = vmatprep.subr.mxu0 0.0
    %348 = vmatpush1.xpose.msra.mxu0 0.0
    %349 = vmatprep.subr.mxu0 0.0
    %350 = vmatpush1.xpose.msra.mxu0 0.0
    %351 = vmatprep.subr.mxu0 0.0
    %352 = vmatpush1.xpose.msra.mxu0 0.0
    %353 = vmatprep.subr.mxu0 0.0
    %354 = vmatpush1.xpose.msra.mxu0 0.0
    %355 = vmatprep.subr.mxu0 0.0
    %356 = vmatpush1.xpose.msra.mxu0 0.0
    %357 = vmatprep.subr.mxu0 0.0
    %358 = vmatpush1.xpose.msra.mxu0 0.0
    %359 = vmatprep.subr.mxu0 0.0
    %360 = vmatpush1.xpose.msra.mxu0 0.0
    %361 = vmatprep.subr.mxu0 0.0
    %362 = vmatpush1.xpose.msra.mxu0 0.0
    %363 = vmatprep.subr.mxu0 0.0
    %364 = vmatpush1.xpose.msra.mxu0 0.0
    %365 = vmatprep.mubr.f32.mxu0 0.0
    %366 = vmatmul.mubr.f32.gmra.mrb[0].mxu0 %v297
    %v367 = vpop.f32.mrb[0].mxu0
    %v368 = vadd.f32 0.0, %v367
    %v369 = vpop.f32.mrb[0].mxu0
    %370 = vdwg.mxu0
    %v371 = vmul.f32 %v368, 0.35355338
    %v372 = vsel %vm130, %v371, -inf
    %373 = vmax.xlane.f32.xlu0 %v372
    %v374 = vpop.xlane.xlu0 %373
    %v375 = vsub.f32 %v371, %v374
    %v376 = vmul.f32 %v375, 1.442695
    %v377 = vpow.pop %v376
    %v378 = vsel %vm130, %v377, 0.0
    %379 = vadd.xlane.f32.xlu0 %v378
    %v380 = vpop.xlane.xlu0 %379
    %v381 = vrcp.pop %v380
    %v382 = vmul.f32 %v377, %v381
    %383 = vrot.lane.b32.xlu0 %v121, 56
    %v384 = vpop.permute.xlu0 %383
    %v387 = vsel %vm130, %v382, 0
    %389 = vmatprep.subr.mxu0 0.0
    %390 = vmatpush1.msra.mxu0 %v384
    %391 = vmatprep.subr.mxu0 0.0
    %392 = vmatpush1.msra.mxu0 0.0
    %393 = vmatprep.subr.mxu0 0.0
    %394 = vmatpush1.msra.mxu0 0.0
    %395 = vmatprep.subr.mxu0 0.0
    %396 = vmatpush1.msra.mxu0 0.0
    %397 = vmatprep.subr.mxu0 0.0
    %398 = vmatpush1.msra.mxu0 0.0
    %399 = vmatprep.subr.mxu0 0.0
    %400 = vmatpush1.msra.mxu0 0.0
    %401 = vmatprep.subr.mxu0 0.0
    %402 = vmatpush1.msra.mxu0 0.0
    %403 = vmatprep.subr.mxu0 0.0
    %404 = vmatpush1.msra.mxu0 0.0
    %405 = vmatprep.subr.mxu0 0.0
    %406 = vmatpush1.msra.mxu0 0.0
    %407 = vmatprep.subr.mxu0 0.0
    %408 = vmatpush1.msra.mxu0 0.0
    %409 = vmatprep.subr.mxu0 0.0
    %410 = vmatpush1.msra.mxu0 0.0
    %411 = vmatprep.subr.mxu0 0.0
    %412 = vmatpush1.msra.mxu0 0.0
    %413 = vmatprep.subr.mxu0 0.0
    %414 = vmatpush1.msra.mxu0 0.0
    %415 = vmatprep.subr.mxu0 0.0
    %416 = vmatpush1.msra.mxu0 0.0
    %417 = vmatprep.subr.mxu0 0.0
    %418 = vmatpush1.msra.mxu0 0.0
    %419 = vmatprep.subr.mxu0 0.0
    %420 = vmatpush1.msra.mxu0 0.0
    %421 = vmatprep.subr.mxu0 0.0
    %422 = vmatpush1.msra.mxu0 0.0
    %423 = vmatprep.subr.mxu0 0.0
    %424 = vmatpush1.msra.mxu0 0.0
    %425 = vmatprep.subr.mxu0 0.0
    %426 = vmatpush1.msra.mxu0 0.0
    %427 = vmatprep.subr.mxu0 0.0
    %428 = vmatpush1.msra.mxu0 0.0
    %429 = vmatprep.subr.mxu0 0.0
    %430 = vmatpush1.msra.mxu0 0.0
    %431 = vmatprep.subr.mxu0 0.0
    %432 = vmatpush1.msra.mxu0 0.0
    %433 = vmatprep.subr.mxu0 0.0
    %434 = vmatpush1.msra.mxu0 0.0
    %435 = vmatprep.subr.mxu0 0.0
    %436 = vmatpush1.msra.mxu0 0.0
    %437 = vmatprep.subr.mxu0 0.0
    %438 = vmatpush1.msra.mxu0 0.0
    %439 = vmatprep.subr.mxu0 0.0
    %440 = vmatpush1.msra.mxu0 0.0
    %441 = vmatprep.subr.mxu0 0.0
    %442 = vmatpush1.msra.mxu0 0.0
    %443 = vmatprep.subr.mxu0 0.0
    %444 = vmatpush1.msra.mxu0 0.0
    %445 = vmatprep.subr.mxu0 0.0
    %446 = vmatpush1.msra.mxu0 0.0
    %447 = vmatprep.subr.mxu0 0.0
    %448 = vmatpush1.msra.mxu0 0.0
    %449 = vmatprep.subr.mxu0 0.0
    %450 = vmatpush1.msra.mxu0 0.0
    %451 = vmatprep.subr.mxu0 0.0
    %452 = vmatpush1.msra.mxu0 0.0
    %453 = vmatprep.mubr.f32.mxu0 0.0
    %454 = vmatmul.mubr.f32.gmra.mrb[0].mxu0 %v387
    %v455 = vpop.f32.mrb[0].mxu0
    %v456 = vadd.f32 0.0, %v455
    %v457 = vpop.f32.mrb[0].mxu0
    %458 = vdwg.mxu0
    %459 = vrot.lane.b32.xlu0 %v121, 112
    %v460 = vpop.permute.xlu0 %459
    %461 = vrot.lane.b32.xlu0 %v121, 80
    %v462 = vpop.permute.xlu0 %461
    %v463 = vsel %vm130, %v460, 0
    %v465 = vsel %vm130, %v462, 0
    %467 = vmatprep.subr.mxu0 0.0
    %468 = vmatpush1.xpose.msra.mxu0 %v465
    %469 = vmatprep.subr.mxu0 0.0
    %470 = vmatpush1.xpose.msra.mxu0 0.0
    %471 = vmatprep.subr.mxu0 0.0
    %472 = vmatpush1.xpose.msra.mxu0 0.0
    %473 = vmatprep.subr.mxu0 0.0
    %474 = vmatpush1.xpose.msra.mxu0 0.0
    %475 = vmatprep.subr.mxu0 0.0
    %476 = vmatpush1.xpose.msra.mxu0 0.0
    %477 = vmatprep.subr.mxu0 0.0
    %478 = vmatpush1.xpose.msra.mxu0 0.0
    %479 = vmatprep.subr.mxu0 0.0
    %480 = vmatpush1.xpose.msra.mxu0 0.0
    %481 = vmatprep.subr.mxu0 0.0
    %482 = vmatpush1.xpose.msra.mxu0 0.0
    %483 = vmatprep.subr.mxu0 0.0
    %484 = vmatpush1.xpose.msra.mxu0 0.0
    %485 = vmatprep.subr.mxu0 0.0
    %486 = vmatpush1.xpose.msra.mxu0 0.0
    %487 = vmatprep.subr.mxu0 0.0
    %488 = vmatpush1.xpose.msra.mxu0 0.0
    %489 = vmatprep.subr.mxu0 0.0
    %490 = vmatpush1.xpose.msra.mxu0 0.0
    %491 = vmatprep.subr.mxu0 0.0
    %492 = vmatpush1.xpose.msra.mxu0 0.0
    %493 = vmatprep.subr.mxu0 0.0
    %494 = vmatpush1.xpose.msra.mxu0 0.0
    %495 = vmatprep.subr.mxu0 0.0
    %496 = vmatpush1.xpose.msra.mxu0 0.0
    %497 = vmatprep.subr.mxu0 0.0
    %498 = vmatpush1.xpose.msra.mxu0 0.0
    %499 = vmatprep.subr.mxu0 0.0
    %500 = vmatpush1.xpose.msra.mxu0 0.0
    %501 = vmatprep.subr.mxu0 0.0
    %502 = vmatpush1.xpose.msra.mxu0 0.0
    %503 = vmatprep.subr.mxu0 0.0
    %504 = vmatpush1.xpose.msra.mxu0 0.0
    %505 = vmatprep.subr.mxu0 0.0
    %506 = vmatpush1.xpose.msra.mxu0 0.0
    %507 = vmatprep.subr.mxu0 0.0
    %508 = vmatpush1.xpose.msra.mxu0 0.0
    %509 = vmatprep.subr.mxu0 0.0
    %510 = vmatpush1.xpose.msra.mxu0 0.0
    %511 = vmatprep.subr.mxu0 0.0
    %512 = vmatpush1.xpose.msra.mxu0 0.0
    %513 = vmatprep.subr.mxu0 0.0
    %514 = vmatpush1.xpose.msra.mxu0 0.0
    %515 = vmatprep.subr.mxu0 0.0
    %516 = vmatpush1.xpose.msra.mxu0 0.0
    %517 = vmatprep.subr.mxu0 0.0
    %518 = vmatpush1.xpose.msra.mxu0 0.0
    %519 = vmatprep.subr.mxu0 0.0
    %520 = vmatpush1.xpose.msra.mxu0 0.0
    %521 = vmatprep.subr.mxu0 0.0
    %522 = vmatpush1.xpose.msra.mxu0 0.0
    %523 = vmatprep.subr.mxu0 0.0
    %524 = vmatpush1.xpose.msra.mxu0 0.0
    %525 = vmatprep.subr.mxu0 0.0
    %526 = vmatpush1.xpose.msra.mxu0 0.0
    %527 = vmatprep.subr.mxu0 0.0
    %528 = vmatpush1.xpose.msra.mxu0 0.0
    %529 = vmatprep.subr.mxu0 0.0
    %530 = vmatpush1.xpose.msra.mxu0 0.0
    %531 = vmatprep.mubr.f32.mxu0 0.0
    %532 = vmatmul.mubr.f32.gmra.mrb[0].mxu0 %v463
    %v533 = vpop.f32.mrb[0].mxu0
    %v534 = vadd.f32 0.0, %v533
    %v535 = vpop.f32.mrb[0].mxu0
    %536 = vdwg.mxu0
    %v537 = vmul.f32 %v534, 0.35355338
    %v538 = vsel %vm130, %v537, -inf
    %539 = vmax.xlane.f32.xlu0 %v538
    %v540 = vpop.xlane.xlu0 %539
    %v541 = vsub.f32 %v537, %v540
    %v542 = vmul.f32 %v541, 1.442695
    %v543 = vpow.pop %v542
    %v544 = vsel %vm130, %v543, 0.0
    %545 = vadd.xlane.f32.xlu0 %v544
    %v546 = vpop.xlane.xlu0 %545
    %v547 = vrcp.pop %v546
    %v548 = vmul.f32 %v543, %v547
    %549 = vrot.lane.b32.xlu0 %v121, 48
    %v550 = vpop.permute.xlu0 %549
    %v553 = vsel %vm130, %v548, 0
    %555 = vmatprep.subr.mxu0 0.0
    %556 = vmatpush1.msra.mxu0 %v550
    %557 = vmatprep.subr.mxu0 0.0
    %558 = vmatpush1.msra.mxu0 0.0
    %559 = vmatprep.subr.mxu0 0.0
    %560 = vmatpush1.msra.mxu0 0.0
    %561 = vmatprep.subr.mxu0 0.0
    %562 = vmatpush1.msra.mxu0 0.0
    %563 = vmatprep.subr.mxu0 0.0
    %564 = vmatpush1.msra.mxu0 0.0
    %565 = vmatprep.subr.mxu0 0.0
    %566 = vmatpush1.msra.mxu0 0.0
    %567 = vmatprep.subr.mxu0 0.0
    %568 = vmatpush1.msra.mxu0 0.0
    %569 = vmatprep.subr.mxu0 0.0
    %570 = vmatpush1.msra.mxu0 0.0
    %571 = vmatprep.subr.mxu0 0.0
    %572 = vmatpush1.msra.mxu0 0.0
    %573 = vmatprep.subr.mxu0 0.0
    %574 = vmatpush1.msra.mxu0 0.0
    %575 = vmatprep.subr.mxu0 0.0
    %576 = vmatpush1.msra.mxu0 0.0
    %577 = vmatprep.subr.mxu0 0.0
    %578 = vmatpush1.msra.mxu0 0.0
    %579 = vmatprep.subr.mxu0 0.0
    %580 = vmatpush1.msra.mxu0 0.0
    %581 = vmatprep.subr.mxu0 0.0
    %582 = vmatpush1.msra.mxu0 0.0
    %583 = vmatprep.subr.mxu0 0.0
    %584 = vmatpush1.msra.mxu0 0.0
    %585 = vmatprep.subr.mxu0 0.0
    %586 = vmatpush1.msra.mxu0 0.0
    %587 = vmatprep.subr.mxu0 0.0
    %588 = vmatpush1.msra.mxu0 0.0
    %589 = vmatprep.subr.mxu0 0.0
    %590 = vmatpush1.msra.mxu0 0.0
    %591 = vmatprep.subr.mxu0 0.0
    %592 = vmatpush1.msra.mxu0 0.0
    %593 = vmatprep.subr.mxu0 0.0
    %594 = vmatpush1.msra.mxu0 0.0
    %595 = vmatprep.subr.mxu0 0.0
    %596 = vmatpush1.msra.mxu0 0.0
    %597 = vmatprep.subr.mxu0 0.0
    %598 = vmatpush1.msra.mxu0 0.0
    %599 = vmatprep.subr.mxu0 0.0
    %600 = vmatpush1.msra.mxu0 0.0
    %601 = vmatprep.subr.mxu0 0.0
    %602 = vmatpush1.msra.mxu0 0.0
    %603 = vmatprep.subr.mxu0 0.0
    %604 = vmatpush1.msra.mxu0 0.0
    %605 = vmatprep.subr.mxu0 0.0
    %606 = vmatpush1.msra.mxu0 0.0
    %607 = vmatprep.subr.mxu0 0.0
    %608 = vmatpush1.msra.mxu0 0.0
    %609 = vmatprep.subr.mxu0 0.0
    %610 = vmatpush1.msra.mxu0 0.0
    %611 = vmatprep.subr.mxu0 0.0
    %612 = vmatpush1.msra.mxu0 0.0
    %613 = vmatprep.subr.mxu0 0.0
    %614 = vmatpush1.msra.mxu0 0.0
    %615 = vmatprep.subr.mxu0 0.0
    %616 = vmatpush1.msra.mxu0 0.0
    %617 = vmatprep.subr.mxu0 0.0
    %618 = vmatpush1.msra.mxu0 0.0
    %619 = vmatprep.mubr.f32.mxu0 0.0
    %620 = vmatmul.mubr.f32.gmra.mrb[0].mxu0 %v553
    %v621 = vpop.f32.mrb[0].mxu0
    %v622 = vadd.f32 0.0, %v621
    %v623 = vpop.f32.mrb[0].mxu0
    %624 = vdwg.mxu0
    %625 = vrot.lane.b32.xlu0 %v121, 104
    %v626 = vpop.permute.xlu0 %625
    %627 = vrot.lane.b32.xlu0 %v121, 72
    %v628 = vpop.permute.xlu0 %627
    %v629 = vsel %vm130, %v626, 0
    %v631 = vsel %vm130, %v628, 0
    %633 = vmatprep.subr.mxu0 0.0
    %634 = vmatpush1.xpose.msra.mxu0 %v631
    %635 = vmatprep.subr.mxu0 0.0
    %636 = vmatpush1.xpose.msra.mxu0 0.0
    %637 = vmatprep.subr.mxu0 0.0
    %638 = vmatpush1.xpose.msra.mxu0 0.0
    %639 = vmatprep.subr.mxu0 0.0
    %640 = vmatpush1.xpose.msra.mxu0 0.0
    %641 = vmatprep.subr.mxu0 0.0
    %642 = vmatpush1.xpose.msra.mxu0 0.0
    %643 = vmatprep.subr.mxu0 0.0
    %644 = vmatpush1.xpose.msra.mxu0 0.0
    %645 = vmatprep.subr.mxu0 0.0
    %646 = vmatpush1.xpose.msra.mxu0 0.0
    %647 = vmatprep.subr.mxu0 0.0
    %648 = vmatpush1.xpose.msra.mxu0 0.0
    %649 = vmatprep.subr.mxu0 0.0
    %650 = vmatpush1.xpose.msra.mxu0 0.0
    %651 = vmatprep.subr.mxu0 0.0
    %652 = vmatpush1.xpose.msra.mxu0 0.0
    %653 = vmatprep.subr.mxu0 0.0
    %654 = vmatpush1.xpose.msra.mxu0 0.0
    %655 = vmatprep.subr.mxu0 0.0
    %656 = vmatpush1.xpose.msra.mxu0 0.0
    %657 = vmatprep.subr.mxu0 0.0
    %658 = vmatpush1.xpose.msra.mxu0 0.0
    %659 = vmatprep.subr.mxu0 0.0
    %660 = vmatpush1.xpose.msra.mxu0 0.0
    %661 = vmatprep.subr.mxu0 0.0
    %662 = vmatpush1.xpose.msra.mxu0 0.0
    %663 = vmatprep.subr.mxu0 0.0
    %664 = vmatpush1.xpose.msra.mxu0 0.0
    %665 = vmatprep.subr.mxu0 0.0
    %666 = vmatpush1.xpose.msra.mxu0 0.0
    %667 = vmatprep.subr.mxu0 0.0
    %668 = vmatpush1.xpose.msra.mxu0 0.0
    %669 = vmatprep.subr.mxu0 0.0
    %670 = vmatpush1.xpose.msra.mxu0 0.0
    %671 = vmatprep.subr.mxu0 0.0
    %672 = vmatpush1.xpose.msra.mxu0 0.0
    %673 = vmatprep.subr.mxu0 0.0
    %674 = vmatpush1.xpose.msra.mxu0 0.0
    %675 = vmatprep.subr.mxu0 0.0
    %676 = vmatpush1.xpose.msra.mxu0 0.0
    %677 = vmatprep.subr.mxu0 0.0
    %678 = vmatpush1.xpose.msra.mxu0 0.0
    %679 = vmatprep.subr.mxu0 0.0
    %680 = vmatpush1.xpose.msra.mxu0 0.0
    %681 = vmatprep.subr.mxu0 0.0
    %682 = vmatpush1.xpose.msra.mxu0 0.0
    %683 = vmatprep.subr.mxu0 0.0
    %684 = vmatpush1.xpose.msra.mxu0 0.0
    %685 = vmatprep.subr.mxu0 0.0
    %686 = vmatpush1.xpose.msra.mxu0 0.0
    %687 = vmatprep.subr.mxu0 0.0
    %688 = vmatpush1.xpose.msra.mxu0 0.0
    %689 = vmatprep.subr.mxu0 0.0
    %690 = vmatpush1.xpose.msra.mxu0 0.0
    %691 = vmatprep.subr.mxu0 0.0
    %692 = vmatpush1.xpose.msra.mxu0 0.0
    %693 = vmatprep.subr.mxu0 0.0
    %694 = vmatpush1.xpose.msra.mxu0 0.0
    %695 = vmatprep.subr.mxu0 0.0
    %696 = vmatpush1.xpose.msra.mxu0 0.0
    %697 = vmatprep.mubr.f32.mxu0 0.0
    %698 = vmatmul.mubr.f32.gmra.mrb[0].mxu0 %v629
    %v699 = vpop.f32.mrb[0].mxu0
    %v700 = vadd.f32 0.0, %v699
    %v701 = vpop.f32.mrb[0].mxu0
    %702 = vdwg.mxu0
    %v703 = vmul.f32 %v700, 0.35355338
    %v704 = vsel %vm130, %v703, -inf
    %705 = vmax.xlane.f32.xlu0 %v704
    %v706 = vpop.xlane.xlu0 %705
    %v707 = vsub.f32 %v703, %v706
    %v708 = vmul.f32 %v707, 1.442695
    %v709 = vpow.pop %v708
    %v710 = vsel %vm130, %v709, 0.0
    %711 = vadd.xlane.f32.xlu0 %v710
    %v712 = vpop.xlane.xlu0 %711
    %v713 = vrcp.pop %v712
    %v714 = vmul.f32 %v709, %v713
    %715 = vrot.lane.b32.xlu0 %v121, 40
    %v716 = vpop.permute.xlu0 %715
    %v719 = vsel %vm130, %v714, 0
    %721 = vmatprep.subr.mxu0 0.0
    %722 = vmatpush1.msra.mxu0 %v716
    %723 = vmatprep.subr.mxu0 0.0
    %724 = vmatpush1.msra.mxu0 0.0
    %725 = vmatprep.subr.mxu0 0.0
    %726 = vmatpush1.msra.mxu0 0.0
    %727 = vmatprep.subr.mxu0 0.0
    %728 = vmatpush1.msra.mxu0 0.0
    %729 = vmatprep.subr.mxu0 0.0
    %730 = vmatpush1.msra.mxu0 0.0
    %731 = vmatprep.subr.mxu0 0.0
    %732 = vmatpush1.msra.mxu0 0.0
    %733 = vmatprep.subr.mxu0 0.0
    %734 = vmatpush1.msra.mxu0 0.0
    %735 = vmatprep.subr.mxu0 0.0
    %736 = vmatpush1.msra.mxu0 0.0
    %737 = vmatprep.subr.mxu0 0.0
    %738 = vmatpush1.msra.mxu0 0.0
    %739 = vmatprep.subr.mxu0 0.0
    %740 = vmatpush1.msra.mxu0 0.0
    %741 = vmatprep.subr.mxu0 0.0
    %742 = vmatpush1.msra.mxu0 0.0
    %743 = vmatprep.subr.mxu0 0.0
    %744 = vmatpush1.msra.mxu0 0.0
    %745 = vmatprep.subr.mxu0 0.0
    %746 = vmatpush1.msra.mxu0 0.0
    %747 = vmatprep.subr.mxu0 0.0
    %748 = vmatpush1.msra.mxu0 0.0
    %749 = vmatprep.subr.mxu0 0.0
    %750 = vmatpush1.msra.mxu0 0.0
    %751 = vmatprep.subr.mxu0 0.0
    %752 = vmatpush1.msra.mxu0 0.0
    %753 = vmatprep.subr.mxu0 0.0
    %754 = vmatpush1.msra.mxu0 0.0
    %755 = vmatprep.subr.mxu0 0.0
    %756 = vmatpush1.msra.mxu0 0.0
    %757 = vmatprep.subr.mxu0 0.0
    %758 = vmatpush1.msra.mxu0 0.0
    %759 = vmatprep.subr.mxu0 0.0
    %760 = vmatpush1.msra.mxu0 0.0
    %761 = vmatprep.subr.mxu0 0.0
    %762 = vmatpush1.msra.mxu0 0.0
    %763 = vmatprep.subr.mxu0 0.0
    %764 = vmatpush1.msra.mxu0 0.0
    %765 = vmatprep.subr.mxu0 0.0
    %766 = vmatpush1.msra.mxu0 0.0
    %767 = vmatprep.subr.mxu0 0.0
    %768 = vmatpush1.msra.mxu0 0.0
    %769 = vmatprep.subr.mxu0 0.0
    %770 = vmatpush1.msra.mxu0 0.0
    %771 = vmatprep.subr.mxu0 0.0
    %772 = vmatpush1.msra.mxu0 0.0
    %773 = vmatprep.subr.mxu0 0.0
    %774 = vmatpush1.msra.mxu0 0.0
    %775 = vmatprep.subr.mxu0 0.0
    %776 = vmatpush1.msra.mxu0 0.0
    %777 = vmatprep.subr.mxu0 0.0
    %778 = vmatpush1.msra.mxu0 0.0
    %779 = vmatprep.subr.mxu0 0.0
    %780 = vmatpush1.msra.mxu0 0.0
    %781 = vmatprep.subr.mxu0 0.0
    %782 = vmatpush1.msra.mxu0 0.0
    %783 = vmatprep.subr.mxu0 0.0
    %784 = vmatpush1.msra.mxu0 0.0
    %785 = vmatprep.mubr.f32.mxu0 0.0
    %786 = vmatmul.mubr.f32.gmra.mrb[0].mxu0 %v719
    %v787 = vpop.f32.mrb[0].mxu0
    %v788 = vadd.f32 0.0, %v787
    %v789 = vpop.f32.mrb[0].mxu0
    %790 = vdwg.mxu0
    %792 = vrot.lane.b32.xlu0 %v456, 8
    %v793 = vpop.permute.xlu0 %792
    %796 = vrot.lane.b32.xlu0 %v622, 16
    %v797 = vpop.permute.xlu0 %796
    %800 = vrot.lane.b32.xlu0 %v788, 24
    %v801 = vpop.permute.xlu0 %800
    %v803 = vsel %vm130, %v290, %v793
    %vm804 = vcmask 130048
    %v805 = vsel %vm804, %v803, %v797
    %vm806 = vcmask 195584
    %v807 = vsel %vm806, %v805, %v801
    %809 = vrot.lane.b32.xlu0 %v124, 96
    %v810 = vpop.permute.xlu0 %809
    %v811 = vsel %vm130, %v124, 0
    %v813 = vsel %vm130, %v810, 0
    %815 = vmatprep.subr.mxu0 0.0
    %816 = vmatpush1.xpose.msra.mxu0 %v813
    %817 = vmatprep.subr.mxu0 0.0
    %818 = vmatpush1.xpose.msra.mxu0 0.0
    %819 = vmatprep.subr.mxu0 0.0
    %820 = vmatpush1.xpose.msra.mxu0 0.0
    %821 = vmatprep.subr.mxu0 0.0
    %822 = vmatpush1.xpose.msra.mxu0 0.0
    %823 = vmatprep.subr.mxu0 0.0
    %824 = vmatpush1.xpose.msra.mxu0 0.0
    %825 = vmatprep.subr.mxu0 0.0
    %826 = vmatpush1.xpose.msra.mxu0 0.0
    %827 = vmatprep.subr.mxu0 0.0
    %828 = vmatpush1.xpose.msra.mxu0 0.0
    %829 = vmatprep.subr.mxu0 0.0
    %830 = vmatpush1.xpose.msra.mxu0 0.0
    %831 = vmatprep.subr.mxu0 0.0
    %832 = vmatpush1.xpose.msra.mxu0 0.0
    %833 = vmatprep.subr.mxu0 0.0
    %834 = vmatpush1.xpose.msra.mxu0 0.0
    %835 = vmatprep.subr.mxu0 0.0
    %836 = vmatpush1.xpose.msra.mxu0 0.0
    %837 = vmatprep.subr.mxu0 0.0
    %838 = vmatpush1.xpose.msra.mxu0 0.0
    %839 = vmatprep.subr.mxu0 0.0
    %840 = vmatpush1.xpose.msra.mxu0 0.0
    %841 = vmatprep.subr.mxu0 0.0
    %842 = vmatpush1.xpose.msra.mxu0 0.0
    %843 = vmatprep.subr.mxu0 0.0
    %844 = vmatpush1.xpose.msra.mxu0 0.0
    %845 = vmatprep.subr.mxu0 0.0
    %846 = vmatpush1.xpose.msra.mxu0 0.0
    %847 = vmatprep.subr.mxu0 0.0
    %848 = vmatpush1.xpose.msra.mxu0 0.0
    %849 = vmatprep.subr.mxu0 0.0
    %850 = vmatpush1.xpose.msra.mxu0 0.0
    %851 = vmatprep.subr.mxu0 0.0
    %852 = vmatpush1.xpose.msra.mxu0 0.0
    %853 = vmatprep.subr.mxu0 0.0
    %854 = vmatpush1.xpose.msra.mxu0 0.0
    %855 = vmatprep.subr.mxu0 0.0
    %856 = vmatpush1.xpose.msra.mxu0 0.0
    %857 = vmatprep.subr.mxu0 0.0
    %858 = vmatpush1.xpose.msra.mxu0 0.0
    %859 = vmatprep.subr.mxu0 0.0
    %860 = vmatpush1.xpose.msra.mxu0 0.0
    %861 = vmatprep.subr.mxu0 0.0
    %862 = vmatpush1.xpose.msra.mxu0 0.0
    %863 = vmatprep.subr.mxu0 0.0
    %864 = vmatpush1.xpose.msra.mxu0 0.0
    %865 = vmatprep.subr.mxu0 0.0
    %866 = vmatpush1.xpose.msra.mxu0 0.0
    %867 = vmatprep.subr.mxu0 0.0
    %868 = vmatpush1.xpose.msra.mxu0 0.0
    %869 = vmatprep.subr.mxu0 0.0
    %870 = vmatpush1.xpose.msra.mxu0 0.0
    %871 = vmatprep.subr.mxu0 0.0
    %872 = vmatpush1.xpose.msra.mxu0 0.0
    %873 = vmatprep.subr.mxu0 0.0
    %874 = vmatpush1.xpose.msra.mxu0 0.0
    %875 = vmatprep.subr.mxu0 0.0
    %876 = vmatpush1.xpose.msra.mxu0 0.0
    %877 = vmatprep.subr.mxu0 0.0
    %878 = vmatpush1.xpose.msra.mxu0 0.0
    %879 = vmatprep.mubr.f32.mxu0 0.0
    %880 = vmatmul.mubr.f32.gmra.mrb[0].mxu0 %v811
    %v881 = vpop.f32.mrb[0].mxu0
    %v882 = vadd.f32 0.0, %v881
    %v883 = vpop.f32.mrb[0].mxu0
    %884 = vdwg.mxu0
    %v885 = vmul.f32 %v882, 0.35355338
    %v886 = vsel %vm130, %v885, -inf
    %887 = vmax.xlane.f32.xlu0 %v886
    %v888 = vpop.xlane.xlu0 %887
    %v889 = vsub.f32 %v885, %v888
    %v890 = vmul.f32 %v889, 1.442695
    %v891 = vpow.pop %v890
    %v892 = vsel %vm130, %v891, 0.0
    %893 = vadd.xlane.f32.xlu0 %v892
    %v894 = vpop.xlane.xlu0 %893
    %v895 = vrcp.pop %v894
    %v896 = vmul.f32 %v891, %v895
    %897 = vrot.lane.b32.xlu0 %v124, 64
    %v898 = vpop.permute.xlu0 %897
    %v901 = vsel %vm130, %v896, 0
    %903 = vmatprep.subr.mxu0 0.0
    %904 = vmatpush1.msra.mxu0 %v898
    %905 = vmatprep.subr.mxu0 0.0
    %906 = vmatpush1.msra.mxu0 0.0
    %907 = vmatprep.subr.mxu0 0.0
    %908 = vmatpush1.msra.mxu0 0.0
    %909 = vmatprep.subr.mxu0 0.0
    %910 = vmatpush1.msra.mxu0 0.0
    %911 = vmatprep.subr.mxu0 0.0
    %912 = vmatpush1.msra.mxu0 0.0
    %913 = vmatprep.subr.mxu0 0.0
    %914 = vmatpush1.msra.mxu0 0.0
    %915 = vmatprep.subr.mxu0 0.0
    %916 = vmatpush1.msra.mxu0 0.0
    %917 = vmatprep.subr.mxu0 0.0
    %918 = vmatpush1.msra.mxu0 0.0
    %919 = vmatprep.subr.mxu0 0.0
    %920 = vmatpush1.msra.mxu0 0.0
    %921 = vmatprep.subr.mxu0 0.0
    %922 = vmatpush1.msra.mxu0 0.0
    %923 = vmatprep.subr.mxu0 0.0
    %924 = vmatpush1.msra.mxu0 0.0
    %925 = vmatprep.subr.mxu0 0.0
    %926 = vmatpush1.msra.mxu0 0.0
    %927 = vmatprep.subr.mxu0 0.0
    %928 = vmatpush1.msra.mxu0 0.0
    %929 = vmatprep.subr.mxu0 0.0
    %930 = vmatpush1.msra.mxu0 0.0
    %931 = vmatprep.subr.mxu0 0.0
    %932 = vmatpush1.msra.mxu0 0.0
    %933 = vmatprep.subr.mxu0 0.0
    %934 = vmatpush1.msra.mxu0 0.0
    %935 = vmatprep.subr.mxu0 0.0
    %936 = vmatpush1.msra.mxu0 0.0
    %937 = vmatprep.subr.mxu0 0.0
    %938 = vmatpush1.msra.mxu0 0.0
    %939 = vmatprep.subr.mxu0 0.0
    %940 = vmatpush1.msra.mxu0 0.0
    %941 = vmatprep.subr.mxu0 0.0
    %942 = vmatpush1.msra.mxu0 0.0
    %943 = vmatprep.subr.mxu0 0.0
    %944 = vmatpush1.msra.mxu0 0.0
    %945 = vmatprep.subr.mxu0 0.0
    %946 = vmatpush1.msra.mxu0 0.0
    %947 = vmatprep.subr.mxu0 0.0
    %948 = vmatpush1.msra.mxu0 0.0
    %949 = vmatprep.subr.mxu0 0.0
    %950 = vmatpush1.msra.mxu0 0.0
    %951 = vmatprep.subr.mxu0 0.0
    %952 = vmatpush1.msra.mxu0 0.0
    %953 = vmatprep.subr.mxu0 0.0
    %954 = vmatpush1.msra.mxu0 0.0
    %955 = vmatprep.subr.mxu0 0.0
    %956 = vmatpush1.msra.mxu0 0.0
    %957 = vmatprep.subr.mxu0 0.0
    %958 = vmatpush1.msra.mxu0 0.0
    %959 = vmatprep.subr.mxu0 0.0
    %960 = vmatpush1.msra.mxu0 0.0
    %961 = vmatprep.subr.mxu0 0.0
    %962 = vmatpush1.msra.mxu0 0.0
    %963 = vmatprep.subr.mxu0 0.0
    %964 = vmatpush1.msra.mxu0 0.0
    %965 = vmatprep.subr.mxu0 0.0
    %966 = vmatpush1.msra.mxu0 0.0
    %967 = vmatprep.mubr.f32.mxu0 0.0
    %968 = vmatmul.mubr.f32.gmra.mrb[0].mxu0 %v901
    %v969 = vpop.f32.mrb[0].mxu0
    %v970 = vadd.f32 0.0, %v969
    %v971 = vpop.f32.mrb[0].mxu0
    %972 = vdwg.mxu0
    %973 = vrot.lane.b32.xlu0 %v124, 120
    %v974 = vpop.permute.xlu0 %973
    %975 = vrot.lane.b32.xlu0 %v124, 88
    %v976 = vpop.permute.xlu0 %975
    %v977 = vsel %vm130, %v974, 0
    %v979 = vsel %vm130, %v976, 0
    %981 = vmatprep.subr.mxu0 0.0
    %982 = vmatpush1.xpose.msra.mxu0 %v979
    %983 = vmatprep.subr.mxu0 0.0
    %984 = vmatpush1.xpose.msra.mxu0 0.0
    %985 = vmatprep.subr.mxu0 0.0
    %986 = vmatpush1.xpose.msra.mxu0 0.0
    %987 = vmatprep.subr.mxu0 0.0
    %988 = vmatpush1.xpose.msra.mxu0 0.0
    %989 = vmatprep.subr.mxu0 0.0
    %990 = vmatpush1.xpose.msra.mxu0 0.0
    %991 = vmatprep.subr.mxu0 0.0
    %992 = vmatpush1.xpose.msra.mxu0 0.0
    %993 = vmatprep.subr.mxu0 0.0
    %994 = vmatpush1.xpose.msra.mxu0 0.0
    %995 = vmatprep.subr.mxu0 0.0
    %996 = vmatpush1.xpose.msra.mxu0 0.0
    %997 = vmatprep.subr.mxu0 0.0
    %998 = vmatpush1.xpose.msra.mxu0 0.0
    %999 = vmatprep.subr.mxu0 0.0
    %1000 = vmatpush1.xpose.msra.mxu0 0.0
    %1001 = vmatprep.subr.mxu0 0.0
    %1002 = vmatpush1.xpose.msra.mxu0 0.0
    %1003 = vmatprep.subr.mxu0 0.0
    %1004 = vmatpush1.xpose.msra.mxu0 0.0
    %1005 = vmatprep.subr.mxu0 0.0
    %1006 = vmatpush1.xpose.msra.mxu0 0.0
    %1007 = vmatprep.subr.mxu0 0.0
    %1008 = vmatpush1.xpose.msra.mxu0 0.0
    %1009 = vmatprep.subr.mxu0 0.0
    %1010 = vmatpush1.xpose.msra.mxu0 0.0
    %1011 = vmatprep.subr.mxu0 0.0
    %1012 = vmatpush1.xpose.msra.mxu0 0.0
    %1013 = vmatprep.subr.mxu0 0.0
    %1014 = vmatpush1.xpose.msra.mxu0 0.0
    %1015 = vmatprep.subr.mxu0 0.0
    %1016 = vmatpush1.xpose.msra.mxu0 0.0
    %1017 = vmatprep.subr.mxu0 0.0
    %1018 = vmatpush1.xpose.msra.mxu0 0.0
    %1019 = vmatprep.subr.mxu0 0.0
    %1020 = vmatpush1.xpose.msra.mxu0 0.0
    %1021 = vmatprep.subr.mxu0 0.0
    %1022 = vmatpush1.xpose.msra.mxu0 0.0
    %1023 = vmatprep.subr.mxu0 0.0
    %1024 = vmatpush1.xpose.msra.mxu0 0.0
    %1025 = vmatprep.subr.mxu0 0.0
    %1026 = vmatpush1.xpose.msra.mxu0 0.0
    %1027 = vmatprep.subr.mxu0 0.0
    %1028 = vmatpush1.xpose.msra.mxu0 0.0
    %1029 = vmatprep.subr.mxu0 0.0
    %1030 = vmatpush1.xpose.msra.mxu0 0.0
    %1031 = vmatprep.subr.mxu0 0.0
    %1032 = vmatpush1.xpose.msra.mxu0 0.0
    %1033 = vmatprep.subr.mxu0 0.0
    %1034 = vmatpush1.xpose.msra.mxu0 0.0
    %1035 = vmatprep.subr.mxu0 0.0
    %1036 = vmatpush1.xpose.msra.mxu0 0.0
    %1037 = vmatprep.subr.mxu0 0.0
    %1038 = vmatpush1.xpose.msra.mxu0 0.0
    %1039 = vmatprep.subr.mxu0 0.0
    %1040 = vmatpush1.xpose.msra.mxu0 0.0
    %1041 = vmatprep.subr.mxu0 0.0
    %1042 = vmatpush1.xpose.msra.mxu0 0.0
    %1043 = vmatprep.subr.mxu0 0.0
    %1044 = vmatpush1.xpose.msra.mxu0 0.0
    %1045 = vmatprep.mubr.f32.mxu0 0.0
    %1046 = vmatmul.mubr.f32.gmra.mrb[0].mxu0 %v977
    %v1047 = vpop.f32.mrb[0].mxu0
    %v1048 = vadd.f32 0.0, %v1047
    %v1049 = vpop.f32.mrb[0].mxu0
    %1050 = vdwg.mxu0
    %v1051 = vmul.f32 %v1048, 0.35355338
    %v1052 = vsel %vm130, %v1051, -inf
    %1053 = vmax.xlane.f32.xlu0 %v1052
    %v1054 = vpop.xlane.xlu0 %1053
    %v1055 = vsub.f32 %v1051, %v1054
    %v1056 = vmul.f32 %v1055, 1.442695
    %v1057 = vpow.pop %v1056
    %v1058 = vsel %vm130, %v1057, 0.0
    %1059 = vadd.xlane.f32.xlu0 %v1058
    %v1060 = vpop.xlane.xlu0 %1059
    %v1061 = vrcp.pop %v1060
    %v1062 = vmul.f32 %v1057, %v1061
    %1063 = vrot.lane.b32.xlu0 %v124, 56
    %v1064 = vpop.permute.xlu0 %1063
    %v1067 = vsel %vm130, %v1062, 0
    %1069 = vmatprep.subr.mxu0 0.0
    %1070 = vmatpush1.msra.mxu0 %v1064
    %1071 = vmatprep.subr.mxu0 0.0
    %1072 = vmatpush1.msra.mxu0 0.0
    %1073 = vmatprep.subr.mxu0 0.0
    %1074 = vmatpush1.msra.mxu0 0.0
    %1075 = vmatprep.subr.mxu0 0.0
    %1076 = vmatpush1.msra.mxu0 0.0
    %1077 = vmatprep.subr.mxu0 0.0
    %1078 = vmatpush1.msra.mxu0 0.0
    %1079 = vmatprep.subr.mxu0 0.0
    %1080 = vmatpush1.msra.mxu0 0.0
    %1081 = vmatprep.subr.mxu0 0.0
    %1082 = vmatpush1.msra.mxu0 0.0
    %1083 = vmatprep.subr.mxu0 0.0
    %1084 = vmatpush1.msra.mxu0 0.0
    %1085 = vmatprep.subr.mxu0 0.0
    %1086 = vmatpush1.msra.mxu0 0.0
    %1087 = vmatprep.subr.mxu0 0.0
    %1088 = vmatpush1.msra.mxu0 0.0
    %1089 = vmatprep.subr.mxu0 0.0
    %1090 = vmatpush1.msra.mxu0 0.0
    %1091 = vmatprep.subr.mxu0 0.0
    %1092 = vmatpush1.msra.mxu0 0.0
    %1093 = vmatprep.subr.mxu0 0.0
    %1094 = vmatpush1.msra.mxu0 0.0
    %1095 = vmatprep.subr.mxu0 0.0
    %1096 = vmatpush1.msra.mxu0 0.0
    %1097 = vmatprep.subr.mxu0 0.0
    %1098 = vmatpush1.msra.mxu0 0.0
    %1099 = vmatprep.subr.mxu0 0.0
    %1100 = vmatpush1.msra.mxu0 0.0
    %1101 = vmatprep.subr.mxu0 0.0
    %1102 = vmatpush1.msra.mxu0 0.0
    %1103 = vmatprep.subr.mxu0 0.0
    %1104 = vmatpush1.msra.mxu0 0.0
    %1105 = vmatprep.subr.mxu0 0.0
    %1106 = vmatpush1.msra.mxu0 0.0
    %1107 = vmatprep.subr.mxu0 0.0
    %1108 = vmatpush1.msra.mxu0 0.0
    %1109 = vmatprep.subr.mxu0 0.0
    %1110 = vmatpush1.msra.mxu0 0.0
    %1111 = vmatprep.subr.mxu0 0.0
    %1112 = vmatpush1.msra.mxu0 0.0
    %1113 = vmatprep.subr.mxu0 0.0
    %1114 = vmatpush1.msra.mxu0 0.0
    %1115 = vmatprep.subr.mxu0 0.0
    %1116 = vmatpush1.msra.mxu0 0.0
    %1117 = vmatprep.subr.mxu0 0.0
    %1118 = vmatpush1.msra.mxu0 0.0
    %1119 = vmatprep.subr.mxu0 0.0
    %1120 = vmatpush1.msra.mxu0 0.0
    %1121 = vmatprep.subr.mxu0 0.0
    %1122 = vmatpush1.msra.mxu0 0.0
    %1123 = vmatprep.subr.mxu0 0.0
    %1124 = vmatpush1.msra.mxu0 0.0
    %1125 = vmatprep.subr.mxu0 0.0
    %1126 = vmatpush1.msra.mxu0 0.0
    %1127 = vmatprep.subr.mxu0 0.0
    %1128 = vmatpush1.msra.mxu0 0.0
    %1129 = vmatprep.subr.mxu0 0.0
    %1130 = vmatpush1.msra.mxu0 0.0
    %1131 = vmatprep.subr.mxu0 0.0
    %1132 = vmatpush1.msra.mxu0 0.0
    %1133 = vmatprep.mubr.f32.mxu0 0.0
    %1134 = vmatmul.mubr.f32.gmra.mrb[0].mxu0 %v1067
    %v1135 = vpop.f32.mrb[0].mxu0
    %v1136 = vadd.f32 0.0, %v1135
    %v1137 = vpop.f32.mrb[0].mxu0
    %1138 = vdwg.mxu0
    %1139 = vrot.lane.b32.xlu0 %v124, 112
    %v1140 = vpop.permute.xlu0 %1139
    %1141 = vrot.lane.b32.xlu0 %v124, 80
    %v1142 = vpop.permute.xlu0 %1141
    %v1143 = vsel %vm130, %v1140, 0
    %v1145 = vsel %vm130, %v1142, 0
    %1147 = vmatprep.subr.mxu0 0.0
    %1148 = vmatpush1.xpose.msra.mxu0 %v1145
    %1149 = vmatprep.subr.mxu0 0.0
    %1150 = vmatpush1.xpose.msra.mxu0 0.0
    %1151 = vmatprep.subr.mxu0 0.0
    %1152 = vmatpush1.xpose.msra.mxu0 0.0
    %1153 = vmatprep.subr.mxu0 0.0
    %1154 = vmatpush1.xpose.msra.mxu0 0.0
    %1155 = vmatprep.subr.mxu0 0.0
    %1156 = vmatpush1.xpose.msra.mxu0 0.0
    %1157 = vmatprep.subr.mxu0 0.0
    %1158 = vmatpush1.xpose.msra.mxu0 0.0
    %1159 = vmatprep.subr.mxu0 0.0
    %1160 = vmatpush1.xpose.msra.mxu0 0.0
    %1161 = vmatprep.subr.mxu0 0.0
    %1162 = vmatpush1.xpose.msra.mxu0 0.0
    %1163 = vmatprep.subr.mxu0 0.0
    %1164 = vmatpush1.xpose.msra.mxu0 0.0
    %1165 = vmatprep.subr.mxu0 0.0
    %1166 = vmatpush1.xpose.msra.mxu0 0.0
    %1167 = vmatprep.subr.mxu0 0.0
    %1168 = vmatpush1.xpose.msra.mxu0 0.0
    %1169 = vmatprep.subr.mxu0 0.0
    %1170 = vmatpush1.xpose.msra.mxu0 0.0
    %1171 = vmatprep.subr.mxu0 0.0
    %1172 = vmatpush1.xpose.msra.mxu0 0.0
    %1173 = vmatprep.subr.mxu0 0.0
    %1174 = vmatpush1.xpose.msra.mxu0 0.0
    %1175 = vmatprep.subr.mxu0 0.0
    %1176 = vmatpush1.xpose.msra.mxu0 0.0
    %1177 = vmatprep.subr.mxu0 0.0
    %1178 = vmatpush1.xpose.msra.mxu0 0.0
    %1179 = vmatprep.subr.mxu0 0.0
    %1180 = vmatpush1.xpose.msra.mxu0 0.0
    %1181 = vmatprep.subr.mxu0 0.0
    %1182 = vmatpush1.xpose.msra.mxu0 0.0
    %1183 = vmatprep.subr.mxu0 0.0
    %1184 = vmatpush1.xpose.msra.mxu0 0.0
    %1185 = vmatprep.subr.mxu0 0.0
    %1186 = vmatpush1.xpose.msra.mxu0 0.0
    %1187 = vmatprep.subr.mxu0 0.0
    %1188 = vmatpush1.xpose.msra.mxu0 0.0
    %1189 = vmatprep.subr.mxu0 0.0
    %1190 = vmatpush1.xpose.msra.mxu0 0.0
    %1191 = vmatprep.subr.mxu0 0.0
    %1192 = vmatpush1.xpose.msra.mxu0 0.0
    %1193 = vmatprep.subr.mxu0 0.0
    %1194 = vmatpush1.xpose.msra.mxu0 0.0
    %1195 = vmatprep.subr.mxu0 0.0
    %1196 = vmatpush1.xpose.msra.mxu0 0.0
    %1197 = vmatprep.subr.mxu0 0.0
    %1198 = vmatpush1.xpose.msra.mxu0 0.0
    %1199 = vmatprep.subr.mxu0 0.0
    %1200 = vmatpush1.xpose.msra.mxu0 0.0
    %1201 = vmatprep.subr.mxu0 0.0
    %1202 = vmatpush1.xpose.msra.mxu0 0.0
    %1203 = vmatprep.subr.mxu0 0.0
    %1204 = vmatpush1.xpose.msra.mxu0 0.0
    %1205 = vmatprep.subr.mxu0 0.0
    %1206 = vmatpush1.xpose.msra.mxu0 0.0
    %1207 = vmatprep.subr.mxu0 0.0
    %1208 = vmatpush1.xpose.msra.mxu0 0.0
    %1209 = vmatprep.subr.mxu0 0.0
    %1210 = vmatpush1.xpose.msra.mxu0 0.0
    %1211 = vmatprep.mubr.f32.mxu0 0.0
    %1212 = vmatmul.mubr.f32.gmra.mrb[0].mxu0 %v1143
    %v1213 = vpop.f32.mrb[0].mxu0
    %v1214 = vadd.f32 0.0, %v1213
    %v1215 = vpop.f32.mrb[0].mxu0
    %1216 = vdwg.mxu0
    %v1217 = vmul.f32 %v1214, 0.35355338
    %v1218 = vsel %vm130, %v1217, -inf
    %1219 = vmax.xlane.f32.xlu0 %v1218
    %v1220 = vpop.xlane.xlu0 %1219
    %v1221 = vsub.f32 %v1217, %v1220
    %v1222 = vmul.f32 %v1221, 1.442695
    %v1223 = vpow.pop %v1222
    %v1224 = vsel %vm130, %v1223, 0.0
    %1225 = vadd.xlane.f32.xlu0 %v1224
    %v1226 = vpop.xlane.xlu0 %1225
    %v1227 = vrcp.pop %v1226
    %v1228 = vmul.f32 %v1223, %v1227
    %1229 = vrot.lane.b32.xlu0 %v124, 48
    %v1230 = vpop.permute.xlu0 %1229
    %v1233 = vsel %vm130, %v1228, 0
    %1235 = vmatprep.subr.mxu0 0.0
    %1236 = vmatpush1.msra.mxu0 %v1230
    %1237 = vmatprep.subr.mxu0 0.0
    %1238 = vmatpush1.msra.mxu0 0.0
    %1239 = vmatprep.subr.mxu0 0.0
    %1240 = vmatpush1.msra.mxu0 0.0
    %1241 = vmatprep.subr.mxu0 0.0
    %1242 = vmatpush1.msra.mxu0 0.0
    %1243 = vmatprep.subr.mxu0 0.0
    %1244 = vmatpush1.msra.mxu0 0.0
    %1245 = vmatprep.subr.mxu0 0.0
    %1246 = vmatpush1.msra.mxu0 0.0
    %1247 = vmatprep.subr.mxu0 0.0
    %1248 = vmatpush1.msra.mxu0 0.0
    %1249 = vmatprep.subr.mxu0 0.0
    %1250 = vmatpush1.msra.mxu0 0.0
    %1251 = vmatprep.subr.mxu0 0.0
    %1252 = vmatpush1.msra.mxu0 0.0
    %1253 = vmatprep.subr.mxu0 0.0
    %1254 = vmatpush1.msra.mxu0 0.0
    %1255 = vmatprep.subr.mxu0 0.0
    %1256 = vmatpush1.msra.mxu0 0.0
    %1257 = vmatprep.subr.mxu0 0.0
    %1258 = vmatpush1.msra.mxu0 0.0
    %1259 = vmatprep.subr.mxu0 0.0
    %1260 = vmatpush1.msra.mxu0 0.0
    %1261 = vmatprep.subr.mxu0 0.0
    %1262 = vmatpush1.msra.mxu0 0.0
    %1263 = vmatprep.subr.mxu0 0.0
    %1264 = vmatpush1.msra.mxu0 0.0
    %1265 = vmatprep.subr.mxu0 0.0
    %1266 = vmatpush1.msra.mxu0 0.0
    %1267 = vmatprep.subr.mxu0 0.0
    %1268 = vmatpush1.msra.mxu0 0.0
    %1269 = vmatprep.subr.mxu0 0.0
    %1270 = vmatpush1.msra.mxu0 0.0
    %1271 = vmatprep.subr.mxu0 0.0
    %1272 = vmatpush1.msra.mxu0 0.0
    %1273 = vmatprep.subr.mxu0 0.0
    %1274 = vmatpush1.msra.mxu0 0.0
    %1275 = vmatprep.subr.mxu0 0.0
    %1276 = vmatpush1.msra.mxu0 0.0
    %1277 = vmatprep.subr.mxu0 0.0
    %1278 = vmatpush1.msra.mxu0 0.0
    %1279 = vmatprep.subr.mxu0 0.0
    %1280 = vmatpush1.msra.mxu0 0.0
    %1281 = vmatprep.subr.mxu0 0.0
    %1282 = vmatpush1.msra.mxu0 0.0
    %1283 = vmatprep.subr.mxu0 0.0
    %1284 = vmatpush1.msra.mxu0 0.0
    %1285 = vmatprep.subr.mxu0 0.0
    %1286 = vmatpush1.msra.mxu0 0.0
    %1287 = vmatprep.subr.mxu0 0.0
    %1288 = vmatpush1.msra.mxu0 0.0
    %1289 = vmatprep.subr.mxu0 0.0
    %1290 = vmatpush1.msra.mxu0 0.0
    %1291 = vmatprep.subr.mxu0 0.0
    %1292 = vmatpush1.msra.mxu0 0.0
    %1293 = vmatprep.subr.mxu0 0.0
    %1294 = vmatpush1.msra.mxu0 0.0
    %1295 = vmatprep.subr.mxu0 0.0
    %1296 = vmatpush1.msra.mxu0 0.0
    %1297 = vmatprep.subr.mxu0 0.0
    %1298 = vmatpush1.msra.mxu0 0.0
    %1299 = vmatprep.mubr.f32.mxu0 0.0
    %1300 = vmatmul.mubr.f32.gmra.mrb[0].mxu0 %v1233
    %v1301 = vpop.f32.mrb[0].mxu0
    %v1302 = vadd.f32 0.0, %v1301
    %v1303 = vpop.f32.mrb[0].mxu0
    %1304 = vdwg.mxu0
    %1305 = vrot.lane.b32.xlu0 %v124, 104
    %v1306 = vpop.permute.xlu0 %1305
    %1307 = vrot.lane.b32.xlu0 %v124, 72
    %v1308 = vpop.permute.xlu0 %1307
    %v1309 = vsel %vm130, %v1306, 0
    %v1311 = vsel %vm130, %v1308, 0
    %1313 = vmatprep.subr.mxu0 0.0
    %1314 = vmatpush1.xpose.msra.mxu0 %v1311
    %1315 = vmatprep.subr.mxu0 0.0
    %1316 = vmatpush1.xpose.msra.mxu0 0.0
    %1317 = vmatprep.subr.mxu0 0.0
    %1318 = vmatpush1.xpose.msra.mxu0 0.0
    %1319 = vmatprep.subr.mxu0 0.0
    %1320 = vmatpush1.xpose.msra.mxu0 0.0
    %1321 = vmatprep.subr.mxu0 0.0
    %1322 = vmatpush1.xpose.msra.mxu0 0.0
    %1323 = vmatprep.subr.mxu0 0.0
    %1324 = vmatpush1.xpose.msra.mxu0 0.0
    %1325 = vmatprep.subr.mxu0 0.0
    %1326 = vmatpush1.xpose.msra.mxu0 0.0
    %1327 = vmatprep.subr.mxu0 0.0
    %1328 = vmatpush1.xpose.msra.mxu0 0.0
    %1329 = vmatprep.subr.mxu0 0.0
    %1330 = vmatpush1.xpose.msra.mxu0 0.0
    %1331 = vmatprep.subr.mxu0 0.0
    %1332 = vmatpush1.xpose.msra.mxu0 0.0
    %1333 = vmatprep.subr.mxu0 0.0
    %1334 = vmatpush1.xpose.msra.mxu0 0.0
    %1335 = vmatprep.subr.mxu0 0.0
    %1336 = vmatpush1.xpose.msra.mxu0 0.0
    %1337 = vmatprep.subr.mxu0 0.0
    %1338 = vmatpush1.xpose.msra.mxu0 0.0
    %1339 = vmatprep.subr.mxu0 0.0
    %1340 = vmatpush1.xpose.msra.mxu0 0.0
    %1341 = vmatprep.subr.mxu0 0.0
    %1342 = vmatpush1.xpose.msra.mxu0 0.0
    %1343 = vmatprep.subr.mxu0 0.0
    %1344 = vmatpush1.xpose.msra.mxu0 0.0
    %1345 = vmatprep.subr.mxu0 0.0
    %1346 = vmatpush1.xpose.msra.mxu0 0.0
    %1347 = vmatprep.subr.mxu0 0.0
    %1348 = vmatpush1.xpose.msra.mxu0 0.0
    %1349 = vmatprep.subr.mxu0 0.0
    %1350 = vmatpush1.xpose.msra.mxu0 0.0
    %1351 = vmatprep.subr.mxu0 0.0
    %1352 = vmatpush1.xpose.msra.mxu0 0.0
    %1353 = vmatprep.subr.mxu0 0.0
    %1354 = vmatpush1.xpose.msra.mxu0 0.0
    %1355 = vmatprep.subr.mxu0 0.0
    %1356 = vmatpush1.xpose.msra.mxu0 0.0
    %1357 = vmatprep.subr.mxu0 0.0
    %1358 = vmatpush1.xpose.msra.mxu0 0.0
    %1359 = vmatprep.subr.mxu0 0.0
    %1360 = vmatpush1.xpose.msra.mxu0 0.0
    %1361 = vmatprep.subr.mxu0 0.0
    %1362 = vmatpush1.xpose.msra.mxu0 0.0
    %1363 = vmatprep.subr.mxu0 0.0
    %1364 = vmatpush1.xpose.msra.mxu0 0.0
    %1365 = vmatprep.subr.mxu0 0.0
    %1366 = vmatpush1.xpose.msra.mxu0 0.0
    %1367 = vmatprep.subr.mxu0 0.0
    %1368 = vmatpush1.xpose.msra.mxu0 0.0
    %1369 = vmatprep.subr.mxu0 0.0
    %1370 = vmatpush1.xpose.msra.mxu0 0.0
    %1371 = vmatprep.subr.mxu0 0.0
    %1372 = vmatpush1.xpose.msra.mxu0 0.0
    %1373 = vmatprep.subr.mxu0 0.0
    %1374 = vmatpush1.xpose.msra.mxu0 0.0
    %1375 = vmatprep.subr.mxu0 0.0
    %1376 = vmatpush1.xpose.msra.mxu0 0.0
    %1377 = vmatprep.mubr.f32.mxu0 0.0
    %1378 = vmatmul.mubr.f32.gmra.mrb[0].mxu0 %v1309
    %v1379 = vpop.f32.mrb[0].mxu0
    %v1380 = vadd.f32 0.0, %v1379
    %v1381 = vpop.f32.mrb[0].mxu0
    %1382 = vdwg.mxu0
    %v1383 = vmul.f32 %v1380, 0.35355338
    %v1384 = vsel %vm130, %v1383, -inf
    %1385 = vmax.xlane.f32.xlu0 %v1384
    %v1386 = vpop.xlane.xlu0 %1385
    %v1387 = vsub.f32 %v1383, %v1386
    %v1388 = vmul.f32 %v1387, 1.442695
    %v1389 = vpow.pop %v1388
    %v1390 = vsel %vm130, %v1389, 0.0
    %1391 = vadd.xlane.f32.xlu0 %v1390
    %v1392 = vpop.xlane.xlu0 %1391
    %v1393 = vrcp.pop %v1392
    %v1394 = vmul.f32 %v1389, %v1393
    %1395 = vrot.lane.b32.xlu0 %v124, 40
    %v1396 = vpop.permute.xlu0 %1395
    %v1399 = vsel %vm130, %v1394, 0
    %1401 = vmatprep.subr.mxu0 0.0
    %1402 = vmatpush1.msra.mxu0 %v1396
    %1403 = vmatprep.subr.mxu0 0.0
    %1404 = vmatpush1.msra.mxu0 0.0
    %1405 = vmatprep.subr.mxu0 0.0
    %1406 = vmatpush1.msra.mxu0 0.0
    %1407 = vmatprep.subr.mxu0 0.0
    %1408 = vmatpush1.msra.mxu0 0.0
    %1409 = vmatprep.subr.mxu0 0.0
    %1410 = vmatpush1.msra.mxu0 0.0
    %1411 = vmatprep.subr.mxu0 0.0
    %1412 = vmatpush1.msra.mxu0 0.0
    %1413 = vmatprep.subr.mxu0 0.0
    %1414 = vmatpush1.msra.mxu0 0.0
    %1415 = vmatprep.subr.mxu0 0.0
    %1416 = vmatpush1.msra.mxu0 0.0
    %1417 = vmatprep.subr.mxu0 0.0
    %1418 = vmatpush1.msra.mxu0 0.0
    %1419 = vmatprep.subr.mxu0 0.0
    %1420 = vmatpush1.msra.mxu0 0.0
    %1421 = vmatprep.subr.mxu0 0.0
    %1422 = vmatpush1.msra.mxu0 0.0
    %1423 = vmatprep.subr.mxu0 0.0
    %1424 = vmatpush1.msra.mxu0 0.0
    %1425 = vmatprep.subr.mxu0 0.0
    %1426 = vmatpush1.msra.mxu0 0.0
    %1427 = vmatprep.subr.mxu0 0.0
    %1428 = vmatpush1.msra.mxu0 0.0
    %1429 = vmatprep.subr.mxu0 0.0
    %1430 = vmatpush1.msra.mxu0 0.0
    %1431 = vmatprep.subr.mxu0 0.0
    %1432 = vmatpush1.msra.mxu0 0.0
    %1433 = vmatprep.subr.mxu0 0.0
    %1434 = vmatpush1.msra.mxu0 0.0
    %1435 = vmatprep.subr.mxu0 0.0
    %1436 = vmatpush1.msra.mxu0 0.0
    %1437 = vmatprep.subr.mxu0 0.0
    %1438 = vmatpush1.msra.mxu0 0.0
    %1439 = vmatprep.subr.mxu0 0.0
    %1440 = vmatpush1.msra.mxu0 0.0
    %1441 = vmatprep.subr.mxu0 0.0
    %1442 = vmatpush1.msra.mxu0 0.0
    %1443 = vmatprep.subr.mxu0 0.0
    %1444 = vmatpush1.msra.mxu0 0.0
    %1445 = vmatprep.subr.mxu0 0.0
    %1446 = vmatpush1.msra.mxu0 0.0
    %1447 = vmatprep.subr.mxu0 0.0
    %1448 = vmatpush1.msra.mxu0 0.0
    %1449 = vmatprep.subr.mxu0 0.0
    %1450 = vmatpush1.msra.mxu0 0.0
    %1451 = vmatprep.subr.mxu0 0.0
    %1452 = vmatpush1.msra.mxu0 0.0
    %1453 = vmatprep.subr.mxu0 0.0
    %1454 = vmatpush1.msra.mxu0 0.0
    %1455 = vmatprep.subr.mxu0 0.0
    %1456 = vmatpush1.msra.mxu0 0.0
    %1457 = vmatprep.subr.mxu0 0.0
    %1458 = vmatpush1.msra.mxu0 0.0
    %1459 = vmatprep.subr.mxu0 0.0
    %1460 = vmatpush1.msra.mxu0 0.0
    %1461 = vmatprep.subr.mxu0 0.0
    %1462 = vmatpush1.msra.mxu0 0.0
    %1463 = vmatprep.subr.mxu0 0.0
    %1464 = vmatpush1.msra.mxu0 0.0
    %1465 = vmatprep.mubr.f32.mxu0 0.0
    %1466 = vmatmul.mubr.f32.gmra.mrb[0].mxu0 %v1399
    %v1467 = vpop.f32.mrb[0].mxu0
    %v1468 = vadd.f32 0.0, %v1467
    %v1469 = vpop.f32.mrb[0].mxu0
    %1470 = vdwg.mxu0
    %1472 = vrot.lane.b32.xlu0 %v1136, 8
    %v1473 = vpop.permute.xlu0 %1472
    %1476 = vrot.lane.b32.xlu0 %v1302, 16
    %v1477 = vpop.permute.xlu0 %1476
    %1480 = vrot.lane.b32.xlu0 %v1468, 24
    %v1481 = vpop.permute.xlu0 %1480
    %v1483 = vsel %vm130, %v970, %v1473
    %v1484 = vsel %vm804, %v1483, %v1477
    %v1485 = vsel %vm806, %v1484, %v1481
    %v1486 = vpack.c.bf16 %v1485, %v807
    %v1487 = vlaneseq
    %v1488 = vshrl.u32 %v1487, 7
    %v1489 = vsub.s32 1, %v1488
    %v1490 = vrot.slane %v64, %v1489
    %v1495 = vunpack.c.l.b16 %v48
    %v1496 = vunpack.c.l.b16 %v49
    %v1497 = vunpack.c.l.b16 %v50
    %v1498 = vunpack.c.l.b16 %v51
    %v1499 = vpack.c.b16 %v1496, %v1495
    %v1500 = vpack.c.b16 %v1498, %v1497
    %v1504 = vsel %vm82, %v1486, 0
    %1506 = vmatprep.subr.bf16.mxu0 0
    %1507 = vmatpush1.bf16.msra.mxu0 %v1499
    %1508 = vmatprep.subr.bf16.mxu0 0
    %1509 = vmatpush1.bf16.msra.mxu0 %v1500
    %1510 = vmatprep.subr.bf16.mxu0 0
    %1511 = vmatpush1.bf16.msra.mxu0 0
    %1512 = vmatprep.subr.bf16.mxu0 0
    %1513 = vmatpush1.bf16.msra.mxu0 0
    %1514 = vmatprep.subr.bf16.mxu0 0
    %1515 = vmatpush1.bf16.msra.mxu0 0
    %1516 = vmatprep.subr.bf16.mxu0 0
    %1517 = vmatpush1.bf16.msra.mxu0 0
    %1518 = vmatprep.subr.bf16.mxu0 0
    %1519 = vmatpush1.bf16.msra.mxu0 0
    %1520 = vmatprep.subr.bf16.mxu0 0
    %1521 = vmatpush1.bf16.msra.mxu0 0
    %1522 = vmatprep.subr.bf16.mxu0 0
    %1523 = vmatpush1.bf16.msra.mxu0 0
    %1524 = vmatprep.subr.bf16.mxu0 0
    %1525 = vmatpush1.bf16.msra.mxu0 0
    %1526 = vmatprep.subr.bf16.mxu0 0
    %1527 = vmatpush1.bf16.msra.mxu0 0
    %1528 = vmatprep.subr.bf16.mxu0 0
    %1529 = vmatpush1.bf16.msra.mxu0 0
    %1530 = vmatprep.subr.bf16.mxu0 0
    %1531 = vmatpush1.bf16.msra.mxu0 0
    %1532 = vmatprep.subr.bf16.mxu0 0
    %1533 = vmatpush1.bf16.msra.mxu0 0
    %1534 = vmatprep.subr.bf16.mxu0 0
    %1535 = vmatpush1.bf16.msra.mxu0 0
    %1536 = vmatprep.subr.bf16.mxu0 0
    %1537 = vmatpush1.bf16.msra.mxu0 0
    %1538 = vmatprep.mubr.bf16.mxu0 0
    %1539 = vmatmul.mubr.bf16.gmra.mrb[0].mxu0 %v1504
    %v1540 = vpop.f32.mrb[0].mxu0
    %v1541 = vadd.f32 %v1490, %v1540
    %v1542 = vpop.f32.mrb[0].mxu0
    %v1543 = vpop.f32.mrb[0].mxu0
    %v1544 = vadd.f32 %v1490, %v1543
    %v1545 = vpop.f32.mrb[0].mxu0
    %1546 = vdwg.mxu0
    %v1547 = vadd.f32 %v42, %v1541
    %v1548 = vadd.f32 %v43, %v1544
    %v1549 = vsel %vm82, %v1547, 0.0
    %1550 = vadd.xlane.f32.xlu0 %v1549
    %v1551 = vpop.xlane.xlu0 %1550
    %v1552 = vsel %vm82, %v1548, 0.0
    %1553 = vadd.xlane.f32.xlu0 %v1552
    %v1554 = vpop.xlane.xlu0 %1553
    %v1555 = vrcp.pop 32.0
    %v1556 = vmul.f32 %v1551, %v1555
    %v1557 = vmul.f32 %v1554, %v1555
    %v1558 = vsub.f32 %v1547, %v1556
    %v1559 = vsub.f32 %v1548, %v1557
    %v1560 = vmul.f32 %v1558, %v1558
    %v1561 = vmul.f32 %v1559, %v1559
    %v1562 = vsel %vm82, %v1560, 0.0
    %1563 = vadd.xlane.f32.xlu0 %v1562
    %v1564 = vpop.xlane.xlu0 %1563
    %v1565 = vsel %vm82, %v1561, 0.0
    %1566 = vadd.xlane.f32.xlu0 %v1565
    %v1567 = vpop.xlane.xlu0 %1566
    %v1568 = vmul.f32 %v1564, %v1555
    %v1569 = vmul.f32 %v1567, %v1555
    %v1570 = vadd.f32 %v1568, 1e-05
    %v1571 = vadd.f32 %v1569, 1e-05
    %v1572 = vrsqrt.pop %v1570
    %v1573 = vrsqrt.pop %v1571
    %v1574 = vmul.f32 %v1558, %v1572
    %v1575 = vmul.f32 %v1559, %v1573
    %v1576 = vlaneseq
    %v1577 = vshrl.u32 %v1576, 7
    %v1578 = vsub.s32 4, %v1577
    %v1579 = vrot.slane %v64, %v1578
    %v1580 = vmul.f32 %v1574, %v1579
    %v1581 = vmul.f32 %v1575, %v1579
    %v1582 = vlaneseq
    %v1583 = vshrl.u32 %v1582, 7
    %v1584 = vsub.s32 5, %v1583
    %v1585 = vrot.slane %v64, %v1584
    %v1586 = vadd.f32 %v1580, %v1585
    %v1587 = vadd.f32 %v1581, %v1585
    %v1588 = vpack.c.bf16 %v1587, %v1586
    %v1589 = vlaneseq
    %v1590 = vshrl.u32 %v1589, 7
    %v1591 = vsub.s32 2, %v1590
    %v1592 = vrot.slane %v64, %v1591
    %v1597 = vunpack.c.l.b16 %v52
    %v1598 = vunpack.c.l.b16 %v53
    %v1599 = vunpack.c.l.b16 %v54
    %v1600 = vunpack.c.l.b16 %v55
    %v1601 = vpack.c.b16 %v1598, %v1597
    %v1602 = vpack.c.b16 %v1600, %v1599
    %v1606 = vsel %vm82, %v1588, 0
    %1608 = vmatprep.subr.bf16.mxu0 0
    %1609 = vmatpush1.bf16.msra.mxu0 %v1601
    %1610 = vmatprep.subr.bf16.mxu0 0
    %1611 = vmatpush1.bf16.msra.mxu0 %v1602
    %1612 = vmatprep.subr.bf16.mxu0 0
    %1613 = vmatpush1.bf16.msra.mxu0 0
    %1614 = vmatprep.subr.bf16.mxu0 0
    %1615 = vmatpush1.bf16.msra.mxu0 0
    %1616 = vmatprep.subr.bf16.mxu0 0
    %1617 = vmatpush1.bf16.msra.mxu0 0
    %1618 = vmatprep.subr.bf16.mxu0 0
    %1619 = vmatpush1.bf16.msra.mxu0 0
    %1620 = vmatprep.subr.bf16.mxu0 0
    %1621 = vmatpush1.bf16.msra.mxu0 0
    %1622 = vmatprep.subr.bf16.mxu0 0
    %1623 = vmatpush1.bf16.msra.mxu0 0
    %1624 = vmatprep.subr.bf16.mxu0 0
    %1625 = vmatpush1.bf16.msra.mxu0 0
    %1626 = vmatprep.subr.bf16.mxu0 0
    %1627 = vmatpush1.bf16.msra.mxu0 0
    %1628 = vmatprep.subr.bf16.mxu0 0
    %1629 = vmatpush1.bf16.msra.mxu0 0
    %1630 = vmatprep.subr.bf16.mxu0 0
    %1631 = vmatpush1.bf16.msra.mxu0 0
    %1632 = vmatprep.subr.bf16.mxu0 0
    %1633 = vmatpush1.bf16.msra.mxu0 0
    %1634 = vmatprep.subr.bf16.mxu0 0
    %1635 = vmatpush1.bf16.msra.mxu0 0
    %1636 = vmatprep.subr.bf16.mxu0 0
    %1637 = vmatpush1.bf16.msra.mxu0 0
    %1638 = vmatprep.subr.bf16.mxu0 0
    %1639 = vmatpush1.bf16.msra.mxu0 0
    %1640 = vmatprep.mubr.bf16.mxu0 0
    %1641 = vmatmul.mubr.bf16.gmra.mrb[0].mxu0 %v1606
    %v1642 = vpop.f32.mrb[0].mxu0
    %v1643 = vadd.f32 %v1592, %v1642
    %v1644 = vpop.f32.mrb[0].mxu0
    %v1645 = vpop.f32.mrb[0].mxu0
    %v1646 = vadd.f32 %v1592, %v1645
    %v1647 = vpop.f32.mrb[0].mxu0
    %1648 = vdwg.mxu0
    %v1649 = vmax.f32 %v1643, 0.0
    %v1650 = vmax.f32 %v1646, 0.0
    %v1651 = vpack.c.bf16 %v1650, %v1649
    %v1652 = vlaneseq
    %v1653 = vshrl.u32 %v1652, 7
    %v1654 = vsub.s32 3, %v1653
    %v1655 = vrot.slane %v64, %v1654
    %v1664 = vunpack.c.l.b16 %v56
    %v1665 = vunpack.c.l.b16 %v57
    %v1666 = vunpack.c.l.b16 %v58
    %v1667 = vunpack.c.l.b16 %v59
    %v1668 = vunpack.c.l.b16 %v60
    %v1669 = vunpack.c.l.b16 %v61
    %v1670 = vunpack.c.l.b16 %v62
    %v1671 = vunpack.c.l.b16 %v63
    %v1672 = vpack.c.b16 %v1665, %v1664
    %v1673 = vpack.c.b16 %v1667, %v1666
    %v1674 = vpack.c.b16 %v1669, %v1668
    %v1675 = vpack.c.b16 %v1671, %v1670
    %vm1680 = vcmask 523264
    %v1682 = vsel %vm1680, %v1651, 0
    %1684 = vmatprep.subr.bf16.mxu0 0
    %1685 = vmatpush1.bf16.msra.mxu0 %v1672
    %1686 = vmatprep.subr.bf16.mxu0 0
    %1687 = vmatpush1.bf16.msra.mxu0 %v1673
    %1688 = vmatprep.subr.bf16.mxu0 0
    %1689 = vmatpush1.bf16.msra.mxu0 %v1674
    %1690 = vmatprep.subr.bf16.mxu0 0
    %1691 = vmatpush1.bf16.msra.mxu0 %v1675
    %1692 = vmatprep.subr.bf16.mxu0 0
    %1693 = vmatpush1.bf16.msra.mxu0 0
    %1694 = vmatprep.subr.bf16.mxu0 0
    %1695 = vmatpush1.bf16.msra.mxu0 0
    %1696 = vmatprep.subr.bf16.mxu0 0
    %1697 = vmatpush1.bf16.msra.mxu0 0
    %1698 = vmatprep.subr.bf16.mxu0 0
    %1699 = vmatpush1.bf16.msra.mxu0 0
    %1700 = vmatprep.subr.bf16.mxu0 0
    %1701 = vmatpush1.bf16.msra.mxu0 0
    %1702 = vmatprep.subr.bf16.mxu0 0
    %1703 = vmatpush1.bf16.msra.mxu0 0
    %1704 = vmatprep.subr.bf16.mxu0 0
    %1705 = vmatpush1.bf16.msra.mxu0 0
    %1706 = vmatprep.subr.bf16.mxu0 0
    %1707 = vmatpush1.bf16.msra.mxu0 0
    %1708 = vmatprep.subr.bf16.mxu0 0
    %1709 = vmatpush1.bf16.msra.mxu0 0
    %1710 = vmatprep.subr.bf16.mxu0 0
    %1711 = vmatpush1.bf16.msra.mxu0 0
    %1712 = vmatprep.subr.bf16.mxu0 0
    %1713 = vmatpush1.bf16.msra.mxu0 0
    %1714 = vmatprep.subr.bf16.mxu0 0
    %1715 = vmatpush1.bf16.msra.mxu0 0
    %1716 = vmatprep.mubr.bf16.mxu0 0
    %1717 = vmatmul.mubr.bf16.gmra.mrb[0].mxu0 %v1682
    %v1718 = vpop.f32.mrb[0].mxu0
    %v1719 = vadd.f32 %v1655, %v1718
    %v1720 = vpop.f32.mrb[0].mxu0
    %v1721 = vpop.f32.mrb[0].mxu0
    %v1722 = vadd.f32 %v1655, %v1721
    %v1723 = vpop.f32.mrb[0].mxu0
    %1724 = vdwg.mxu0
    %v1725 = vadd.f32 %v1586, %v1719
    %v1726 = vadd.f32 %v1587, %v1722
    %v1727 = vsel %vm82, %v1725, 0.0
    %1728 = vadd.xlane.f32.xlu0 %v1727
    %v1729 = vpop.xlane.xlu0 %1728
    %v1730 = vsel %vm82, %v1726, 0.0
    %1731 = vadd.xlane.f32.xlu0 %v1730
    %v1732 = vpop.xlane.xlu0 %1731
    %v1733 = vmul.f32 %v1729, %v1555
    %v1734 = vmul.f32 %v1732, %v1555
    %v1735 = vsub.f32 %v1725, %v1733
    %v1736 = vsub.f32 %v1726, %v1734
    %v1737 = vmul.f32 %v1735, %v1735
    %v1738 = vmul.f32 %v1736, %v1736
    %v1739 = vsel %vm82, %v1737, 0.0
    %1740 = vadd.xlane.f32.xlu0 %v1739
    %v1741 = vpop.xlane.xlu0 %1740
    %v1742 = vsel %vm82, %v1738, 0.0
    %1743 = vadd.xlane.f32.xlu0 %v1742
    %v1744 = vpop.xlane.xlu0 %1743
    %v1745 = vmul.f32 %v1741, %v1555
    %v1746 = vmul.f32 %v1744, %v1555
    %v1747 = vadd.f32 %v1745, 1e-05
    %v1748 = vadd.f32 %v1746, 1e-05
    %v1749 = vrsqrt.pop %v1747
    %v1750 = vrsqrt.pop %v1748
    %v1751 = vmul.f32 %v1735, %v1749
    %v1752 = vmul.f32 %v1736, %v1750
    %v1753 = vlaneseq
    %v1754 = vshrl.u32 %v1753, 7
    %v1755 = vsub.s32 6, %v1754
    %v1756 = vrot.slane %v64, %v1755
    %v1757 = vmul.f32 %v1751, %v1756
    %v1758 = vmul.f32 %v1752, %v1756
    %v1759 = vlaneseq
    %v1760 = vshrl.u32 %v1759, 7
    %v1761 = vsub.s32 7, %v1760
    %v1762 = vrot.slane %v64, %v1761
    %v1763 = vadd.f32 %v1757, %v1762
    %v1764 = vadd.f32 %v1758, %v1762
    %s1765 = scalar_lea.vmem %s1, 16
    %v1766 = vld [vmem:[%s1765] sm:$0xf]
    %v1767 = vld [vmem:[%s1765 + $0x4] sm:$0xf]
    %v1768 = vld [vmem:[%s1765 + $0x8] sm:$0xf]
    %v1769 = vld [vmem:[%s1765 + $0xc] sm:$0xf]
    %s1770 = scalar_lea.vmem %s2, 16
    %v1771 = vld [vmem:[%s1770] sm:$0xf]
    %v1772 = vld [vmem:[%s1770 + $0x4] sm:$0xf]
    %v1773 = vld [vmem:[%s1770 + $0x8] sm:$0xf]
    %v1774 = vld [vmem:[%s1770 + $0xc] sm:$0xf]
    %s1775 = scalar_lea.vmem %s3, 16
    %v1776 = vld [vmem:[%s1775] sm:$0xf]
    %v1777 = vld [vmem:[%s1775 + $0x4] sm:$0xf]
    %v1778 = vld [vmem:[%s1775 + $0x8] sm:$0xf]
    %v1779 = vld [vmem:[%s1775 + $0xc] sm:$0xf]
    %s1780 = scalar_lea.vmem %s4, 32
    %v1781 = vld [vmem:[%s1780] sm:$0xf]
    %v1782 = vld [vmem:[%s1780 + $0x4] sm:$0xf]
    %v1783 = vld [vmem:[%s1780 + $0x8] sm:$0xf]
    %v1784 = vld [vmem:[%s1780 + $0xc] sm:$0xf]
    %v1785 = vld [vmem:[%s1780 + $0x10] sm:$0xf]
    %v1786 = vld [vmem:[%s1780 + $0x14] sm:$0xf]
    %v1787 = vld [vmem:[%s1780 + $0x18] sm:$0xf]
    %v1788 = vld [vmem:[%s1780 + $0x1c] sm:$0xf]
    %s1789 = scalar_lea.vmem %s5, 8
    %v1790 = vld [vmem:[%s1789] sm:$0xff]
    %v1791 = vpack.c.bf16 %v1764, %v1763
    %v1792 = vlaneseq
    %v1793 = vshrl.u32 %v1792, 7
    %v1794 = vsub.s32 0, %v1793
    %v1795 = vrot.slane %v1790, %v1794
    %v1800 = vunpack.c.l.b16 %v1766
    %v1801 = vunpack.c.l.b16 %v1767
    %v1802 = vunpack.c.l.b16 %v1768
    %v1803 = vunpack.c.l.b16 %v1769
    %v1804 = vpack.c.b16 %v1801, %v1800
    %v1805 = vpack.c.b16 %v1803, %v1802
    %v1809 = vsel %vm82, %v1791, 0
    %1811 = vmatprep.subr.bf16.mxu0 0
    %1812 = vmatpush1.bf16.msra.mxu0 %v1804
    %1813 = vmatprep.subr.bf16.mxu0 0
    %1814 = vmatpush1.bf16.msra.mxu0 %v1805
    %1815 = vmatprep.subr.bf16.mxu0 0
    %1816 = vmatpush1.bf16.msra.mxu0 0
    %1817 = vmatprep.subr.bf16.mxu0 0
    %1818 = vmatpush1.bf16.msra.mxu0 0
    %1819 = vmatprep.subr.bf16.mxu0 0
    %1820 = vmatpush1.bf16.msra.mxu0 0
    %1821 = vmatprep.subr.bf16.mxu0 0
    %1822 = vmatpush1.bf16.msra.mxu0 0
    %1823 = vmatprep.subr.bf16.mxu0 0
    %1824 = vmatpush1.bf16.msra.mxu0 0
    %1825 = vmatprep.subr.bf16.mxu0 0
    %1826 = vmatpush1.bf16.msra.mxu0 0
    %1827 = vmatprep.subr.bf16.mxu0 0
    %1828 = vmatpush1.bf16.msra.mxu0 0
    %1829 = vmatprep.subr.bf16.mxu0 0
    %1830 = vmatpush1.bf16.msra.mxu0 0
    %1831 = vmatprep.subr.bf16.mxu0 0
    %1832 = vmatpush1.bf16.msra.mxu0 0
    %1833 = vmatprep.subr.bf16.mxu0 0
    %1834 = vmatpush1.bf16.msra.mxu0 0
    %1835 = vmatprep.subr.bf16.mxu0 0
    %1836 = vmatpush1.bf16.msra.mxu0 0
    %1837 = vmatprep.subr.bf16.mxu0 0
    %1838 = vmatpush1.bf16.msra.mxu0 0
    %1839 = vmatprep.subr.bf16.mxu0 0
    %1840 = vmatpush1.bf16.msra.mxu0 0
    %1841 = vmatprep.subr.bf16.mxu0 0
    %1842 = vmatpush1.bf16.msra.mxu0 0
    %1843 = vmatprep.mubr.bf16.mxu0 0
    %1844 = vmatmul.mubr.bf16.gmra.mrb[0].mxu0 %v1809
    %v1845 = vpop.f32.mrb[0].mxu0
    %v1846 = vadd.f32 %v1795, %v1845
    %v1847 = vpop.f32.mrb[0].mxu0
    %v1848 = vpop.f32.mrb[0].mxu0
    %v1849 = vadd.f32 %v1795, %v1848
    %v1850 = vpop.f32.mrb[0].mxu0
    %1851 = vdwg.mxu0
    %1853 = vrot.lane.b32.xlu0 %v1846, 96
    %v1854 = vpop.permute.xlu0 %1853
    %v1855 = vsel %vm130, %v1846, 0
    %v1857 = vsel %vm130, %v1854, 0
    %1859 = vmatprep.subr.mxu0 0.0
    %1860 = vmatpush1.xpose.msra.mxu0 %v1857
    %1861 = vmatprep.subr.mxu0 0.0
    %1862 = vmatpush1.xpose.msra.mxu0 0.0
    %1863 = vmatprep.subr.mxu0 0.0
    %1864 = vmatpush1.xpose.msra.mxu0 0.0
    %1865 = vmatprep.subr.mxu0 0.0
    %1866 = vmatpush1.xpose.msra.mxu0 0.0
    %1867 = vmatprep.subr.mxu0 0.0
    %1868 = vmatpush1.xpose.msra.mxu0 0.0
    %1869 = vmatprep.subr.mxu0 0.0
    %1870 = vmatpush1.xpose.msra.mxu0 0.0
    %1871 = vmatprep.subr.mxu0 0.0
    %1872 = vmatpush1.xpose.msra.mxu0 0.0
    %1873 = vmatprep.subr.mxu0 0.0
    %1874 = vmatpush1.xpose.msra.mxu0 0.0
    %1875 = vmatprep.subr.mxu0 0.0
    %1876 = vmatpush1.xpose.msra.mxu0 0.0
    %1877 = vmatprep.subr.mxu0 0.0
    %1878 = vmatpush1.xpose.msra.mxu0 0.0
    %1879 = vmatprep.subr.mxu0 0.0
    %1880 = vmatpush1.xpose.msra.mxu0 0.0
    %1881 = vmatprep.subr.mxu0 0.0
    %1882 = vmatpush1.xpose.msra.mxu0 0.0
    %1883 = vmatprep.subr.mxu0 0.0
    %1884 = vmatpush1.xpose.msra.mxu0 0.0
    %1885 = vmatprep.subr.mxu0 0.0
    %1886 = vmatpush1.xpose.msra.mxu0 0.0
    %1887 = vmatprep.subr.mxu0 0.0
    %1888 = vmatpush1.xpose.msra.mxu0 0.0
    %1889 = vmatprep.subr.mxu0 0.0
    %1890 = vmatpush1.xpose.msra.mxu0 0.0
    %1891 = vmatprep.subr.mxu0 0.0
    %1892 = vmatpush1.xpose.msra.mxu0 0.0
    %1893 = vmatprep.subr.mxu0 0.0
    %1894 = vmatpush1.xpose.msra.mxu0 0.0
    %1895 = vmatprep.subr.mxu0 0.0
    %1896 = vmatpush1.xpose.msra.mxu0 0.0
    %1897 = vmatprep.subr.mxu0 0.0
    %1898 = vmatpush1.xpose.msra.mxu0 0.0
    %1899 = vmatprep.subr.mxu0 0.0
    %1900 = vmatpush1.xpose.msra.mxu0 0.0
    %1901 = vmatprep.subr.mxu0 0.0
    %1902 = vmatpush1.xpose.msra.mxu0 0.0
    %1903 = vmatprep.subr.mxu0 0.0
    %1904 = vmatpush1.xpose.msra.mxu0 0.0
    %1905 = vmatprep.subr.mxu0 0.0
    %1906 = vmatpush1.xpose.msra.mxu0 0.0
    %1907 = vmatprep.subr.mxu0 0.0
    %1908 = vmatpush1.xpose.msra.mxu0 0.0
    %1909 = vmatprep.subr.mxu0 0.0
    %1910 = vmatpush1.xpose.msra.mxu0 0.0
    %1911 = vmatprep.subr.mxu0 0.0
    %1912 = vmatpush1.xpose.msra.mxu0 0.0
    %1913 = vmatprep.subr.mxu0 0.0
    %1914 = vmatpush1.xpose.msra.mxu0 0.0
    %1915 = vmatprep.subr.mxu0 0.0
    %1916 = vmatpush1.xpose.msra.mxu0 0.0
    %1917 = vmatprep.subr.mxu0 0.0
    %1918 = vmatpush1.xpose.msra.mxu0 0.0
    %1919 = vmatprep.subr.mxu0 0.0
    %1920 = vmatpush1.xpose.msra.mxu0 0.0
    %1921 = vmatprep.subr.mxu0 0.0
    %1922 = vmatpush1.xpose.msra.mxu0 0.0
    %1923 = vmatprep.mubr.f32.mxu0 0.0
    %1924 = vmatmul.mubr.f32.gmra.mrb[0].mxu0 %v1855
    %v1925 = vpop.f32.mrb[0].mxu0
    %v1926 = vadd.f32 0.0, %v1925
    %v1927 = vpop.f32.mrb[0].mxu0
    %1928 = vdwg.mxu0
    %v1929 = vmul.f32 %v1926, 0.35355338
    %v1930 = vsel %vm130, %v1929, -inf
    %1931 = vmax.xlane.f32.xlu0 %v1930
    %v1932 = vpop.xlane.xlu0 %1931
    %v1933 = vsub.f32 %v1929, %v1932
    %v1934 = vmul.f32 %v1933, 1.442695
    %v1935 = vpow.pop %v1934
    %v1936 = vsel %vm130, %v1935, 0.0
    %1937 = vadd.xlane.f32.xlu0 %v1936
    %v1938 = vpop.xlane.xlu0 %1937
    %v1939 = vrcp.pop %v1938
    %v1940 = vmul.f32 %v1935, %v1939
    %1941 = vrot.lane.b32.xlu0 %v1846, 64
    %v1942 = vpop.permute.xlu0 %1941
    %v1945 = vsel %vm130, %v1940, 0
    %1947 = vmatprep.subr.mxu0 0.0
    %1948 = vmatpush1.msra.mxu0 %v1942
    %1949 = vmatprep.subr.mxu0 0.0
    %1950 = vmatpush1.msra.mxu0 0.0
    %1951 = vmatprep.subr.mxu0 0.0
    %1952 = vmatpush1.msra.mxu0 0.0
    %1953 = vmatprep.subr.mxu0 0.0
    %1954 = vmatpush1.msra.mxu0 0.0
    %1955 = vmatprep.subr.mxu0 0.0
    %1956 = vmatpush1.msra.mxu0 0.0
    %1957 = vmatprep.subr.mxu0 0.0
    %1958 = vmatpush1.msra.mxu0 0.0
    %1959 = vmatprep.subr.mxu0 0.0
    %1960 = vmatpush1.msra.mxu0 0.0
    %1961 = vmatprep.subr.mxu0 0.0
    %1962 = vmatpush1.msra.mxu0 0.0
    %1963 = vmatprep.subr.mxu0 0.0
    %1964 = vmatpush1.msra.mxu0 0.0
    %1965 = vmatprep.subr.mxu0 0.0
    %1966 = vmatpush1.msra.mxu0 0.0
    %1967 = vmatprep.subr.mxu0 0.0
    %1968 = vmatpush1.msra.mxu0 0.0
    %1969 = vmatprep.subr.mxu0 0.0
    %1970 = vmatpush1.msra.mxu0 0.0
    %1971 = vmatprep.subr.mxu0 0.0
    %1972 = vmatpush1.msra.mxu0 0.0
    %1973 = vmatprep.subr.mxu0 0.0
    %1974 = vmatpush1.msra.mxu0 0.0
    %1975 = vmatprep.subr.mxu0 0.0
    %1976 = vmatpush1.msra.mxu0 0.0
    %1977 = vmatprep.subr.mxu0 0.0
    %1978 = vmatpush1.msra.mxu0 0.0
    %1979 = vmatprep.subr.mxu0 0.0
    %1980 = vmatpush1.msra.mxu0 0.0
    %1981 = vmatprep.subr.mxu0 0.0
    %1982 = vmatpush1.msra.mxu0 0.0
    %1983 = vmatprep.subr.mxu0 0.0
    %1984 = vmatpush1.msra.mxu0 0.0
    %1985 = vmatprep.subr.mxu0 0.0
    %1986 = vmatpush1.msra.mxu0 0.0
    %1987 = vmatprep.subr.mxu0 0.0
    %1988 = vmatpush1.msra.mxu0 0.0
    %1989 = vmatprep.subr.mxu0 0.0
    %1990 = vmatpush1.msra.mxu0 0.0
    %1991 = vmatprep.subr.mxu0 0.0
    %1992 = vmatpush1.msra.mxu0 0.0
    %1993 = vmatprep.subr.mxu0 0.0
    %1994 = vmatpush1.msra.mxu0 0.0
    %1995 = vmatprep.subr.mxu0 0.0
    %1996 = vmatpush1.msra.mxu0 0.0
    %1997 = vmatprep.subr.mxu0 0.0
    %1998 = vmatpush1.msra.mxu0 0.0
    %1999 = vmatprep.subr.mxu0 0.0
    %2000 = vmatpush1.msra.mxu0 0.0
    %2001 = vmatprep.subr.mxu0 0.0
    %2002 = vmatpush1.msra.mxu0 0.0
    %2003 = vmatprep.subr.mxu0 0.0
    %2004 = vmatpush1.msra.mxu0 0.0
    %2005 = vmatprep.subr.mxu0 0.0
    %2006 = vmatpush1.msra.mxu0 0.0
    %2007 = vmatprep.subr.mxu0 0.0
    %2008 = vmatpush1.msra.mxu0 0.0
    %2009 = vmatprep.subr.mxu0 0.0
    %2010 = vmatpush1.msra.mxu0 0.0
    %2011 = vmatprep.mubr.f32.mxu0 0.0
    %2012 = vmatmul.mubr.f32.gmra.mrb[0].mxu0 %v1945
    %v2013 = vpop.f32.mrb[0].mxu0
    %v2014 = vadd.f32 0.0, %v2013
    %v2015 = vpop.f32.mrb[0].mxu0
    %2016 = vdwg.mxu0
    %2017 = vrot.lane.b32.xlu0 %v1846, 120
    %v2018 = vpop.permute.xlu0 %2017
    %2019 = vrot.lane.b32.xlu0 %v1846, 88
    %v2020 = vpop.permute.xlu0 %2019
    %v2021 = vsel %vm130, %v2018, 0
    %v2023 = vsel %vm130, %v2020, 0
    %2025 = vmatprep.subr.mxu0 0.0
    %2026 = vmatpush1.xpose.msra.mxu0 %v2023
    %2027 = vmatprep.subr.mxu0 0.0
    %2028 = vmatpush1.xpose.msra.mxu0 0.0
    %2029 = vmatprep.subr.mxu0 0.0
    %2030 = vmatpush1.xpose.msra.mxu0 0.0
    %2031 = vmatprep.subr.mxu0 0.0
    %2032 = vmatpush1.xpose.msra.mxu0 0.0
    %2033 = vmatprep.subr.mxu0 0.0
    %2034 = vmatpush1.xpose.msra.mxu0 0.0
    %2035 = vmatprep.subr.mxu0 0.0
    %2036 = vmatpush1.xpose.msra.mxu0 0.0
    %2037 = vmatprep.subr.mxu0 0.0
    %2038 = vmatpush1.xpose.msra.mxu0 0.0
    %2039 = vmatprep.subr.mxu0 0.0
    %2040 = vmatpush1.xpose.msra.mxu0 0.0
    %2041 = vmatprep.subr.mxu0 0.0
    %2042 = vmatpush1.xpose.msra.mxu0 0.0
    %2043 = vmatprep.subr.mxu0 0.0
    %2044 = vmatpush1.xpose.msra.mxu0 0.0
    %2045 = vmatprep.subr.mxu0 0.0
    %2046 = vmatpush1.xpose.msra.mxu0 0.0
    %2047 = vmatprep.subr.mxu0 0.0
    %2048 = vmatpush1.xpose.msra.mxu0 0.0
    %2049 = vmatprep.subr.mxu0 0.0
    %2050 = vmatpush1.xpose.msra.mxu0 0.0
    %2051 = vmatprep.subr.mxu0 0.0
    %2052 = vmatpush1.xpose.msra.mxu0 0.0
    %2053 = vmatprep.subr.mxu0 0.0
    %2054 = vmatpush1.xpose.msra.mxu0 0.0
    %2055 = vmatprep.subr.mxu0 0.0
    %2056 = vmatpush1.xpose.msra.mxu0 0.0
    %2057 = vmatprep.subr.mxu0 0.0
    %2058 = vmatpush1.xpose.msra.mxu0 0.0
    %2059 = vmatprep.subr.mxu0 0.0
    %2060 = vmatpush1.xpose.msra.mxu0 0.0
    %2061 = vmatprep.subr.mxu0 0.0
    %2062 = vmatpush1.xpose.msra.mxu0 0.0
    %2063 = vmatprep.subr.mxu0 0.0
    %2064 = vmatpush1.xpose.msra.mxu0 0.0
    %2065 = vmatprep.subr.mxu0 0.0
    %2066 = vmatpush1.xpose.msra.mxu0 0.0
    %2067 = vmatprep.subr.mxu0 0.0
    %2068 = vmatpush1.xpose.msra.mxu0 0.0
    %2069 = vmatprep.subr.mxu0 0.0
    %2070 = vmatpush1.xpose.msra.mxu0 0.0
    %2071 = vmatprep.subr.mxu0 0.0
    %2072 = vmatpush1.xpose.msra.mxu0 0.0
    %2073 = vmatprep.subr.mxu0 0.0
    %2074 = vmatpush1.xpose.msra.mxu0 0.0
    %2075 = vmatprep.subr.mxu0 0.0
    %2076 = vmatpush1.xpose.msra.mxu0 0.0
    %2077 = vmatprep.subr.mxu0 0.0
    %2078 = vmatpush1.xpose.msra.mxu0 0.0
    %2079 = vmatprep.subr.mxu0 0.0
    %2080 = vmatpush1.xpose.msra.mxu0 0.0
    %2081 = vmatprep.subr.mxu0 0.0
    %2082 = vmatpush1.xpose.msra.mxu0 0.0
    %2083 = vmatprep.subr.mxu0 0.0
    %2084 = vmatpush1.xpose.msra.mxu0 0.0
    %2085 = vmatprep.subr.mxu0 0.0
    %2086 = vmatpush1.xpose.msra.mxu0 0.0
    %2087 = vmatprep.subr.mxu0 0.0
    %2088 = vmatpush1.xpose.msra.mxu0 0.0
    %2089 = vmatprep.mubr.f32.mxu0 0.0
    %2090 = vmatmul.mubr.f32.gmra.mrb[0].mxu0 %v2021
    %v2091 = vpop.f32.mrb[0].mxu0
    %v2092 = vadd.f32 0.0, %v2091
    %v2093 = vpop.f32.mrb[0].mxu0
    %2094 = vdwg.mxu0
    %v2095 = vmul.f32 %v2092, 0.35355338
    %v2096 = vsel %vm130, %v2095, -inf
    %2097 = vmax.xlane.f32.xlu0 %v2096
    %v2098 = vpop.xlane.xlu0 %2097
    %v2099 = vsub.f32 %v2095, %v2098
    %v2100 = vmul.f32 %v2099, 1.442695
    %v2101 = vpow.pop %v2100
    %v2102 = vsel %vm130, %v2101, 0.0
    %2103 = vadd.xlane.f32.xlu0 %v2102
    %v2104 = vpop.xlane.xlu0 %2103
    %v2105 = vrcp.pop %v2104
    %v2106 = vmul.f32 %v2101, %v2105
    %2107 = vrot.lane.b32.xlu0 %v1846, 56
    %v2108 = vpop.permute.xlu0 %2107
    %v2111 = vsel %vm130, %v2106, 0
    %2113 = vmatprep.subr.mxu0 0.0
    %2114 = vmatpush1.msra.mxu0 %v2108
    %2115 = vmatprep.subr.mxu0 0.0
    %2116 = vmatpush1.msra.mxu0 0.0
    %2117 = vmatprep.subr.mxu0 0.0
    %2118 = vmatpush1.msra.mxu0 0.0
    %2119 = vmatprep.subr.mxu0 0.0
    %2120 = vmatpush1.msra.mxu0 0.0
    %2121 = vmatprep.subr.mxu0 0.0
    %2122 = vmatpush1.msra.mxu0 0.0
    %2123 = vmatprep.subr.mxu0 0.0
    %2124 = vmatpush1.msra.mxu0 0.0
    %2125 = vmatprep.subr.mxu0 0.0
    %2126 = vmatpush1.msra.mxu0 0.0
    %2127 = vmatprep.subr.mxu0 0.0
    %2128 = vmatpush1.msra.mxu0 0.0
    %2129 = vmatprep.subr.mxu0 0.0
    %2130 = vmatpush1.msra.mxu0 0.0
    %2131 = vmatprep.subr.mxu0 0.0
    %2132 = vmatpush1.msra.mxu0 0.0
    %2133 = vmatprep.subr.mxu0 0.0
    %2134 = vmatpush1.msra.mxu0 0.0
    %2135 = vmatprep.subr.mxu0 0.0
    %2136 = vmatpush1.msra.mxu0 0.0
    %2137 = vmatprep.subr.mxu0 0.0
    %2138 = vmatpush1.msra.mxu0 0.0
    %2139 = vmatprep.subr.mxu0 0.0
    %2140 = vmatpush1.msra.mxu0 0.0
    %2141 = vmatprep.subr.mxu0 0.0
    %2142 = vmatpush1.msra.mxu0 0.0
    %2143 = vmatprep.subr.mxu0 0.0
    %2144 = vmatpush1.msra.mxu0 0.0
    %2145 = vmatprep.subr.mxu0 0.0
    %2146 = vmatpush1.msra.mxu0 0.0
    %2147 = vmatprep.subr.mxu0 0.0
    %2148 = vmatpush1.msra.mxu0 0.0
    %2149 = vmatprep.subr.mxu0 0.0
    %2150 = vmatpush1.msra.mxu0 0.0
    %2151 = vmatprep.subr.mxu0 0.0
    %2152 = vmatpush1.msra.mxu0 0.0
    %2153 = vmatprep.subr.mxu0 0.0
    %2154 = vmatpush1.msra.mxu0 0.0
    %2155 = vmatprep.subr.mxu0 0.0
    %2156 = vmatpush1.msra.mxu0 0.0
    %2157 = vmatprep.subr.mxu0 0.0
    %2158 = vmatpush1.msra.mxu0 0.0
    %2159 = vmatprep.subr.mxu0 0.0
    %2160 = vmatpush1.msra.mxu0 0.0
    %2161 = vmatprep.subr.mxu0 0.0
    %2162 = vmatpush1.msra.mxu0 0.0
    %2163 = vmatprep.subr.mxu0 0.0
    %2164 = vmatpush1.msra.mxu0 0.0
    %2165 = vmatprep.subr.mxu0 0.0
    %2166 = vmatpush1.msra.mxu0 0.0
    %2167 = vmatprep.subr.mxu0 0.0
    %2168 = vmatpush1.msra.mxu0 0.0
    %2169 = vmatprep.subr.mxu0 0.0
    %2170 = vmatpush1.msra.mxu0 0.0
    %2171 = vmatprep.subr.mxu0 0.0
    %2172 = vmatpush1.msra.mxu0 0.0
    %2173 = vmatprep.subr.mxu0 0.0
    %2174 = vmatpush1.msra.mxu0 0.0
    %2175 = vmatprep.subr.mxu0 0.0
    %2176 = vmatpush1.msra.mxu0 0.0
    %2177 = vmatprep.mubr.f32.mxu0 0.0
    %2178 = vmatmul.mubr.f32.gmra.mrb[0].mxu0 %v2111
    %v2179 = vpop.f32.mrb[0].mxu0
    %v2180 = vadd.f32 0.0, %v2179
    %v2181 = vpop.f32.mrb[0].mxu0
    %2182 = vdwg.mxu0
    %2183 = vrot.lane.b32.xlu0 %v1846, 112
    %v2184 = vpop.permute.xlu0 %2183
    %2185 = vrot.lane.b32.xlu0 %v1846, 80
    %v2186 = vpop.permute.xlu0 %2185
    %v2187 = vsel %vm130, %v2184, 0
    %v2189 = vsel %vm130, %v2186, 0
    %2191 = vmatprep.subr.mxu0 0.0
    %2192 = vmatpush1.xpose.msra.mxu0 %v2189
    %2193 = vmatprep.subr.mxu0 0.0
    %2194 = vmatpush1.xpose.msra.mxu0 0.0
    %2195 = vmatprep.subr.mxu0 0.0
    %2196 = vmatpush1.xpose.msra.mxu0 0.0
    %2197 = vmatprep.subr.mxu0 0.0
    %2198 = vmatpush1.xpose.msra.mxu0 0.0
    %2199 = vmatprep.subr.mxu0 0.0
    %2200 = vmatpush1.xpose.msra.mxu0 0.0
    %2201 = vmatprep.subr.mxu0 0.0
    %2202 = vmatpush1.xpose.msra.mxu0 0.0
    %2203 = vmatprep.subr.mxu0 0.0
    %2204 = vmatpush1.xpose.msra.mxu0 0.0
    %2205 = vmatprep.subr.mxu0 0.0
    %2206 = vmatpush1.xpose.msra.mxu0 0.0
    %2207 = vmatprep.subr.mxu0 0.0
    %2208 = vmatpush1.xpose.msra.mxu0 0.0
    %2209 = vmatprep.subr.mxu0 0.0
    %2210 = vmatpush1.xpose.msra.mxu0 0.0
    %2211 = vmatprep.subr.mxu0 0.0
    %2212 = vmatpush1.xpose.msra.mxu0 0.0
    %2213 = vmatprep.subr.mxu0 0.0
    %2214 = vmatpush1.xpose.msra.mxu0 0.0
    %2215 = vmatprep.subr.mxu0 0.0
    %2216 = vmatpush1.xpose.msra.mxu0 0.0
    %2217 = vmatprep.subr.mxu0 0.0
    %2218 = vmatpush1.xpose.msra.mxu0 0.0
    %2219 = vmatprep.subr.mxu0 0.0
    %2220 = vmatpush1.xpose.msra.mxu0 0.0
    %2221 = vmatprep.subr.mxu0 0.0
    %2222 = vmatpush1.xpose.msra.mxu0 0.0
    %2223 = vmatprep.subr.mxu0 0.0
    %2224 = vmatpush1.xpose.msra.mxu0 0.0
    %2225 = vmatprep.subr.mxu0 0.0
    %2226 = vmatpush1.xpose.msra.mxu0 0.0
    %2227 = vmatprep.subr.mxu0 0.0
    %2228 = vmatpush1.xpose.msra.mxu0 0.0
    %2229 = vmatprep.subr.mxu0 0.0
    %2230 = vmatpush1.xpose.msra.mxu0 0.0
    %2231 = vmatprep.subr.mxu0 0.0
    %2232 = vmatpush1.xpose.msra.mxu0 0.0
    %2233 = vmatprep.subr.mxu0 0.0
    %2234 = vmatpush1.xpose.msra.mxu0 0.0
    %2235 = vmatprep.subr.mxu0 0.0
    %2236 = vmatpush1.xpose.msra.mxu0 0.0
    %2237 = vmatprep.subr.mxu0 0.0
    %2238 = vmatpush1.xpose.msra.mxu0 0.0
    %2239 = vmatprep.subr.mxu0 0.0
    %2240 = vmatpush1.xpose.msra.mxu0 0.0
    %2241 = vmatprep.subr.mxu0 0.0
    %2242 = vmatpush1.xpose.msra.mxu0 0.0
    %2243 = vmatprep.subr.mxu0 0.0
    %2244 = vmatpush1.xpose.msra.mxu0 0.0
    %2245 = vmatprep.subr.mxu0 0.0
    %2246 = vmatpush1.xpose.msra.mxu0 0.0
    %2247 = vmatprep.subr.mxu0 0.0
    %2248 = vmatpush1.xpose.msra.mxu0 0.0
    %2249 = vmatprep.subr.mxu0 0.0
    %2250 = vmatpush1.xpose.msra.mxu0 0.0
    %2251 = vmatprep.subr.mxu0 0.0
    %2252 = vmatpush1.xpose.msra.mxu0 0.0
    %2253 = vmatprep.subr.mxu0 0.0
    %2254 = vmatpush1.xpose.msra.mxu0 0.0
    %2255 = vmatprep.mubr.f32.mxu0 0.0
    %2256 = vmatmul.mubr.f32.gmra.mrb[0].mxu0 %v2187
    %v2257 = vpop.f32.mrb[0].mxu0
    %v2258 = vadd.f32 0.0, %v2257
    %v2259 = vpop.f32.mrb[0].mxu0
    %2260 = vdwg.mxu0
    %v2261 = vmul.f32 %v2258, 0.35355338
    %v2262 = vsel %vm130, %v2261, -inf
    %2263 = vmax.xlane.f32.xlu0 %v2262
    %v2264 = vpop.xlane.xlu0 %2263
    %v2265 = vsub.f32 %v2261, %v2264
    %v2266 = vmul.f32 %v2265, 1.442695
    %v2267 = vpow.pop %v2266
    %v2268 = vsel %vm130, %v2267, 0.0
    %2269 = vadd.xlane.f32.xlu0 %v2268
    %v2270 = vpop.xlane.xlu0 %2269
    %v2271 = vrcp.pop %v2270
    %v2272 = vmul.f32 %v2267, %v2271
    %2273 = vrot.lane.b32.xlu0 %v1846, 48
    %v2274 = vpop.permute.xlu0 %2273
    %v2277 = vsel %vm130, %v2272, 0
    %2279 = vmatprep.subr.mxu0 0.0
    %2280 = vmatpush1.msra.mxu0 %v2274
    %2281 = vmatprep.subr.mxu0 0.0
    %2282 = vmatpush1.msra.mxu0 0.0
    %2283 = vmatprep.subr.mxu0 0.0
    %2284 = vmatpush1.msra.mxu0 0.0
    %2285 = vmatprep.subr.mxu0 0.0
    %2286 = vmatpush1.msra.mxu0 0.0
    %2287 = vmatprep.subr.mxu0 0.0
    %2288 = vmatpush1.msra.mxu0 0.0
    %2289 = vmatprep.subr.mxu0 0.0
    %2290 = vmatpush1.msra.mxu0 0.0
    %2291 = vmatprep.subr.mxu0 0.0
    %2292 = vmatpush1.msra.mxu0 0.0
    %2293 = vmatprep.subr.mxu0 0.0
    %2294 = vmatpush1.msra.mxu0 0.0
    %2295 = vmatprep.subr.mxu0 0.0
    %2296 = vmatpush1.msra.mxu0 0.0
    %2297 = vmatprep.subr.mxu0 0.0
    %2298 = vmatpush1.msra.mxu0 0.0
    %2299 = vmatprep.subr.mxu0 0.0
    %2300 = vmatpush1.msra.mxu0 0.0
    %2301 = vmatprep.subr.mxu0 0.0
    %2302 = vmatpush1.msra.mxu0 0.0
    %2303 = vmatprep.subr.mxu0 0.0
    %2304 = vmatpush1.msra.mxu0 0.0
    %2305 = vmatprep.subr.mxu0 0.0
    %2306 = vmatpush1.msra.mxu0 0.0
    %2307 = vmatprep.subr.mxu0 0.0
    %2308 = vmatpush1.msra.mxu0 0.0
    %2309 = vmatprep.subr.mxu0 0.0
    %2310 = vmatpush1.msra.mxu0 0.0
    %2311 = vmatprep.subr.mxu0 0.0
    %2312 = vmatpush1.msra.mxu0 0.0
    %2313 = vmatprep.subr.mxu0 0.0
    %2314 = vmatpush1.msra.mxu0 0.0
    %2315 = vmatprep.subr.mxu0 0.0
    %2316 = vmatpush1.msra.mxu0 0.0
    %2317 = vmatprep.subr.mxu0 0.0
    %2318 = vmatpush1.msra.mxu0 0.0
    %2319 = vmatprep.subr.mxu0 0.0
    %2320 = vmatpush1.msra.mxu0 0.0
    %2321 = vmatprep.subr.mxu0 0.0
    %2322 = vmatpush1.msra.mxu0 0.0
    %2323 = vmatprep.subr.mxu0 0.0
    %2324 = vmatpush1.msra.mxu0 0.0
    %2325 = vmatprep.subr.mxu0 0.0
    %2326 = vmatpush1.msra.mxu0 0.0
    %2327 = vmatprep.subr.mxu0 0.0
    %2328 = vmatpush1.msra.mxu0 0.0
    %2329 = vmatprep.subr.mxu0 0.0
    %2330 = vmatpush1.msra.mxu0 0.0
    %2331 = vmatprep.subr.mxu0 0.0
    %2332 = vmatpush1.msra.mxu0 0.0
    %2333 = vmatprep.subr.mxu0 0.0
    %2334 = vmatpush1.msra.mxu0 0.0
    %2335 = vmatprep.subr.mxu0 0.0
    %2336 = vmatpush1.msra.mxu0 0.0
    %2337 = vmatprep.subr.mxu0 0.0
    %2338 = vmatpush1.msra.mxu0 0.0
    %2339 = vmatprep.subr.mxu0 0.0
    %2340 = vmatpush1.msra.mxu0 0.0
    %2341 = vmatprep.subr.mxu0 0.0
    %2342 = vmatpush1.msra.mxu0 0.0
    %2343 = vmatprep.mubr.f32.mxu0 0.0
    %2344 = vmatmul.mubr.f32.gmra.mrb[0].mxu0 %v2277
    %v2345 = vpop.f32.mrb[0].mxu0
    %v2346 = vadd.f32 0.0, %v2345
    %v2347 = vpop.f32.mrb[0].mxu0
    %2348 = vdwg.mxu0
    %2349 = vrot.lane.b32.xlu0 %v1846, 104
    %v2350 = vpop.permute.xlu0 %2349
    %2351 = vrot.lane.b32.xlu0 %v1846, 72
    %v2352 = vpop.permute.xlu0 %2351
    %v2353 = vsel %vm130, %v2350, 0
    %v2355 = vsel %vm130, %v2352, 0
    %2357 = vmatprep.subr.mxu0 0.0
    %2358 = vmatpush1.xpose.msra.mxu0 %v2355
    %2359 = vmatprep.subr.mxu0 0.0
    %2360 = vmatpush1.xpose.msra.mxu0 0.0
    %2361 = vmatprep.subr.mxu0 0.0
    %2362 = vmatpush1.xpose.msra.mxu0 0.0
    %2363 = vmatprep.subr.mxu0 0.0
    %2364 = vmatpush1.xpose.msra.mxu0 0.0
    %2365 = vmatprep.subr.mxu0 0.0
    %2366 = vmatpush1.xpose.msra.mxu0 0.0
    %2367 = vmatprep.subr.mxu0 0.0
    %2368 = vmatpush1.xpose.msra.mxu0 0.0
    %2369 = vmatprep.subr.mxu0 0.0
    %2370 = vmatpush1.xpose.msra.mxu0 0.0
    %2371 = vmatprep.subr.mxu0 0.0
    %2372 = vmatpush1.xpose.msra.mxu0 0.0
    %2373 = vmatprep.subr.mxu0 0.0
    %2374 = vmatpush1.xpose.msra.mxu0 0.0
    %2375 = vmatprep.subr.mxu0 0.0
    %2376 = vmatpush1.xpose.msra.mxu0 0.0
    %2377 = vmatprep.subr.mxu0 0.0
    %2378 = vmatpush1.xpose.msra.mxu0 0.0
    %2379 = vmatprep.subr.mxu0 0.0
    %2380 = vmatpush1.xpose.msra.mxu0 0.0
    %2381 = vmatprep.subr.mxu0 0.0
    %2382 = vmatpush1.xpose.msra.mxu0 0.0
    %2383 = vmatprep.subr.mxu0 0.0
    %2384 = vmatpush1.xpose.msra.mxu0 0.0
    %2385 = vmatprep.subr.mxu0 0.0
    %2386 = vmatpush1.xpose.msra.mxu0 0.0
    %2387 = vmatprep.subr.mxu0 0.0
    %2388 = vmatpush1.xpose.msra.mxu0 0.0
    %2389 = vmatprep.subr.mxu0 0.0
    %2390 = vmatpush1.xpose.msra.mxu0 0.0
    %2391 = vmatprep.subr.mxu0 0.0
    %2392 = vmatpush1.xpose.msra.mxu0 0.0
    %2393 = vmatprep.subr.mxu0 0.0
    %2394 = vmatpush1.xpose.msra.mxu0 0.0
    %2395 = vmatprep.subr.mxu0 0.0
    %2396 = vmatpush1.xpose.msra.mxu0 0.0
    %2397 = vmatprep.subr.mxu0 0.0
    %2398 = vmatpush1.xpose.msra.mxu0 0.0
    %2399 = vmatprep.subr.mxu0 0.0
    %2400 = vmatpush1.xpose.msra.mxu0 0.0
    %2401 = vmatprep.subr.mxu0 0.0
    %2402 = vmatpush1.xpose.msra.mxu0 0.0
    %2403 = vmatprep.subr.mxu0 0.0
    %2404 = vmatpush1.xpose.msra.mxu0 0.0
    %2405 = vmatprep.subr.mxu0 0.0
    %2406 = vmatpush1.xpose.msra.mxu0 0.0
    %2407 = vmatprep.subr.mxu0 0.0
    %2408 = vmatpush1.xpose.msra.mxu0 0.0
    %2409 = vmatprep.subr.mxu0 0.0
    %2410 = vmatpush1.xpose.msra.mxu0 0.0
    %2411 = vmatprep.subr.mxu0 0.0
    %2412 = vmatpush1.xpose.msra.mxu0 0.0
    %2413 = vmatprep.subr.mxu0 0.0
    %2414 = vmatpush1.xpose.msra.mxu0 0.0
    %2415 = vmatprep.subr.mxu0 0.0
    %2416 = vmatpush1.xpose.msra.mxu0 0.0
    %2417 = vmatprep.subr.mxu0 0.0
    %2418 = vmatpush1.xpose.msra.mxu0 0.0
    %2419 = vmatprep.subr.mxu0 0.0
    %2420 = vmatpush1.xpose.msra.mxu0 0.0
    %2421 = vmatprep.mubr.f32.mxu0 0.0
    %2422 = vmatmul.mubr.f32.gmra.mrb[0].mxu0 %v2353
    %v2423 = vpop.f32.mrb[0].mxu0
    %v2424 = vadd.f32 0.0, %v2423
    %v2425 = vpop.f32.mrb[0].mxu0
    %2426 = vdwg.mxu0
    %v2427 = vmul.f32 %v2424, 0.35355338
    %v2428 = vsel %vm130, %v2427, -inf
    %2429 = vmax.xlane.f32.xlu0 %v2428
    %v2430 = vpop.xlane.xlu0 %2429
    %v2431 = vsub.f32 %v2427, %v2430
    %v2432 = vmul.f32 %v2431, 1.442695
    %v2433 = vpow.pop %v2432
    %v2434 = vsel %vm130, %v2433, 0.0
    %2435 = vadd.xlane.f32.xlu0 %v2434
    %v2436 = vpop.xlane.xlu0 %2435
    %v2437 = vrcp.pop %v2436
    %v2438 = vmul.f32 %v2433, %v2437
    %2439 = vrot.lane.b32.xlu0 %v1846, 40
    %v2440 = vpop.permute.xlu0 %2439
    %v2443 = vsel %vm130, %v2438, 0
    %2445 = vmatprep.subr.mxu0 0.0
    %2446 = vmatpush1.msra.mxu0 %v2440
    %2447 = vmatprep.subr.mxu0 0.0
    %2448 = vmatpush1.msra.mxu0 0.0
    %2449 = vmatprep.subr.mxu0 0.0
    %2450 = vmatpush1.msra.mxu0 0.0
    %2451 = vmatprep.subr.mxu0 0.0
    %2452 = vmatpush1.msra.mxu0 0.0
    %2453 = vmatprep.subr.mxu0 0.0
    %2454 = vmatpush1.msra.mxu0 0.0
    %2455 = vmatprep.subr.mxu0 0.0
    %2456 = vmatpush1.msra.mxu0 0.0
    %2457 = vmatprep.subr.mxu0 0.0
    %2458 = vmatpush1.msra.mxu0 0.0
    %2459 = vmatprep.subr.mxu0 0.0
    %2460 = vmatpush1.msra.mxu0 0.0
    %2461 = vmatprep.subr.mxu0 0.0
    %2462 = vmatpush1.msra.mxu0 0.0
    %2463 = vmatprep.subr.mxu0 0.0
    %2464 = vmatpush1.msra.mxu0 0.0
    %2465 = vmatprep.subr.mxu0 0.0
    %2466 = vmatpush1.msra.mxu0 0.0
    %2467 = vmatprep.subr.mxu0 0.0
    %2468 = vmatpush1.msra.mxu0 0.0
    %2469 = vmatprep.subr.mxu0 0.0
    %2470 = vmatpush1.msra.mxu0 0.0
    %2471 = vmatprep.subr.mxu0 0.0
    %2472 = vmatpush1.msra.mxu0 0.0
    %2473 = vmatprep.subr.mxu0 0.0
    %2474 = vmatpush1.msra.mxu0 0.0
    %2475 = vmatprep.subr.mxu0 0.0
    %2476 = vmatpush1.msra.mxu0 0.0
    %2477 = vmatprep.subr.mxu0 0.0
    %2478 = vmatpush1.msra.mxu0 0.0
    %2479 = vmatprep.subr.mxu0 0.0
    %2480 = vmatpush1.msra.mxu0 0.0
    %2481 = vmatprep.subr.mxu0 0.0
    %2482 = vmatpush1.msra.mxu0 0.0
    %2483 = vmatprep.subr.mxu0 0.0
    %2484 = vmatpush1.msra.mxu0 0.0
    %2485 = vmatprep.subr.mxu0 0.0
    %2486 = vmatpush1.msra.mxu0 0.0
    %2487 = vmatprep.subr.mxu0 0.0
    %2488 = vmatpush1.msra.mxu0 0.0
    %2489 = vmatprep.subr.mxu0 0.0
    %2490 = vmatpush1.msra.mxu0 0.0
    %2491 = vmatprep.subr.mxu0 0.0
    %2492 = vmatpush1.msra.mxu0 0.0
    %2493 = vmatprep.subr.mxu0 0.0
    %2494 = vmatpush1.msra.mxu0 0.0
    %2495 = vmatprep.subr.mxu0 0.0
    %2496 = vmatpush1.msra.mxu0 0.0
    %2497 = vmatprep.subr.mxu0 0.0
    %2498 = vmatpush1.msra.mxu0 0.0
    %2499 = vmatprep.subr.mxu0 0.0
    %2500 = vmatpush1.msra.mxu0 0.0
    %2501 = vmatprep.subr.mxu0 0.0
    %2502 = vmatpush1.msra.mxu0 0.0
    %2503 = vmatprep.subr.mxu0 0.0
    %2504 = vmatpush1.msra.mxu0 0.0
    %2505 = vmatprep.subr.mxu0 0.0
    %2506 = vmatpush1.msra.mxu0 0.0
    %2507 = vmatprep.subr.mxu0 0.0
    %2508 = vmatpush1.msra.mxu0 0.0
    %2509 = vmatprep.mubr.f32.mxu0 0.0
    %2510 = vmatmul.mubr.f32.gmra.mrb[0].mxu0 %v2443
    %v2511 = vpop.f32.mrb[0].mxu0
    %v2512 = vadd.f32 0.0, %v2511
    %v2513 = vpop.f32.mrb[0].mxu0
    %2514 = vdwg.mxu0
    %2516 = vrot.lane.b32.xlu0 %v2180, 8
    %v2517 = vpop.permute.xlu0 %2516
    %2520 = vrot.lane.b32.xlu0 %v2346, 16
    %v2521 = vpop.permute.xlu0 %2520
    %2524 = vrot.lane.b32.xlu0 %v2512, 24
    %v2525 = vpop.permute.xlu0 %2524
    %v2527 = vsel %vm130, %v2014, %v2517
    %v2528 = vsel %vm804, %v2527, %v2521
    %v2529 = vsel %vm806, %v2528, %v2525
    %2531 = vrot.lane.b32.xlu0 %v1849, 96
    %v2532 = vpop.permute.xlu0 %2531
    %v2533 = vsel %vm130, %v1849, 0
    %v2535 = vsel %vm130, %v2532, 0
    %2537 = vmatprep.subr.mxu0 0.0
    %2538 = vmatpush1.xpose.msra.mxu0 %v2535
    %2539 = vmatprep.subr.mxu0 0.0
    %2540 = vmatpush1.xpose.msra.mxu0 0.0
    %2541 = vmatprep.subr.mxu0 0.0
    %2542 = vmatpush1.xpose.msra.mxu0 0.0
    %2543 = vmatprep.subr.mxu0 0.0
    %2544 = vmatpush1.xpose.msra.mxu0 0.0
    %2545 = vmatprep.subr.mxu0 0.0
    %2546 = vmatpush1.xpose.msra.mxu0 0.0
    %2547 = vmatprep.subr.mxu0 0.0
    %2548 = vmatpush1.xpose.msra.mxu0 0.0
    %2549 = vmatprep.subr.mxu0 0.0
    %2550 = vmatpush1.xpose.msra.mxu0 0.0
    %2551 = vmatprep.subr.mxu0 0.0
    %2552 = vmatpush1.xpose.msra.mxu0 0.0
    %2553 = vmatprep.subr.mxu0 0.0
    %2554 = vmatpush1.xpose.msra.mxu0 0.0
    %2555 = vmatprep.subr.mxu0 0.0
    %2556 = vmatpush1.xpose.msra.mxu0 0.0
    %2557 = vmatprep.subr.mxu0 0.0
    %2558 = vmatpush1.xpose.msra.mxu0 0.0
    %2559 = vmatprep.subr.mxu0 0.0
    %2560 = vmatpush1.xpose.msra.mxu0 0.0
    %2561 = vmatprep.subr.mxu0 0.0
    %2562 = vmatpush1.xpose.msra.mxu0 0.0
    %2563 = vmatprep.subr.mxu0 0.0
    %2564 = vmatpush1.xpose.msra.mxu0 0.0
    %2565 = vmatprep.subr.mxu0 0.0
    %2566 = vmatpush1.xpose.msra.mxu0 0.0
    %2567 = vmatprep.subr.mxu0 0.0
    %2568 = vmatpush1.xpose.msra.mxu0 0.0
    %2569 = vmatprep.subr.mxu0 0.0
    %2570 = vmatpush1.xpose.msra.mxu0 0.0
    %2571 = vmatprep.subr.mxu0 0.0
    %2572 = vmatpush1.xpose.msra.mxu0 0.0
    %2573 = vmatprep.subr.mxu0 0.0
    %2574 = vmatpush1.xpose.msra.mxu0 0.0
    %2575 = vmatprep.subr.mxu0 0.0
    %2576 = vmatpush1.xpose.msra.mxu0 0.0
    %2577 = vmatprep.subr.mxu0 0.0
    %2578 = vmatpush1.xpose.msra.mxu0 0.0
    %2579 = vmatprep.subr.mxu0 0.0
    %2580 = vmatpush1.xpose.msra.mxu0 0.0
    %2581 = vmatprep.subr.mxu0 0.0
    %2582 = vmatpush1.xpose.msra.mxu0 0.0
    %2583 = vmatprep.subr.mxu0 0.0
    %2584 = vmatpush1.xpose.msra.mxu0 0.0
    %2585 = vmatprep.subr.mxu0 0.0
    %2586 = vmatpush1.xpose.msra.mxu0 0.0
    %2587 = vmatprep.subr.mxu0 0.0
    %2588 = vmatpush1.xpose.msra.mxu0 0.0
    %2589 = vmatprep.subr.mxu0 0.0
    %2590 = vmatpush1.xpose.msra.mxu0 0.0
    %2591 = vmatprep.subr.mxu0 0.0
    %2592 = vmatpush1.xpose.msra.mxu0 0.0
    %2593 = vmatprep.subr.mxu0 0.0
    %2594 = vmatpush1.xpose.msra.mxu0 0.0
    %2595 = vmatprep.subr.mxu0 0.0
    %2596 = vmatpush1.xpose.msra.mxu0 0.0
    %2597 = vmatprep.subr.mxu0 0.0
    %2598 = vmatpush1.xpose.msra.mxu0 0.0
    %2599 = vmatprep.subr.mxu0 0.0
    %2600 = vmatpush1.xpose.msra.mxu0 0.0
    %2601 = vmatprep.mubr.f32.mxu0 0.0
    %2602 = vmatmul.mubr.f32.gmra.mrb[0].mxu0 %v2533
    %v2603 = vpop.f32.mrb[0].mxu0
    %v2604 = vadd.f32 0.0, %v2603
    %v2605 = vpop.f32.mrb[0].mxu0
    %2606 = vdwg.mxu0
    %v2607 = vmul.f32 %v2604, 0.35355338
    %v2608 = vsel %vm130, %v2607, -inf
    %2609 = vmax.xlane.f32.xlu0 %v2608
    %v2610 = vpop.xlane.xlu0 %2609
    %v2611 = vsub.f32 %v2607, %v2610
    %v2612 = vmul.f32 %v2611, 1.442695
    %v2613 = vpow.pop %v2612
    %v2614 = vsel %vm130, %v2613, 0.0
    %2615 = vadd.xlane.f32.xlu0 %v2614
    %v2616 = vpop.xlane.xlu0 %2615
    %v2617 = vrcp.pop %v2616
    %v2618 = vmul.f32 %v2613, %v2617
    %2619 = vrot.lane.b32.xlu0 %v1849, 64
    %v2620 = vpop.permute.xlu0 %2619
    %v2623 = vsel %vm130, %v2618, 0
    %2625 = vmatprep.subr.mxu0 0.0
    %2626 = vmatpush1.msra.mxu0 %v2620
    %2627 = vmatprep.subr.mxu0 0.0
    %2628 = vmatpush1.msra.mxu0 0.0
    %2629 = vmatprep.subr.mxu0 0.0
    %2630 = vmatpush1.msra.mxu0 0.0
    %2631 = vmatprep.subr.mxu0 0.0
    %2632 = vmatpush1.msra.mxu0 0.0
    %2633 = vmatprep.subr.mxu0 0.0
    %2634 = vmatpush1.msra.mxu0 0.0
    %2635 = vmatprep.subr.mxu0 0.0
    %2636 = vmatpush1.msra.mxu0 0.0
    %2637 = vmatprep.subr.mxu0 0.0
    %2638 = vmatpush1.msra.mxu0 0.0
    %2639 = vmatprep.subr.mxu0 0.0
    %2640 = vmatpush1.msra.mxu0 0.0
    %2641 = vmatprep.subr.mxu0 0.0
    %2642 = vmatpush1.msra.mxu0 0.0
    %2643 = vmatprep.subr.mxu0 0.0
    %2644 = vmatpush1.msra.mxu0 0.0
    %2645 = vmatprep.subr.mxu0 0.0
    %2646 = vmatpush1.msra.mxu0 0.0
    %2647 = vmatprep.subr.mxu0 0.0
    %2648 = vmatpush1.msra.mxu0 0.0
    %2649 = vmatprep.subr.mxu0 0.0
    %2650 = vmatpush1.msra.mxu0 0.0
    %2651 = vmatprep.subr.mxu0 0.0
    %2652 = vmatpush1.msra.mxu0 0.0
    %2653 = vmatprep.subr.mxu0 0.0
    %2654 = vmatpush1.msra.mxu0 0.0
    %2655 = vmatprep.subr.mxu0 0.0
    %2656 = vmatpush1.msra.mxu0 0.0
    %2657 = vmatprep.subr.mxu0 0.0
    %2658 = vmatpush1.msra.mxu0 0.0
    %2659 = vmatprep.subr.mxu0 0.0
    %2660 = vmatpush1.msra.mxu0 0.0
    %2661 = vmatprep.subr.mxu0 0.0
    %2662 = vmatpush1.msra.mxu0 0.0
    %2663 = vmatprep.subr.mxu0 0.0
    %2664 = vmatpush1.msra.mxu0 0.0
    %2665 = vmatprep.subr.mxu0 0.0
    %2666 = vmatpush1.msra.mxu0 0.0
    %2667 = vmatprep.subr.mxu0 0.0
    %2668 = vmatpush1.msra.mxu0 0.0
    %2669 = vmatprep.subr.mxu0 0.0
    %2670 = vmatpush1.msra.mxu0 0.0
    %2671 = vmatprep.subr.mxu0 0.0
    %2672 = vmatpush1.msra.mxu0 0.0
    %2673 = vmatprep.subr.mxu0 0.0
    %2674 = vmatpush1.msra.mxu0 0.0
    %2675 = vmatprep.subr.mxu0 0.0
    %2676 = vmatpush1.msra.mxu0 0.0
    %2677 = vmatprep.subr.mxu0 0.0
    %2678 = vmatpush1.msra.mxu0 0.0
    %2679 = vmatprep.subr.mxu0 0.0
    %2680 = vmatpush1.msra.mxu0 0.0
    %2681 = vmatprep.subr.mxu0 0.0
    %2682 = vmatpush1.msra.mxu0 0.0
    %2683 = vmatprep.subr.mxu0 0.0
    %2684 = vmatpush1.msra.mxu0 0.0
    %2685 = vmatprep.subr.mxu0 0.0
    %2686 = vmatpush1.msra.mxu0 0.0
    %2687 = vmatprep.subr.mxu0 0.0
    %2688 = vmatpush1.msra.mxu0 0.0
    %2689 = vmatprep.mubr.f32.mxu0 0.0
    %2690 = vmatmul.mubr.f32.gmra.mrb[0].mxu0 %v2623
    %v2691 = vpop.f32.mrb[0].mxu0
    %v2692 = vadd.f32 0.0, %v2691
    %v2693 = vpop.f32.mrb[0].mxu0
    %2694 = vdwg.mxu0
    %2695 = vrot.lane.b32.xlu0 %v1849, 120
    %v2696 = vpop.permute.xlu0 %2695
    %2697 = vrot.lane.b32.xlu0 %v1849, 88
    %v2698 = vpop.permute.xlu0 %2697
    %v2699 = vsel %vm130, %v2696, 0
    %v2701 = vsel %vm130, %v2698, 0
    %2703 = vmatprep.subr.mxu0 0.0
    %2704 = vmatpush1.xpose.msra.mxu0 %v2701
    %2705 = vmatprep.subr.mxu0 0.0
    %2706 = vmatpush1.xpose.msra.mxu0 0.0
    %2707 = vmatprep.subr.mxu0 0.0
    %2708 = vmatpush1.xpose.msra.mxu0 0.0
    %2709 = vmatprep.subr.mxu0 0.0
    %2710 = vmatpush1.xpose.msra.mxu0 0.0
    %2711 = vmatprep.subr.mxu0 0.0
    %2712 = vmatpush1.xpose.msra.mxu0 0.0
    %2713 = vmatprep.subr.mxu0 0.0
    %2714 = vmatpush1.xpose.msra.mxu0 0.0
    %2715 = vmatprep.subr.mxu0 0.0
    %2716 = vmatpush1.xpose.msra.mxu0 0.0
    %2717 = vmatprep.subr.mxu0 0.0
    %2718 = vmatpush1.xpose.msra.mxu0 0.0
    %2719 = vmatprep.subr.mxu0 0.0
    %2720 = vmatpush1.xpose.msra.mxu0 0.0
    %2721 = vmatprep.subr.mxu0 0.0
    %2722 = vmatpush1.xpose.msra.mxu0 0.0
    %2723 = vmatprep.subr.mxu0 0.0
    %2724 = vmatpush1.xpose.msra.mxu0 0.0
    %2725 = vmatprep.subr.mxu0 0.0
    %2726 = vmatpush1.xpose.msra.mxu0 0.0
    %2727 = vmatprep.subr.mxu0 0.0
    %2728 = vmatpush1.xpose.msra.mxu0 0.0
    %2729 = vmatprep.subr.mxu0 0.0
    %2730 = vmatpush1.xpose.msra.mxu0 0.0
    %2731 = vmatprep.subr.mxu0 0.0
    %2732 = vmatpush1.xpose.msra.mxu0 0.0
    %2733 = vmatprep.subr.mxu0 0.0
    %2734 = vmatpush1.xpose.msra.mxu0 0.0
    %2735 = vmatprep.subr.mxu0 0.0
    %2736 = vmatpush1.xpose.msra.mxu0 0.0
    %2737 = vmatprep.subr.mxu0 0.0
    %2738 = vmatpush1.xpose.msra.mxu0 0.0
    %2739 = vmatprep.subr.mxu0 0.0
    %2740 = vmatpush1.xpose.msra.mxu0 0.0
    %2741 = vmatprep.subr.mxu0 0.0
    %2742 = vmatpush1.xpose.msra.mxu0 0.0
    %2743 = vmatprep.subr.mxu0 0.0
    %2744 = vmatpush1.xpose.msra.mxu0 0.0
    %2745 = vmatprep.subr.mxu0 0.0
    %2746 = vmatpush1.xpose.msra.mxu0 0.0
    %2747 = vmatprep.subr.mxu0 0.0
    %2748 = vmatpush1.xpose.msra.mxu0 0.0
    %2749 = vmatprep.subr.mxu0 0.0
    %2750 = vmatpush1.xpose.msra.mxu0 0.0
    %2751 = vmatprep.subr.mxu0 0.0
    %2752 = vmatpush1.xpose.msra.mxu0 0.0
    %2753 = vmatprep.subr.mxu0 0.0
    %2754 = vmatpush1.xpose.msra.mxu0 0.0
    %2755 = vmatprep.subr.mxu0 0.0
    %2756 = vmatpush1.xpose.msra.mxu0 0.0
    %2757 = vmatprep.subr.mxu0 0.0
    %2758 = vmatpush1.xpose.msra.mxu0 0.0
    %2759 = vmatprep.subr.mxu0 0.0
    %2760 = vmatpush1.xpose.msra.mxu0 0.0
    %2761 = vmatprep.subr.mxu0 0.0
    %2762 = vmatpush1.xpose.msra.mxu0 0.0
    %2763 = vmatprep.subr.mxu0 0.0
    %2764 = vmatpush1.xpose.msra.mxu0 0.0
    %2765 = vmatprep.subr.mxu0 0.0
    %2766 = vmatpush1.xpose.msra.mxu0 0.0
    %2767 = vmatprep.mubr.f32.mxu0 0.0
    %2768 = vmatmul.mubr.f32.gmra.mrb[0].mxu0 %v2699
    %v2769 = vpop.f32.mrb[0].mxu0
    %v2770 = vadd.f32 0.0, %v2769
    %v2771 = vpop.f32.mrb[0].mxu0
    %2772 = vdwg.mxu0
    %v2773 = vmul.f32 %v2770, 0.35355338
    %v2774 = vsel %vm130, %v2773, -inf
    %2775 = vmax.xlane.f32.xlu0 %v2774
    %v2776 = vpop.xlane.xlu0 %2775
    %v2777 = vsub.f32 %v2773, %v2776
    %v2778 = vmul.f32 %v2777, 1.442695
    %v2779 = vpow.pop %v2778
    %v2780 = vsel %vm130, %v2779, 0.0
    %2781 = vadd.xlane.f32.xlu0 %v2780
    %v2782 = vpop.xlane.xlu0 %2781
    %v2783 = vrcp.pop %v2782
    %v2784 = vmul.f32 %v2779, %v2783
    %2785 = vrot.lane.b32.xlu0 %v1849, 56
    %v2786 = vpop.permute.xlu0 %2785
    %v2789 = vsel %vm130, %v2784, 0
    %2791 = vmatprep.subr.mxu0 0.0
    %2792 = vmatpush1.msra.mxu0 %v2786
    %2793 = vmatprep.subr.mxu0 0.0
    %2794 = vmatpush1.msra.mxu0 0.0
    %2795 = vmatprep.subr.mxu0 0.0
    %2796 = vmatpush1.msra.mxu0 0.0
    %2797 = vmatprep.subr.mxu0 0.0
    %2798 = vmatpush1.msra.mxu0 0.0
    %2799 = vmatprep.subr.mxu0 0.0
    %2800 = vmatpush1.msra.mxu0 0.0
    %2801 = vmatprep.subr.mxu0 0.0
    %2802 = vmatpush1.msra.mxu0 0.0
    %2803 = vmatprep.subr.mxu0 0.0
    %2804 = vmatpush1.msra.mxu0 0.0
    %2805 = vmatprep.subr.mxu0 0.0
    %2806 = vmatpush1.msra.mxu0 0.0
    %2807 = vmatprep.subr.mxu0 0.0
    %2808 = vmatpush1.msra.mxu0 0.0
    %2809 = vmatprep.subr.mxu0 0.0
    %2810 = vmatpush1.msra.mxu0 0.0
    %2811 = vmatprep.subr.mxu0 0.0
    %2812 = vmatpush1.msra.mxu0 0.0
    %2813 = vmatprep.subr.mxu0 0.0
    %2814 = vmatpush1.msra.mxu0 0.0
    %2815 = vmatprep.subr.mxu0 0.0
    %2816 = vmatpush1.msra.mxu0 0.0
    %2817 = vmatprep.subr.mxu0 0.0
    %2818 = vmatpush1.msra.mxu0 0.0
    %2819 = vmatprep.subr.mxu0 0.0
    %2820 = vmatpush1.msra.mxu0 0.0
    %2821 = vmatprep.subr.mxu0 0.0
    %2822 = vmatpush1.msra.mxu0 0.0
    %2823 = vmatprep.subr.mxu0 0.0
    %2824 = vmatpush1.msra.mxu0 0.0
    %2825 = vmatprep.subr.mxu0 0.0
    %2826 = vmatpush1.msra.mxu0 0.0
    %2827 = vmatprep.subr.mxu0 0.0
    %2828 = vmatpush1.msra.mxu0 0.0
    %2829 = vmatprep.subr.mxu0 0.0
    %2830 = vmatpush1.msra.mxu0 0.0
    %2831 = vmatprep.subr.mxu0 0.0
    %2832 = vmatpush1.msra.mxu0 0.0
    %2833 = vmatprep.subr.mxu0 0.0
    %2834 = vmatpush1.msra.mxu0 0.0
    %2835 = vmatprep.subr.mxu0 0.0
    %2836 = vmatpush1.msra.mxu0 0.0
    %2837 = vmatprep.subr.mxu0 0.0
    %2838 = vmatpush1.msra.mxu0 0.0
    %2839 = vmatprep.subr.mxu0 0.0
    %2840 = vmatpush1.msra.mxu0 0.0
    %2841 = vmatprep.subr.mxu0 0.0
    %2842 = vmatpush1.msra.mxu0 0.0
    %2843 = vmatprep.subr.mxu0 0.0
    %2844 = vmatpush1.msra.mxu0 0.0
    %2845 = vmatprep.subr.mxu0 0.0
    %2846 = vmatpush1.msra.mxu0 0.0
    %2847 = vmatprep.subr.mxu0 0.0
    %2848 = vmatpush1.msra.mxu0 0.0
    %2849 = vmatprep.subr.mxu0 0.0
    %2850 = vmatpush1.msra.mxu0 0.0
    %2851 = vmatprep.subr.mxu0 0.0
    %2852 = vmatpush1.msra.mxu0 0.0
    %2853 = vmatprep.subr.mxu0 0.0
    %2854 = vmatpush1.msra.mxu0 0.0
    %2855 = vmatprep.mubr.f32.mxu0 0.0
    %2856 = vmatmul.mubr.f32.gmra.mrb[0].mxu0 %v2789
    %v2857 = vpop.f32.mrb[0].mxu0
    %v2858 = vadd.f32 0.0, %v2857
    %v2859 = vpop.f32.mrb[0].mxu0
    %2860 = vdwg.mxu0
    %2861 = vrot.lane.b32.xlu0 %v1849, 112
    %v2862 = vpop.permute.xlu0 %2861
    %2863 = vrot.lane.b32.xlu0 %v1849, 80
    %v2864 = vpop.permute.xlu0 %2863
    %v2865 = vsel %vm130, %v2862, 0
    %v2867 = vsel %vm130, %v2864, 0
    %2869 = vmatprep.subr.mxu0 0.0
    %2870 = vmatpush1.xpose.msra.mxu0 %v2867
    %2871 = vmatprep.subr.mxu0 0.0
    %2872 = vmatpush1.xpose.msra.mxu0 0.0
    %2873 = vmatprep.subr.mxu0 0.0
    %2874 = vmatpush1.xpose.msra.mxu0 0.0
    %2875 = vmatprep.subr.mxu0 0.0
    %2876 = vmatpush1.xpose.msra.mxu0 0.0
    %2877 = vmatprep.subr.mxu0 0.0
    %2878 = vmatpush1.xpose.msra.mxu0 0.0
    %2879 = vmatprep.subr.mxu0 0.0
    %2880 = vmatpush1.xpose.msra.mxu0 0.0
    %2881 = vmatprep.subr.mxu0 0.0
    %2882 = vmatpush1.xpose.msra.mxu0 0.0
    %2883 = vmatprep.subr.mxu0 0.0
    %2884 = vmatpush1.xpose.msra.mxu0 0.0
    %2885 = vmatprep.subr.mxu0 0.0
    %2886 = vmatpush1.xpose.msra.mxu0 0.0
    %2887 = vmatprep.subr.mxu0 0.0
    %2888 = vmatpush1.xpose.msra.mxu0 0.0
    %2889 = vmatprep.subr.mxu0 0.0
    %2890 = vmatpush1.xpose.msra.mxu0 0.0
    %2891 = vmatprep.subr.mxu0 0.0
    %2892 = vmatpush1.xpose.msra.mxu0 0.0
    %2893 = vmatprep.subr.mxu0 0.0
    %2894 = vmatpush1.xpose.msra.mxu0 0.0
    %2895 = vmatprep.subr.mxu0 0.0
    %2896 = vmatpush1.xpose.msra.mxu0 0.0
    %2897 = vmatprep.subr.mxu0 0.0
    %2898 = vmatpush1.xpose.msra.mxu0 0.0
    %2899 = vmatprep.subr.mxu0 0.0
    %2900 = vmatpush1.xpose.msra.mxu0 0.0
    %2901 = vmatprep.subr.mxu0 0.0
    %2902 = vmatpush1.xpose.msra.mxu0 0.0
    %2903 = vmatprep.subr.mxu0 0.0
    %2904 = vmatpush1.xpose.msra.mxu0 0.0
    %2905 = vmatprep.subr.mxu0 0.0
    %2906 = vmatpush1.xpose.msra.mxu0 0.0
    %2907 = vmatprep.subr.mxu0 0.0
    %2908 = vmatpush1.xpose.msra.mxu0 0.0
    %2909 = vmatprep.subr.mxu0 0.0
    %2910 = vmatpush1.xpose.msra.mxu0 0.0
    %2911 = vmatprep.subr.mxu0 0.0
    %2912 = vmatpush1.xpose.msra.mxu0 0.0
    %2913 = vmatprep.subr.mxu0 0.0
    %2914 = vmatpush1.xpose.msra.mxu0 0.0
    %2915 = vmatprep.subr.mxu0 0.0
    %2916 = vmatpush1.xpose.msra.mxu0 0.0
    %2917 = vmatprep.subr.mxu0 0.0
    %2918 = vmatpush1.xpose.msra.mxu0 0.0
    %2919 = vmatprep.subr.mxu0 0.0
    %2920 = vmatpush1.xpose.msra.mxu0 0.0
    %2921 = vmatprep.subr.mxu0 0.0
    %2922 = vmatpush1.xpose.msra.mxu0 0.0
    %2923 = vmatprep.subr.mxu0 0.0
    %2924 = vmatpush1.xpose.msra.mxu0 0.0
    %2925 = vmatprep.subr.mxu0 0.0
    %2926 = vmatpush1.xpose.msra.mxu0 0.0
    %2927 = vmatprep.subr.mxu0 0.0
    %2928 = vmatpush1.xpose.msra.mxu0 0.0
    %2929 = vmatprep.subr.mxu0 0.0
    %2930 = vmatpush1.xpose.msra.mxu0 0.0
    %2931 = vmatprep.subr.mxu0 0.0
    %2932 = vmatpush1.xpose.msra.mxu0 0.0
    %2933 = vmatprep.mubr.f32.mxu0 0.0
    %2934 = vmatmul.mubr.f32.gmra.mrb[0].mxu0 %v2865
    %v2935 = vpop.f32.mrb[0].mxu0
    %v2936 = vadd.f32 0.0, %v2935
    %v2937 = vpop.f32.mrb[0].mxu0
    %2938 = vdwg.mxu0
    %v2939 = vmul.f32 %v2936, 0.35355338
    %v2940 = vsel %vm130, %v2939, -inf
    %2941 = vmax.xlane.f32.xlu0 %v2940
    %v2942 = vpop.xlane.xlu0 %2941
    %v2943 = vsub.f32 %v2939, %v2942
    %v2944 = vmul.f32 %v2943, 1.442695
    %v2945 = vpow.pop %v2944
    %v2946 = vsel %vm130, %v2945, 0.0
    %2947 = vadd.xlane.f32.xlu0 %v2946
    %v2948 = vpop.xlane.xlu0 %2947
    %v2949 = vrcp.pop %v2948
    %v2950 = vmul.f32 %v2945, %v2949
    %2951 = vrot.lane.b32.xlu0 %v1849, 48
    %v2952 = vpop.permute.xlu0 %2951
    %v2955 = vsel %vm130, %v2950, 0
    %2957 = vmatprep.subr.mxu0 0.0
    %2958 = vmatpush1.msra.mxu0 %v2952
    %2959 = vmatprep.subr.mxu0 0.0
    %2960 = vmatpush1.msra.mxu0 0.0
    %2961 = vmatprep.subr.mxu0 0.0
    %2962 = vmatpush1.msra.mxu0 0.0
    %2963 = vmatprep.subr.mxu0 0.0
    %2964 = vmatpush1.msra.mxu0 0.0
    %2965 = vmatprep.subr.mxu0 0.0
    %2966 = vmatpush1.msra.mxu0 0.0
    %2967 = vmatprep.subr.mxu0 0.0
    %2968 = vmatpush1.msra.mxu0 0.0
    %2969 = vmatprep.subr.mxu0 0.0
    %2970 = vmatpush1.msra.mxu0 0.0
    %2971 = vmatprep.subr.mxu0 0.0
    %2972 = vmatpush1.msra.mxu0 0.0
    %2973 = vmatprep.subr.mxu0 0.0
    %2974 = vmatpush1.msra.mxu0 0.0
    %2975 = vmatprep.subr.mxu0 0.0
    %2976 = vmatpush1.msra.mxu0 0.0
    %2977 = vmatprep.subr.mxu0 0.0
    %2978 = vmatpush1.msra.mxu0 0.0
    %2979 = vmatprep.subr.mxu0 0.0
    %2980 = vmatpush1.msra.mxu0 0.0
    %2981 = vmatprep.subr.mxu0 0.0
    %2982 = vmatpush1.msra.mxu0 0.0
    %2983 = vmatprep.subr.mxu0 0.0
    %2984 = vmatpush1.msra.mxu0 0.0
    %2985 = vmatprep.subr.mxu0 0.0
    %2986 = vmatpush1.msra.mxu0 0.0
    %2987 = vmatprep.subr.mxu0 0.0
    %2988 = vmatpush1.msra.mxu0 0.0
    %2989 = vmatprep.subr.mxu0 0.0
    %2990 = vmatpush1.msra.mxu0 0.0
    %2991 = vmatprep.subr.mxu0 0.0
    %2992 = vmatpush1.msra.mxu0 0.0
    %2993 = vmatprep.subr.mxu0 0.0
    %2994 = vmatpush1.msra.mxu0 0.0
    %2995 = vmatprep.subr.mxu0 0.0
    %2996 = vmatpush1.msra.mxu0 0.0
    %2997 = vmatprep.subr.mxu0 0.0
    %2998 = vmatpush1.msra.mxu0 0.0
    %2999 = vmatprep.subr.mxu0 0.0
    %3000 = vmatpush1.msra.mxu0 0.0
    %3001 = vmatprep.subr.mxu0 0.0
    %3002 = vmatpush1.msra.mxu0 0.0
    %3003 = vmatprep.subr.mxu0 0.0
    %3004 = vmatpush1.msra.mxu0 0.0
    %3005 = vmatprep.subr.mxu0 0.0
    %3006 = vmatpush1.msra.mxu0 0.0
    %3007 = vmatprep.subr.mxu0 0.0
    %3008 = vmatpush1.msra.mxu0 0.0
    %3009 = vmatprep.subr.mxu0 0.0
    %3010 = vmatpush1.msra.mxu0 0.0
    %3011 = vmatprep.subr.mxu0 0.0
    %3012 = vmatpush1.msra.mxu0 0.0
    %3013 = vmatprep.subr.mxu0 0.0
    %3014 = vmatpush1.msra.mxu0 0.0
    %3015 = vmatprep.subr.mxu0 0.0
    %3016 = vmatpush1.msra.mxu0 0.0
    %3017 = vmatprep.subr.mxu0 0.0
    %3018 = vmatpush1.msra.mxu0 0.0
    %3019 = vmatprep.subr.mxu0 0.0
    %3020 = vmatpush1.msra.mxu0 0.0
    %3021 = vmatprep.mubr.f32.mxu0 0.0
    %3022 = vmatmul.mubr.f32.gmra.mrb[0].mxu0 %v2955
    %v3023 = vpop.f32.mrb[0].mxu0
    %v3024 = vadd.f32 0.0, %v3023
    %v3025 = vpop.f32.mrb[0].mxu0
    %3026 = vdwg.mxu0
    %3027 = vrot.lane.b32.xlu0 %v1849, 104
    %v3028 = vpop.permute.xlu0 %3027
    %3029 = vrot.lane.b32.xlu0 %v1849, 72
    %v3030 = vpop.permute.xlu0 %3029
    %v3031 = vsel %vm130, %v3028, 0
    %v3033 = vsel %vm130, %v3030, 0
    %3035 = vmatprep.subr.mxu0 0.0
    %3036 = vmatpush1.xpose.msra.mxu0 %v3033
    %3037 = vmatprep.subr.mxu0 0.0
    %3038 = vmatpush1.xpose.msra.mxu0 0.0
    %3039 = vmatprep.subr.mxu0 0.0
    %3040 = vmatpush1.xpose.msra.mxu0 0.0
    %3041 = vmatprep.subr.mxu0 0.0
    %3042 = vmatpush1.xpose.msra.mxu0 0.0
    %3043 = vmatprep.subr.mxu0 0.0
    %3044 = vmatpush1.xpose.msra.mxu0 0.0
    %3045 = vmatprep.subr.mxu0 0.0
    %3046 = vmatpush1.xpose.msra.mxu0 0.0
    %3047 = vmatprep.subr.mxu0 0.0
    %3048 = vmatpush1.xpose.msra.mxu0 0.0
    %3049 = vmatprep.subr.mxu0 0.0
    %3050 = vmatpush1.xpose.msra.mxu0 0.0
    %3051 = vmatprep.subr.mxu0 0.0
    %3052 = vmatpush1.xpose.msra.mxu0 0.0
    %3053 = vmatprep.subr.mxu0 0.0
    %3054 = vmatpush1.xpose.msra.mxu0 0.0
    %3055 = vmatprep.subr.mxu0 0.0
    %3056 = vmatpush1.xpose.msra.mxu0 0.0
    %3057 = vmatprep.subr.mxu0 0.0
    %3058 = vmatpush1.xpose.msra.mxu0 0.0
    %3059 = vmatprep.subr.mxu0 0.0
    %3060 = vmatpush1.xpose.msra.mxu0 0.0
    %3061 = vmatprep.subr.mxu0 0.0
    %3062 = vmatpush1.xpose.msra.mxu0 0.0
    %3063 = vmatprep.subr.mxu0 0.0
    %3064 = vmatpush1.xpose.msra.mxu0 0.0
    %3065 = vmatprep.subr.mxu0 0.0
    %3066 = vmatpush1.xpose.msra.mxu0 0.0
    %3067 = vmatprep.subr.mxu0 0.0
    %3068 = vmatpush1.xpose.msra.mxu0 0.0
    %3069 = vmatprep.subr.mxu0 0.0
    %3070 = vmatpush1.xpose.msra.mxu0 0.0
    %3071 = vmatprep.subr.mxu0 0.0
    %3072 = vmatpush1.xpose.msra.mxu0 0.0
    %3073 = vmatprep.subr.mxu0 0.0
    %3074 = vmatpush1.xpose.msra.mxu0 0.0
    %3075 = vmatprep.subr.mxu0 0.0
    %3076 = vmatpush1.xpose.msra.mxu0 0.0
    %3077 = vmatprep.subr.mxu0 0.0
    %3078 = vmatpush1.xpose.msra.mxu0 0.0
    %3079 = vmatprep.subr.mxu0 0.0
    %3080 = vmatpush1.xpose.msra.mxu0 0.0
    %3081 = vmatprep.subr.mxu0 0.0
    %3082 = vmatpush1.xpose.msra.mxu0 0.0
    %3083 = vmatprep.subr.mxu0 0.0
    %3084 = vmatpush1.xpose.msra.mxu0 0.0
    %3085 = vmatprep.subr.mxu0 0.0
    %3086 = vmatpush1.xpose.msra.mxu0 0.0
    %3087 = vmatprep.subr.mxu0 0.0
    %3088 = vmatpush1.xpose.msra.mxu0 0.0
    %3089 = vmatprep.subr.mxu0 0.0
    %3090 = vmatpush1.xpose.msra.mxu0 0.0
    %3091 = vmatprep.subr.mxu0 0.0
    %3092 = vmatpush1.xpose.msra.mxu0 0.0
    %3093 = vmatprep.subr.mxu0 0.0
    %3094 = vmatpush1.xpose.msra.mxu0 0.0
    %3095 = vmatprep.subr.mxu0 0.0
    %3096 = vmatpush1.xpose.msra.mxu0 0.0
    %3097 = vmatprep.subr.mxu0 0.0
    %3098 = vmatpush1.xpose.msra.mxu0 0.0
    %3099 = vmatprep.mubr.f32.mxu0 0.0
    %3100 = vmatmul.mubr.f32.gmra.mrb[0].mxu0 %v3031
    %v3101 = vpop.f32.mrb[0].mxu0
    %v3102 = vadd.f32 0.0, %v3101
    %v3103 = vpop.f32.mrb[0].mxu0
    %3104 = vdwg.mxu0
    %v3105 = vmul.f32 %v3102, 0.35355338
    %v3106 = vsel %vm130, %v3105, -inf
    %3107 = vmax.xlane.f32.xlu0 %v3106
    %v3108 = vpop.xlane.xlu0 %3107
    %v3109 = vsub.f32 %v3105, %v3108
    %v3110 = vmul.f32 %v3109, 1.442695
    %v3111 = vpow.pop %v3110
    %v3112 = vsel %vm130, %v3111, 0.0
    %3113 = vadd.xlane.f32.xlu0 %v3112
    %v3114 = vpop.xlane.xlu0 %3113
    %v3115 = vrcp.pop %v3114
    %v3116 = vmul.f32 %v3111, %v3115
    %3117 = vrot.lane.b32.xlu0 %v1849, 40
    %v3118 = vpop.permute.xlu0 %3117
    %v3121 = vsel %vm130, %v3116, 0
    %3123 = vmatprep.subr.mxu0 0.0
    %3124 = vmatpush1.msra.mxu0 %v3118
    %3125 = vmatprep.subr.mxu0 0.0
    %3126 = vmatpush1.msra.mxu0 0.0
    %3127 = vmatprep.subr.mxu0 0.0
    %3128 = vmatpush1.msra.mxu0 0.0
    %3129 = vmatprep.subr.mxu0 0.0
    %3130 = vmatpush1.msra.mxu0 0.0
    %3131 = vmatprep.subr.mxu0 0.0
    %3132 = vmatpush1.msra.mxu0 0.0
    %3133 = vmatprep.subr.mxu0 0.0
    %3134 = vmatpush1.msra.mxu0 0.0
    %3135 = vmatprep.subr.mxu0 0.0
    %3136 = vmatpush1.msra.mxu0 0.0
    %3137 = vmatprep.subr.mxu0 0.0
    %3138 = vmatpush1.msra.mxu0 0.0
    %3139 = vmatprep.subr.mxu0 0.0
    %3140 = vmatpush1.msra.mxu0 0.0
    %3141 = vmatprep.subr.mxu0 0.0
    %3142 = vmatpush1.msra.mxu0 0.0
    %3143 = vmatprep.subr.mxu0 0.0
    %3144 = vmatpush1.msra.mxu0 0.0
    %3145 = vmatprep.subr.mxu0 0.0
    %3146 = vmatpush1.msra.mxu0 0.0
    %3147 = vmatprep.subr.mxu0 0.0
    %3148 = vmatpush1.msra.mxu0 0.0
    %3149 = vmatprep.subr.mxu0 0.0
    %3150 = vmatpush1.msra.mxu0 0.0
    %3151 = vmatprep.subr.mxu0 0.0
    %3152 = vmatpush1.msra.mxu0 0.0
    %3153 = vmatprep.subr.mxu0 0.0
    %3154 = vmatpush1.msra.mxu0 0.0
    %3155 = vmatprep.subr.mxu0 0.0
    %3156 = vmatpush1.msra.mxu0 0.0
    %3157 = vmatprep.subr.mxu0 0.0
    %3158 = vmatpush1.msra.mxu0 0.0
    %3159 = vmatprep.subr.mxu0 0.0
    %3160 = vmatpush1.msra.mxu0 0.0
    %3161 = vmatprep.subr.mxu0 0.0
    %3162 = vmatpush1.msra.mxu0 0.0
    %3163 = vmatprep.subr.mxu0 0.0
    %3164 = vmatpush1.msra.mxu0 0.0
    %3165 = vmatprep.subr.mxu0 0.0
    %3166 = vmatpush1.msra.mxu0 0.0
    %3167 = vmatprep.subr.mxu0 0.0
    %3168 = vmatpush1.msra.mxu0 0.0
    %3169 = vmatprep.subr.mxu0 0.0
    %3170 = vmatpush1.msra.mxu0 0.0
    %3171 = vmatprep.subr.mxu0 0.0
    %3172 = vmatpush1.msra.mxu0 0.0
    %3173 = vmatprep.subr.mxu0 0.0
    %3174 = vmatpush1.msra.mxu0 0.0
    %3175 = vmatprep.subr.mxu0 0.0
    %3176 = vmatpush1.msra.mxu0 0.0
    %3177 = vmatprep.subr.mxu0 0.0
    %3178 = vmatpush1.msra.mxu0 0.0
    %3179 = vmatprep.subr.mxu0 0.0
    %3180 = vmatpush1.msra.mxu0 0.0
    %3181 = vmatprep.subr.mxu0 0.0
    %3182 = vmatpush1.msra.mxu0 0.0
    %3183 = vmatprep.subr.mxu0 0.0
    %3184 = vmatpush1.msra.mxu0 0.0
    %3185 = vmatprep.subr.mxu0 0.0
    %3186 = vmatpush1.msra.mxu0 0.0
    %3187 = vmatprep.mubr.f32.mxu0 0.0
    %3188 = vmatmul.mubr.f32.gmra.mrb[0].mxu0 %v3121
    %v3189 = vpop.f32.mrb[0].mxu0
    %v3190 = vadd.f32 0.0, %v3189
    %v3191 = vpop.f32.mrb[0].mxu0
    %3192 = vdwg.mxu0
    %3194 = vrot.lane.b32.xlu0 %v2858, 8
    %v3195 = vpop.permute.xlu0 %3194
    %3198 = vrot.lane.b32.xlu0 %v3024, 16
    %v3199 = vpop.permute.xlu0 %3198
    %3202 = vrot.lane.b32.xlu0 %v3190, 24
    %v3203 = vpop.permute.xlu0 %3202
    %v3205 = vsel %vm130, %v2692, %v3195
    %v3206 = vsel %vm804, %v3205, %v3199
    %v3207 = vsel %vm806, %v3206, %v3203
    %v3208 = vpack.c.bf16 %v3207, %v2529
    %v3209 = vlaneseq
    %v3210 = vshrl.u32 %v3209, 7
    %v3211 = vsub.s32 1, %v3210
    %v3212 = vrot.slane %v1790, %v3211
    %v3217 = vunpack.c.l.b16 %v1771
    %v3218 = vunpack.c.l.b16 %v1772
    %v3219 = vunpack.c.l.b16 %v1773
    %v3220 = vunpack.c.l.b16 %v1774
    %v3221 = vpack.c.b16 %v3218, %v3217
    %v3222 = vpack.c.b16 %v3220, %v3219
    %v3226 = vsel %vm82, %v3208, 0
    %3228 = vmatprep.subr.bf16.mxu0 0
    %3229 = vmatpush1.bf16.msra.mxu0 %v3221
    %3230 = vmatprep.subr.bf16.mxu0 0
    %3231 = vmatpush1.bf16.msra.mxu0 %v3222
    %3232 = vmatprep.subr.bf16.mxu0 0
    %3233 = vmatpush1.bf16.msra.mxu0 0
    %3234 = vmatprep.subr.bf16.mxu0 0
    %3235 = vmatpush1.bf16.msra.mxu0 0
    %3236 = vmatprep.subr.bf16.mxu0 0
    %3237 = vmatpush1.bf16.msra.mxu0 0
    %3238 = vmatprep.subr.bf16.mxu0 0
    %3239 = vmatpush1.bf16.msra.mxu0 0
    %3240 = vmatprep.subr.bf16.mxu0 0
    %3241 = vmatpush1.bf16.msra.mxu0 0
    %3242 = vmatprep.subr.bf16.mxu0 0
    %3243 = vmatpush1.bf16.msra.mxu0 0
    %3244 = vmatprep.subr.bf16.mxu0 0
    %3245 = vmatpush1.bf16.msra.mxu0 0
    %3246 = vmatprep.subr.bf16.mxu0 0
    %3247 = vmatpush1.bf16.msra.mxu0 0
    %3248 = vmatprep.subr.bf16.mxu0 0
    %3249 = vmatpush1.bf16.msra.mxu0 0
    %3250 = vmatprep.subr.bf16.mxu0 0
    %3251 = vmatpush1.bf16.msra.mxu0 0
    %3252 = vmatprep.subr.bf16.mxu0 0
    %3253 = vmatpush1.bf16.msra.mxu0 0
    %3254 = vmatprep.subr.bf16.mxu0 0
    %3255 = vmatpush1.bf16.msra.mxu0 0
    %3256 = vmatprep.subr.bf16.mxu0 0
    %3257 = vmatpush1.bf16.msra.mxu0 0
    %3258 = vmatprep.subr.bf16.mxu0 0
    %3259 = vmatpush1.bf16.msra.mxu0 0
    %3260 = vmatprep.mubr.bf16.mxu0 0
    %3261 = vmatmul.mubr.bf16.gmra.mrb[0].mxu0 %v3226
    %v3262 = vpop.f32.mrb[0].mxu0
    %v3263 = vadd.f32 %v3212, %v3262
    %v3264 = vpop.f32.mrb[0].mxu0
    %v3265 = vpop.f32.mrb[0].mxu0
    %v3266 = vadd.f32 %v3212, %v3265
    %v3267 = vpop.f32.mrb[0].mxu0
    %3268 = vdwg.mxu0
    %v3269 = vadd.f32 %v1763, %v3263
    %v3270 = vadd.f32 %v1764, %v3266
    %v3271 = vsel %vm82, %v3269, 0.0
    %3272 = vadd.xlane.f32.xlu0 %v3271
    %v3273 = vpop.xlane.xlu0 %3272
    %v3274 = vsel %vm82, %v3270, 0.0
    %3275 = vadd.xlane.f32.xlu0 %v3274
    %v3276 = vpop.xlane.xlu0 %3275
    %v3277 = vmul.f32 %v3273, %v1555
    %v3278 = vmul.f32 %v3276, %v1555
    %v3279 = vsub.f32 %v3269, %v3277
    %v3280 = vsub.f32 %v3270, %v3278
    %v3281 = vmul.f32 %v3279, %v3279
    %v3282 = vmul.f32 %v3280, %v3280
    %v3283 = vsel %vm82, %v3281, 0.0
    %3284 = vadd.xlane.f32.xlu0 %v3283
    %v3285 = vpop.xlane.xlu0 %3284
    %v3286 = vsel %vm82, %v3282, 0.0
    %3287 = vadd.xlane.f32.xlu0 %v3286
    %v3288 = vpop.xlane.xlu0 %3287
    %v3289 = vmul.f32 %v3285, %v1555
    %v3290 = vmul.f32 %v3288, %v1555
    %v3291 = vadd.f32 %v3289, 1e-05
    %v3292 = vadd.f32 %v3290, 1e-05
    %v3293 = vrsqrt.pop %v3291
    %v3294 = vrsqrt.pop %v3292
    %v3295 = vmul.f32 %v3279, %v3293
    %v3296 = vmul.f32 %v3280, %v3294
    %v3297 = vlaneseq
    %v3298 = vshrl.u32 %v3297, 7
    %v3299 = vsub.s32 4, %v3298
    %v3300 = vrot.slane %v1790, %v3299
    %v3301 = vmul.f32 %v3295, %v3300
    %v3302 = vmul.f32 %v3296, %v3300
    %v3303 = vlaneseq
    %v3304 = vshrl.u32 %v3303, 7
    %v3305 = vsub.s32 5, %v3304
    %v3306 = vrot.slane %v1790, %v3305
    %v3307 = vadd.f32 %v3301, %v3306
    %v3308 = vadd.f32 %v3302, %v3306
    %v3309 = vpack.c.bf16 %v3308, %v3307
    %v3310 = vlaneseq
    %v3311 = vshrl.u32 %v3310, 7
    %v3312 = vsub.s32 2, %v3311
    %v3313 = vrot.slane %v1790, %v3312
    %v3318 = vunpack.c.l.b16 %v1776
    %v3319 = vunpack.c.l.b16 %v1777
    %v3320 = vunpack.c.l.b16 %v1778
    %v3321 = vunpack.c.l.b16 %v1779
    %v3322 = vpack.c.b16 %v3319, %v3318
    %v3323 = vpack.c.b16 %v3321, %v3320
    %v3327 = vsel %vm82, %v3309, 0
    %3329 = vmatprep.subr.bf16.mxu0 0
    %3330 = vmatpush1.bf16.msra.mxu0 %v3322
    %3331 = vmatprep.subr.bf16.mxu0 0
    %3332 = vmatpush1.bf16.msra.mxu0 %v3323
    %3333 = vmatprep.subr.bf16.mxu0 0
    %3334 = vmatpush1.bf16.msra.mxu0 0
    %3335 = vmatprep.subr.bf16.mxu0 0
    %3336 = vmatpush1.bf16.msra.mxu0 0
    %3337 = vmatprep.subr.bf16.mxu0 0
    %3338 = vmatpush1.bf16.msra.mxu0 0
    %3339 = vmatprep.subr.bf16.mxu0 0
    %3340 = vmatpush1.bf16.msra.mxu0 0
    %3341 = vmatprep.subr.bf16.mxu0 0
    %3342 = vmatpush1.bf16.msra.mxu0 0
    %3343 = vmatprep.subr.bf16.mxu0 0
    %3344 = vmatpush1.bf16.msra.mxu0 0
    %3345 = vmatprep.subr.bf16.mxu0 0
    %3346 = vmatpush1.bf16.msra.mxu0 0
    %3347 = vmatprep.subr.bf16.mxu0 0
    %3348 = vmatpush1.bf16.msra.mxu0 0
    %3349 = vmatprep.subr.bf16.mxu0 0
    %3350 = vmatpush1.bf16.msra.mxu0 0
    %3351 = vmatprep.subr.bf16.mxu0 0
    %3352 = vmatpush1.bf16.msra.mxu0 0
    %3353 = vmatprep.subr.bf16.mxu0 0
    %3354 = vmatpush1.bf16.msra.mxu0 0
    %3355 = vmatprep.subr.bf16.mxu0 0
    %3356 = vmatpush1.bf16.msra.mxu0 0
    %3357 = vmatprep.subr.bf16.mxu0 0
    %3358 = vmatpush1.bf16.msra.mxu0 0
    %3359 = vmatprep.subr.bf16.mxu0 0
    %3360 = vmatpush1.bf16.msra.mxu0 0
    %3361 = vmatprep.mubr.bf16.mxu0 0
    %3362 = vmatmul.mubr.bf16.gmra.mrb[0].mxu0 %v3327
    %v3363 = vpop.f32.mrb[0].mxu0
    %v3364 = vadd.f32 %v3313, %v3363
    %v3365 = vpop.f32.mrb[0].mxu0
    %v3366 = vpop.f32.mrb[0].mxu0
    %v3367 = vadd.f32 %v3313, %v3366
    %v3368 = vpop.f32.mrb[0].mxu0
    %3369 = vdwg.mxu0
    %v3370 = vmax.f32 %v3364, 0.0
    %v3371 = vmax.f32 %v3367, 0.0
    %v3372 = vpack.c.bf16 %v3371, %v3370
    %v3373 = vlaneseq
    %v3374 = vshrl.u32 %v3373, 7
    %v3375 = vsub.s32 3, %v3374
    %v3376 = vrot.slane %v1790, %v3375
    %v3385 = vunpack.c.l.b16 %v1781
    %v3386 = vunpack.c.l.b16 %v1782
    %v3387 = vunpack.c.l.b16 %v1783
    %v3388 = vunpack.c.l.b16 %v1784
    %v3389 = vunpack.c.l.b16 %v1785
    %v3390 = vunpack.c.l.b16 %v1786
    %v3391 = vunpack.c.l.b16 %v1787
    %v3392 = vunpack.c.l.b16 %v1788
    %v3393 = vpack.c.b16 %v3386, %v3385
    %v3394 = vpack.c.b16 %v3388, %v3387
    %v3395 = vpack.c.b16 %v3390, %v3389
    %v3396 = vpack.c.b16 %v3392, %v3391
    %v3402 = vsel %vm1680, %v3372, 0
    %3404 = vmatprep.subr.bf16.mxu0 0
    %3405 = vmatpush1.bf16.msra.mxu0 %v3393
    %3406 = vmatprep.subr.bf16.mxu0 0
    %3407 = vmatpush1.bf16.msra.mxu0 %v3394
    %3408 = vmatprep.subr.bf16.mxu0 0
    %3409 = vmatpush1.bf16.msra.mxu0 %v3395
    %3410 = vmatprep.subr.bf16.mxu0 0
    %3411 = vmatpush1.bf16.msra.mxu0 %v3396
    %3412 = vmatprep.subr.bf16.mxu0 0
    %3413 = vmatpush1.bf16.msra.mxu0 0
    %3414 = vmatprep.subr.bf16.mxu0 0
    %3415 = vmatpush1.bf16.msra.mxu0 0
    %3416 = vmatprep.subr.bf16.mxu0 0
    %3417 = vmatpush1.bf16.msra.mxu0 0
    %3418 = vmatprep.subr.bf16.mxu0 0
    %3419 = vmatpush1.bf16.msra.mxu0 0
    %3420 = vmatprep.subr.bf16.mxu0 0
    %3421 = vmatpush1.bf16.msra.mxu0 0
    %3422 = vmatprep.subr.bf16.mxu0 0
    %3423 = vmatpush1.bf16.msra.mxu0 0
    %3424 = vmatprep.subr.bf16.mxu0 0
    %3425 = vmatpush1.bf16.msra.mxu0 0
    %3426 = vmatprep.subr.bf16.mxu0 0
    %3427 = vmatpush1.bf16.msra.mxu0 0
    %3428 = vmatprep.subr.bf16.mxu0 0
    %3429 = vmatpush1.bf16.msra.mxu0 0
    %3430 = vmatprep.subr.bf16.mxu0 0
    %3431 = vmatpush1.bf16.msra.mxu0 0
    %3432 = vmatprep.subr.bf16.mxu0 0
    %3433 = vmatpush1.bf16.msra.mxu0 0
    %3434 = vmatprep.subr.bf16.mxu0 0
    %3435 = vmatpush1.bf16.msra.mxu0 0
    %3436 = vmatprep.mubr.bf16.mxu0 0
    %3437 = vmatmul.mubr.bf16.gmra.mrb[0].mxu0 %v3402
    %v3438 = vpop.f32.mrb[0].mxu0
    %v3439 = vadd.f32 %v3376, %v3438
    %v3440 = vpop.f32.mrb[0].mxu0
    %v3441 = vpop.f32.mrb[0].mxu0
    %v3442 = vadd.f32 %v3376, %v3441
    %v3443 = vpop.f32.mrb[0].mxu0
    %3444 = vdwg.mxu0
    %v3445 = vadd.f32 %v3307, %v3439
    %v3446 = vadd.f32 %v3308, %v3442
    %v3447 = vsel %vm82, %v3445, 0.0
    %3448 = vadd.xlane.f32.xlu0 %v3447
    %v3449 = vpop.xlane.xlu0 %3448
    %v3450 = vsel %vm82, %v3446, 0.0
    %3451 = vadd.xlane.f32.xlu0 %v3450
    %v3452 = vpop.xlane.xlu0 %3451
    %v3453 = vmul.f32 %v3449, %v1555
    %v3454 = vmul.f32 %v3452, %v1555
    %v3455 = vsub.f32 %v3445, %v3453
    %v3456 = vsub.f32 %v3446, %v3454
    %v3457 = vmul.f32 %v3455, %v3455
    %v3458 = vmul.f32 %v3456, %v3456
    %v3459 = vsel %vm82, %v3457, 0.0
    %3460 = vadd.xlane.f32.xlu0 %v3459
    %v3461 = vpop.xlane.xlu0 %3460
    %v3462 = vsel %vm82, %v3458, 0.0
    %3463 = vadd.xlane.f32.xlu0 %v3462
    %v3464 = vpop.xlane.xlu0 %3463
    %v3465 = vmul.f32 %v3461, %v1555
    %v3466 = vmul.f32 %v3464, %v1555
    %v3467 = vadd.f32 %v3465, 1e-05
    %v3468 = vadd.f32 %v3466, 1e-05
    %v3469 = vrsqrt.pop %v3467
    %v3470 = vrsqrt.pop %v3468
    %v3471 = vmul.f32 %v3455, %v3469
    %v3472 = vmul.f32 %v3456, %v3470
    %v3473 = vlaneseq
    %v3474 = vshrl.u32 %v3473, 7
    %v3475 = vsub.s32 6, %v3474
    %v3476 = vrot.slane %v1790, %v3475
    %v3477 = vmul.f32 %v3471, %v3476
    %v3478 = vmul.f32 %v3472, %v3476
    %v3479 = vlaneseq
    %v3480 = vshrl.u32 %v3479, 7
    %v3481 = vsub.s32 7, %v3480
    %v3482 = vrot.slane %v1790, %v3481
    %v3483 = vadd.f32 %v3477, %v3482
    %v3484 = vadd.f32 %v3478, %v3482
    %v3485 = vld [vmem:[%s6] sm:$0x3]
    %v3486 = vsel %vm82, %v3483, 0.0
    %3487 = vadd.xlane.f32.xlu0 %v3486
    %v3488 = vpop.xlane.xlu0 %3487
    %v3489 = vsel %vm82, %v3484, 0.0
    %3490 = vadd.xlane.f32.xlu0 %v3489
    %v3491 = vpop.xlane.xlu0 %3490
    %v3492 = vmul.f32 %v3488, %v1555
    %v3493 = vmul.f32 %v3491, %v1555
    %v3494 = vsub.f32 %v3483, %v3492
    %v3495 = vsub.f32 %v3484, %v3493
    %v3496 = vmul.f32 %v3494, %v3494
    %v3497 = vmul.f32 %v3495, %v3495
    %v3498 = vsel %vm82, %v3496, 0.0
    %3499 = vadd.xlane.f32.xlu0 %v3498
    %v3500 = vpop.xlane.xlu0 %3499
    %v3501 = vsel %vm82, %v3497, 0.0
    %3502 = vadd.xlane.f32.xlu0 %v3501
    %v3503 = vpop.xlane.xlu0 %3502
    %v3504 = vmul.f32 %v3500, %v1555
    %v3505 = vmul.f32 %v3503, %v1555
    %v3506 = vadd.f32 %v3504, 1e-05
    %v3507 = vadd.f32 %v3505, 1e-05
    %v3508 = vrsqrt.pop %v3506
    %v3509 = vrsqrt.pop %v3507
    %v3510 = vmul.f32 %v3494, %v3508
    %v3511 = vmul.f32 %v3495, %v3509
    %v3512 = vlaneseq
    %v3513 = vshrl.u32 %v3512, 7
    %v3514 = vsub.s32 0, %v3513
    %v3515 = vrot.slane %v3485, %v3514
    %v3516 = vmul.f32 %v3510, %v3515
    %v3517 = vmul.f32 %v3511, %v3515
    %v3518 = vlaneseq
    %v3519 = vshrl.u32 %v3518, 7
    %v3520 = vsub.s32 1, %v3519
    %v3521 = vrot.slane %v3485, %v3520
    %v3522 = vadd.f32 %v3516, %v3521
    %v3523 = vadd.f32 %v3517, %v3521
    %3524 = vst.msk [vmem:[#allocation5] sm:$0xff] %vm82, %v3522
    %3525 = vst.msk [vmem:[#allocation5 + $0x8] sm:$0xff] %vm82, %v3523
    // Predicated region
    $region34: #{run_encoder_stack.1} parent=1 // pred_check
      _
    $region35: #{run_encoder_stack.1} parent=1 // pred_check_branch
      %3527 = sbr.rel (0) target = $region37
    $region36: #{run_encoder_stack.1} parent=1 // pred_region
      %s3529 = ssub.s32 256, 256
      %3530 = vsyncadd [#allocation4], %s3529
      %s3531 = sshll.u32 [#allocation5], 4
      %s3532 = int_to_ptr.vmem [resolvable:$true] %s3531
      %3537 = dma.vmem_to_hbm [thread:$0]  %s3532, 256, %s7, [#allocation4], 128, 128, 8
    $region37: #{run_encoder_stack.1} parent=1 // pred_fallthru
      _
    // Predicated region
    $region38: #{run_encoder_stack.1} parent=1 // pred_check
      _
    $region39: #{run_encoder_stack.1} parent=1 // pred_check_branch
      %3539 = sbr.rel (0) target = $region41
    $region40: #{run_encoder_stack.1} parent=1 // pred_region
      %3540 = dma.done [#allocation4], 256
    $region41: #{run_encoder_stack.1} parent=1 // pred_fallthru
      _
    %3541 = vsyncpa [#allocation3], 1
    %3542 = vsyncpa [#allocation4], 1

</llo_original>
